<compile_context>
chip_gen: v7x
topology: tpu7x:2x2x1
jax: 0.10.0
libtpu: 0.0.40
codegen_flags: <defaults>
</compile_context>

<pallas_src>
import functools

import jax
import jax.numpy as jnp
from jax.experimental import pallas as pl
from jax.experimental.pallas import tpu as pltpu


def conv_block_kernel(colstart_ref, x_ref, scale_ref, bias_ref, w_ref, o_ref,
                      *, TR, Wp, H, W, win, K):
    # colstart_ref: (T,)                   int32 SMEM   (t*TR) % Wp per tile
    # x_ref:        (1, R_ext, Cin_pad)    bf16         halo'd flat-row slab of one image
    # scale_ref:    (1, Cin_pad)           f32          gamma / sqrt(var + eps)
    # bias_ref:     (1, Cin_pad)           f32          beta - mean * scale
    # w_ref:        (9, Cin_pad, Cout_pad) bf16         conv taps, tap = kh*3 + kw
    # o_ref:        (1, TR, Cout_pad)      bf16         this tile's rows of the padded grid
    t = pl.program_id(1)
    cout_pad = o_ref.shape[2]

    # 16-aligned dynamic window covering every 3x3 tap of this tile's TR output rows.
    # x_ext row e of this image corresponds to flat padded-grid index q = e - 2*Wp.
    start = pl.multiple_of(t * TR, 16)
    xw = x_ref[0, pl.ds(start, win), :].astype(jnp.float32)          # (win, Cin_pad)

    # Fused BatchNorm affine + ReLU in f32 (v5e has no bf16 VPU).
    a = jnp.maximum(xw * scale_ref[...] + bias_ref[...], 0.0)

    # In-kernel border mask (no HBM/VMEM mask array): window row i -> q = t*TR - 2*Wp + i.
    # Keep only interior pixels (1 <= y <= H, 1 <= x <= W) so pad-ring / halo / tile-fill
    # rows are exactly zero after the folded affine (whose bias can be > 0).
    i = jax.lax.broadcasted_iota(jnp.int32, (win, 1), 0)
    q = i + (t * TR - 2 * Wp)
    row_ok = (q >= Wp) & (q < (H + 1) * Wp)          # also kills halo / tile-fill rows
    u = i + colstart_ref[t]                          # u >= 0 and u % Wp == column of q
    udiv = jnp.zeros_like(u)
    for k in range(1, K + 1):                        # division-free u // Wp   (u < (K+1)*Wp)
        udiv = udiv + (u >= k * Wp).astype(jnp.int32)
    col = u - udiv * Wp
    keep = row_ok & (col >= 1) & (col <= W)

    # Single bf16 pre-cast; the 9 tap slices below overlap almost entirely.
    a16 = jnp.where(keep, a, 0.0).astype(jnp.bfloat16)

    # 9 per-tap MXU matmuls accumulated in f32 into a tile-local (TR, Cout_pad) accumulator.
    # Note: dx = +-1 taps "wrap" across flattened row boundaries at the pad columns; the
    # affected outputs are ring pixels that the wrapper crops, and row tiles split only on
    # whole flat rows, so the wrap stays benign under tiling.
    # (Further v6e/v7x win: K-fuse taps to K=3*Cin / 9*Cin when Cin % 128 == 0.)
    acc = jnp.zeros((TR, cout_pad), jnp.float32)
    for tap in range(9):
        dy, dx = tap // 3 - 1, tap % 3 - 1
        off = 2 * Wp + dy * Wp + dx                  # static offset inside the window
        acc = acc + jnp.dot(a16[off:off + TR], w_ref[tap],
                            preferred_element_type=jnp.float32)

    o_ref[...] = acc.reshape(1, TR, cout_pad).astype(o_ref.dtype)


def conv_block(x_nchw, gamma, beta, w_oihw, eps=1e-5, tr_target=256):
    N, Cin, H, W = x_nchw.shape
    Cout = w_oihw.shape[0]
    Hp, Wp = H + 2, W + 2                            # conv zero-pad ring of 1
    R = Hp * Wp                                      # flat rows of the padded grid

    Cin_pad = max(16, ((Cin + 15) // 16) * 16)       # bf16 sublane tile -> aligned w_ref[tap]
    Cout_pad = ((Cout + 127) // 128) * 128           # lane-dense (unmasked) output stores

    # Row tiling: T tiles of TR flat rows (TR a multiple of 16 for block / load alignment).
    T = max(1, -(-R // tr_target))
    TR = ((-(-R // T)) + 15) // 16 * 16
    R_pad = T * TR
    win = (TR + 3 * Wp + 1 + 7) // 8 * 8             # per-tile window (covers all 9 taps)
    K = (win + Wp - 2) // Wp                         # static bound for in-kernel mod-Wp

    flat_needed = (T - 1) * TR + win                 # last tile's window end
    rows_total = -(-flat_needed // Wp)               # image rows incl. ring + halo + fill
    R_ext = rows_total * Wp

    # --- BatchNorm2d training-mode batch stats (biased variance) folded to scale/bias (f32).
    xf = x_nchw.astype(jnp.float32)
    g = gamma.astype(jnp.float32)
    b = beta.astype(jnp.float32)
    mean = jnp.mean(xf, axis=(0, 2, 3))
    var = jnp.mean(jnp.square(xf - mean[None, :, None, None]), axis=(0, 2, 3))
    inv_std = jax.lax.rsqrt(var + eps)
    scale = jnp.pad(g * inv_std, (0, Cin_pad - Cin)).reshape(1, Cin_pad)
    bias = jnp.pad(b - mean * g * inv_std, (0, Cin_pad - Cin)).reshape(1, Cin_pad)

    # --- NCHW -> NHWC, then ONE pad adding the conv ring, 2 top halo rows, bottom halo /
    # tile-fill rows and the channel padding; flatten rows; ship bf16 (halves the HBM read).
    x_nhwc = jnp.transpose(x_nchw, (0, 2, 3, 1))
    x_ext = jnp.pad(x_nhwc, ((0, 0), (3, rows_total - H - 3), (1, 1), (0, Cin_pad - Cin)))
    x_ext = x_ext.reshape(N, R_ext, Cin_pad).astype(jnp.bfloat16)

    # --- Conv weights: OIHW -> (9, Cin_pad, Cout_pad) bf16, tap-major, tile-aligned slices.
    w = jnp.transpose(w_oihw, (2, 3, 1, 0)).reshape(9, Cin, Cout)
    w = jnp.pad(w, ((0, 0), (0, Cin_pad - Cin), (0, Cout_pad - Cout))).astype(jnp.bfloat16)

    # Per-tile column phase (SMEM scalar prefetch) -> no integer division in the kernel.
    colstart = (jnp.arange(T, dtype=jnp.int32) * TR) % Wp

    kernel = functools.partial(conv_block_kernel, TR=TR, Wp=Wp, H=H, W=W, win=win, K=K)
    out = pl.pallas_call(
        kernel,
        out_shape=jax.ShapeDtypeStruct((N, R_pad, Cout_pad), jnp.bfloat16),
        grid_spec=pltpu.PrefetchScalarGridSpec(
            num_scalar_prefetch=1,
            grid=(N, T),                             # image x row-tile; both independent
            in_specs=[
                pl.BlockSpec((1, R_ext, Cin_pad), lambda n, t, cs: (n, 0, 0)),
                pl.BlockSpec((1, Cin_pad), lambda n, t, cs: (0, 0)),
                pl.BlockSpec((1, Cin_pad), lambda n, t, cs: (0, 0)),
                pl.BlockSpec((9, Cin_pad, Cout_pad), lambda n, t, cs: (0, 0, 0)),
            ],
            out_specs=pl.BlockSpec((1, TR, Cout_pad), lambda n, t, cs: (n, t, 0)),
        ),
        compiler_params=pltpu.CompilerParams(
            dimension_semantics=("parallel", "parallel"),
            vmem_limit_bytes=32 * 1024 * 1024),      # usage here is far below the limit
    )(colstart, x_ext, scale, bias, w)

    # Crop pad ring / tile-fill rows / padded channels and return NCHW in the input dtype.
    out = out[:, :R, :].reshape(N, Hp, Wp, Cout_pad)[:, 1:H + 1, 1:W + 1, :Cout]
    return jnp.transpose(out, (0, 3, 1, 2)).astype(x_nchw.dtype)


def conv_block_reference(x, gamma, beta, w_oihw, eps=1e-5):
    mean = jnp.mean(x, axis=(0, 2, 3), keepdims=True)
    var = jnp.mean(jnp.square(x - mean), axis=(0, 2, 3), keepdims=True)
    xh = (x - mean) / jnp.sqrt(var + eps)
    xh = xh * gamma[None, :, None, None] + beta[None, :, None, None]
    a = jnp.maximum(xh, 0.0)
    return jax.lax.conv_general_dilated(
        a, w_oihw, window_strides=(1, 1), padding=((1, 1), (1, 1)),
        dimension_numbers=("NCHW", "OIHW", "NCHW"))


if __name__ == "__main__":
    N, Cin, Cout, H, W = 2, 4, 8, 16, 16

    key = jax.random.PRNGKey(0)
    k1, k2, k3, k4 = jax.random.split(key, 4)
    x = jax.random.normal(k1, (N, Cin, H, W), jnp.float32)
    gamma = jax.random.uniform(k2, (Cin,), jnp.float32, 0.5, 1.5)
    beta = 0.1 * jax.random.normal(k3, (Cin,), jnp.float32)
    w = jax.random.normal(k4, (Cout, Cin, 3, 3), jnp.float32) / jnp.sqrt(Cin * 9.0)

    out = jax.jit(conv_block)(x, gamma, beta, w)
    jax.block_until_ready(out)

    ref = conv_block_reference(x, gamma, beta, w)
    assert out.shape == (N, Cout, H, W), out.shape
    # bf16 input / MXU operands / output (f32 BN affine + f32 accumulation) -> loose tol.
    max_err = float(jnp.max(jnp.abs(out - ref)))
    assert jnp.allclose(out, ref, atol=5e-2, rtol=5e-2), max_err

    print("KERNEL_OK")
</pallas_src>

<mosaic_0001>
module attributes {stable_mosaic.version = 11 : i64} {
  func.func @conv_block_kernel(%arg0: i32, %arg1: i32, %arg2: memref<2xi32, #tpu.memory_space<smem>>, %arg3: memref<1x414x16xbf16, #tpu.memory_space<vmem>>, %arg4: memref<1x16xf32, #tpu.memory_space<vmem>>, %arg5: memref<1x16xf32, #tpu.memory_space<vmem>>, %arg6: memref<9x16x128xbf16, #tpu.memory_space<vmem>>, %arg7: memref<1x176x128xbf16, #tpu.memory_space<vmem>>) attributes {dimension_semantics = [#tpu.dimension_semantics<parallel>, #tpu.dimension_semantics<parallel>], iteration_bounds = array<i64: 2, 2>, scalar_prefetch = 1 : i64, scratch_operands = 0 : i64, tpu.core_type = #tpu.core_type<tc>, window_params = [{transform_indices = @transform_0, window_bounds = array<i64: 1, 414, 16>}, {pipeline_mode = #tpu.pipeline_mode<synchronous>, transform_indices = @transform_1, window_bounds = array<i64: 1, 16>}, {pipeline_mode = #tpu.pipeline_mode<synchronous>, transform_indices = @transform_2, window_bounds = array<i64: 1, 16>}, {pipeline_mode = #tpu.pipeline_mode<synchronous>, transform_indices = @transform_3, window_bounds = array<i64: 9, 16, 128>}, {transform_indices = @transform_4, window_bounds = array<i64: 1, 176, 128>}]} {
    %c176_i32 = arith.constant 176 : i32
    %0 = arith.muli %arg1, %c176_i32 : i32
    %1 = tpu.assume_multiple %0, 16 : i32
    %c0 = arith.constant 0 : index
    %2 = arith.index_cast %1 : i32 to index
    %c0_0 = arith.constant 0 : index
    %3 = vector.load %arg3[%c0, %2, %c0_0] : memref<1x414x16xbf16, #tpu.memory_space<vmem>>, vector<1x232x16xbf16>
    %4 = vector.shape_cast %3 : vector<1x232x16xbf16> to vector<232x16xbf16>
    %5 = arith.extf %4 : vector<232x16xbf16> to vector<232x16xf32>
    %c0_1 = arith.constant 0 : index
    %c0_2 = arith.constant 0 : index
    %6 = vector.load %arg4[%c0_1, %c0_2] : memref<1x16xf32, #tpu.memory_space<vmem>>, vector<1x16xf32>
    %7 = vector.broadcast %6 : vector<1x16xf32> to vector<232x16xf32>
    %8 = arith.mulf %5, %7 : vector<232x16xf32>
    %c0_3 = arith.constant 0 : index
    %c0_4 = arith.constant 0 : index
    %9 = vector.load %arg5[%c0_3, %c0_4] : memref<1x16xf32, #tpu.memory_space<vmem>>, vector<1x16xf32>
    %10 = vector.broadcast %9 : vector<1x16xf32> to vector<232x16xf32>
    %11 = arith.addf %8, %10 : vector<232x16xf32>
    %cst = arith.constant 0.000000e+00 : f32
    %12 = vector.broadcast %cst : f32 to vector<232x16xf32>
    %13 = arith.maximumf %11, %12 : vector<232x16xf32>
    %14 = tpu.iota {dimensions = array<i32: 0>} : vector<232x1xi32>
    %c176_i32_5 = arith.constant 176 : i32
    %15 = arith.muli %arg1, %c176_i32_5 : i32
    %c36_i32 = arith.constant 36 : i32
    %16 = arith.subi %15, %c36_i32 : i32
    %17 = vector.broadcast %16 : i32 to vector<232x1xi32>
    %18 = arith.addi %14, %17 : vector<232x1xi32>
    %c18_i32 = arith.constant 18 : i32
    %19 = vector.broadcast %c18_i32 : i32 to vector<232x1xi32>
    %20 = arith.cmpi sge, %18, %19 : vector<232x1xi32>
    %c306_i32 = arith.constant 306 : i32
    %21 = vector.broadcast %c306_i32 : i32 to vector<232x1xi32>
    %22 = arith.cmpi slt, %18, %21 : vector<232x1xi32>
    %23 = arith.andi %20, %22 : vector<232x1xi1>
    %24 = arith.index_cast %arg1 : i32 to index
    %25 = memref.load %arg2[%24] : memref<2xi32, #tpu.memory_space<smem>>
    %26 = vector.broadcast %25 : i32 to vector<232x1xi32>
    %27 = arith.addi %14, %26 : vector<232x1xi32>
    %c0_i32 = arith.constant 0 : i32
    %28 = vector.broadcast %c0_i32 : i32 to vector<232x1xi32>
    %c18_i32_6 = arith.constant 18 : i32
    %29 = vector.broadcast %c18_i32_6 : i32 to vector<232x1xi32>
    %30 = arith.cmpi sge, %27, %29 : vector<232x1xi32>
    %31 = arith.extui %30 : vector<232x1xi1> to vector<232x1xi32>
    %32 = arith.addi %28, %31 : vector<232x1xi32>
    %c36_i32_7 = arith.constant 36 : i32
    %33 = vector.broadcast %c36_i32_7 : i32 to vector<232x1xi32>
    %34 = arith.cmpi sge, %27, %33 : vector<232x1xi32>
    %35 = arith.extui %34 : vector<232x1xi1> to vector<232x1xi32>
    %36 = arith.addi %32, %35 : vector<232x1xi32>
    %c54_i32 = arith.constant 54 : i32
    %37 = vector.broadcast %c54_i32 : i32 to vector<232x1xi32>
    %38 = arith.cmpi sge, %27, %37 : vector<232x1xi32>
    %39 = arith.extui %38 : vector<232x1xi1> to vector<232x1xi32>
    %40 = arith.addi %36, %39 : vector<232x1xi32>
    %c72_i32 = arith.constant 72 : i32
    %41 = vector.broadcast %c72_i32 : i32 to vector<232x1xi32>
    %42 = arith.cmpi sge, %27, %41 : vector<232x1xi32>
    %43 = arith.extui %42 : vector<232x1xi1> to vector<232x1xi32>
    %44 = arith.addi %40, %43 : vector<232x1xi32>
    %c90_i32 = arith.constant 90 : i32
    %45 = vector.broadcast %c90_i32 : i32 to vector<232x1xi32>
    %46 = arith.cmpi sge, %27, %45 : vector<232x1xi32>
    %47 = arith.extui %46 : vector<232x1xi1> to vector<232x1xi32>
    %48 = arith.addi %44, %47 : vector<232x1xi32>
    %c108_i32 = arith.constant 108 : i32
    %49 = vector.broadcast %c108_i32 : i32 to vector<232x1xi32>
    %50 = arith.cmpi sge, %27, %49 : vector<232x1xi32>
    %51 = arith.extui %50 : vector<232x1xi1> to vector<232x1xi32>
    %52 = arith.addi %48, %51 : vector<232x1xi32>
    %c126_i32 = arith.constant 126 : i32
    %53 = vector.broadcast %c126_i32 : i32 to vector<232x1xi32>
    %54 = arith.cmpi sge, %27, %53 : vector<232x1xi32>
    %55 = arith.extui %54 : vector<232x1xi1> to vector<232x1xi32>
    %56 = arith.addi %52, %55 : vector<232x1xi32>
    %c144_i32 = arith.constant 144 : i32
    %57 = vector.broadcast %c144_i32 : i32 to vector<232x1xi32>
    %58 = arith.cmpi sge, %27, %57 : vector<232x1xi32>
    %59 = arith.extui %58 : vector<232x1xi1> to vector<232x1xi32>
    %60 = arith.addi %56, %59 : vector<232x1xi32>
    %c162_i32 = arith.constant 162 : i32
    %61 = vector.broadcast %c162_i32 : i32 to vector<232x1xi32>
    %62 = arith.cmpi sge, %27, %61 : vector<232x1xi32>
    %63 = arith.extui %62 : vector<232x1xi1> to vector<232x1xi32>
    %64 = arith.addi %60, %63 : vector<232x1xi32>
    %c180_i32 = arith.constant 180 : i32
    %65 = vector.broadcast %c180_i32 : i32 to vector<232x1xi32>
    %66 = arith.cmpi sge, %27, %65 : vector<232x1xi32>
    %67 = arith.extui %66 : vector<232x1xi1> to vector<232x1xi32>
    %68 = arith.addi %64, %67 : vector<232x1xi32>
    %c198_i32 = arith.constant 198 : i32
    %69 = vector.broadcast %c198_i32 : i32 to vector<232x1xi32>
    %70 = arith.cmpi sge, %27, %69 : vector<232x1xi32>
    %71 = arith.extui %70 : vector<232x1xi1> to vector<232x1xi32>
    %72 = arith.addi %68, %71 : vector<232x1xi32>
    %c216_i32 = arith.constant 216 : i32
    %73 = vector.broadcast %c216_i32 : i32 to vector<232x1xi32>
    %74 = arith.cmpi sge, %27, %73 : vector<232x1xi32>
    %75 = arith.extui %74 : vector<232x1xi1> to vector<232x1xi32>
    %76 = arith.addi %72, %75 : vector<232x1xi32>
    %c234_i32 = arith.constant 234 : i32
    %77 = vector.broadcast %c234_i32 : i32 to vector<232x1xi32>
    %78 = arith.cmpi sge, %27, %77 : vector<232x1xi32>
    %79 = arith.extui %78 : vector<232x1xi1> to vector<232x1xi32>
    %80 = arith.addi %76, %79 : vector<232x1xi32>
    %c18_i32_8 = arith.constant 18 : i32
    %81 = vector.broadcast %c18_i32_8 : i32 to vector<232x1xi32>
    %82 = arith.muli %80, %81 : vector<232x1xi32>
    %83 = arith.subi %27, %82 : vector<232x1xi32>
    %c1_i32 = arith.constant 1 : i32
    %84 = vector.broadcast %c1_i32 : i32 to vector<232x1xi32>
    %85 = arith.cmpi sge, %83, %84 : vector<232x1xi32>
    %86 = arith.andi %23, %85 : vector<232x1xi1>
    %c16_i32 = arith.constant 16 : i32
    %87 = vector.broadcast %c16_i32 : i32 to vector<232x1xi32>
    %88 = arith.cmpi sle, %83, %87 : vector<232x1xi32>
    %89 = arith.andi %86, %88 : vector<232x1xi1>
    %cst_9 = arith.constant 0.000000e+00 : f32
    %90 = vector.shape_cast %89 : vector<232x1xi1> to vector<232x1xi1>
    %91 = vector.broadcast %90 : vector<232x1xi1> to vector<232x16xi1>
    %92 = vector.broadcast %cst_9 : f32 to vector<232x16xf32>
    %93 = arith.select %91, %13, %92 : vector<232x16xi1>, vector<232x16xf32>
    %94 = arith.truncf %93 : vector<232x16xf32> to vector<232x16xbf16>
    %cst_10 = arith.constant 0.000000e+00 : f32
    %95 = vector.broadcast %cst_10 : f32 to vector<176x128xf32>
    %96 = vector.extract_strided_slice %94 {offsets = [17, 0], sizes = [176, 16], strides = [1, 1]} : vector<232x16xbf16> to vector<176x16xbf16>
    %c0_11 = arith.constant 0 : index
    %c0_12 = arith.constant 0 : index
    %c0_13 = arith.constant 0 : index
    %97 = vector.load %arg6[%c0_11, %c0_12, %c0_13] : memref<9x16x128xbf16, #tpu.memory_space<vmem>>, vector<1x16x128xbf16>
    %98 = vector.shape_cast %97 : vector<1x16x128xbf16> to vector<16x128xbf16>
    %cst_14 = arith.constant dense<0.000000e+00> : vector<176x128xf32>
    %99 = tpu.matmul %96, %98, %cst_14 {dimension_numbers = #tpu.dot_dimension_numbers<[1], [0], [0], [1], [0, 0, 1, 1], [], []>} : vector<176x16xbf16>, vector<16x128xbf16>, vector<176x128xf32> -> vector<176x128xf32>
    %100 = arith.addf %95, %99 : vector<176x128xf32>
    %101 = vector.extract_strided_slice %94 {offsets = [18, 0], sizes = [176, 16], strides = [1, 1]} : vector<232x16xbf16> to vector<176x16xbf16>
    %c1 = arith.constant 1 : index
    %c0_15 = arith.constant 0 : index
    %c0_16 = arith.constant 0 : index
    %102 = vector.load %arg6[%c1, %c0_15, %c0_16] : memref<9x16x128xbf16, #tpu.memory_space<vmem>>, vector<1x16x128xbf16>
    %103 = vector.shape_cast %102 : vector<1x16x128xbf16> to vector<16x128xbf16>
    %cst_17 = arith.constant dense<0.000000e+00> : vector<176x128xf32>
    %104 = tpu.matmul %101, %103, %cst_17 {dimension_numbers = #tpu.dot_dimension_numbers<[1], [0], [0], [1], [0, 0, 1, 1], [], []>} : vector<176x16xbf16>, vector<16x128xbf16>, vector<176x128xf32> -> vector<176x128xf32>
    %105 = arith.addf %100, %104 : vector<176x128xf32>
    %106 = vector.extract_strided_slice %94 {offsets = [19, 0], sizes = [176, 16], strides = [1, 1]} : vector<232x16xbf16> to vector<176x16xbf16>
    %c2 = arith.constant 2 : index
    %c0_18 = arith.constant 0 : index
    %c0_19 = arith.constant 0 : index
    %107 = vector.load %arg6[%c2, %c0_18, %c0_19] : memref<9x16x128xbf16, #tpu.memory_space<vmem>>, vector<1x16x128xbf16>
    %108 = vector.shape_cast %107 : vector<1x16x128xbf16> to vector<16x128xbf16>
    %cst_20 = arith.constant dense<0.000000e+00> : vector<176x128xf32>
    %109 = tpu.matmul %106, %108, %cst_20 {dimension_numbers = #tpu.dot_dimension_numbers<[1], [0], [0], [1], [0, 0, 1, 1], [], []>} : vector<176x16xbf16>, vector<16x128xbf16>, vector<176x128xf32> -> vector<176x128xf32>
    %110 = arith.addf %105, %109 : vector<176x128xf32>
    %111 = vector.extract_strided_slice %94 {offsets = [35, 0], sizes = [176, 16], strides = [1, 1]} : vector<232x16xbf16> to vector<176x16xbf16>
    %c3 = arith.constant 3 : index
    %c0_21 = arith.constant 0 : index
    %c0_22 = arith.constant 0 : index
    %112 = vector.load %arg6[%c3, %c0_21, %c0_22] : memref<9x16x128xbf16, #tpu.memory_space<vmem>>, vector<1x16x128xbf16>
    %113 = vector.shape_cast %112 : vector<1x16x128xbf16> to vector<16x128xbf16>
    %cst_23 = arith.constant dense<0.000000e+00> : vector<176x128xf32>
    %114 = tpu.matmul %111, %113, %cst_23 {dimension_numbers = #tpu.dot_dimension_numbers<[1], [0], [0], [1], [0, 0, 1, 1], [], []>} : vector<176x16xbf16>, vector<16x128xbf16>, vector<176x128xf32> -> vector<176x128xf32>
    %115 = arith.addf %110, %114 : vector<176x128xf32>
    %116 = vector.extract_strided_slice %94 {offsets = [36, 0], sizes = [176, 16], strides = [1, 1]} : vector<232x16xbf16> to vector<176x16xbf16>
    %c4 = arith.constant 4 : index
    %c0_24 = arith.constant 0 : index
    %c0_25 = arith.constant 0 : index
    %117 = vector.load %arg6[%c4, %c0_24, %c0_25] : memref<9x16x128xbf16, #tpu.memory_space<vmem>>, vector<1x16x128xbf16>
    %118 = vector.shape_cast %117 : vector<1x16x128xbf16> to vector<16x128xbf16>
    %cst_26 = arith.constant dense<0.000000e+00> : vector<176x128xf32>
    %119 = tpu.matmul %116, %118, %cst_26 {dimension_numbers = #tpu.dot_dimension_numbers<[1], [0], [0], [1], [0, 0, 1, 1], [], []>} : vector<176x16xbf16>, vector<16x128xbf16>, vector<176x128xf32> -> vector<176x128xf32>
    %120 = arith.addf %115, %119 : vector<176x128xf32>
    %121 = vector.extract_strided_slice %94 {offsets = [37, 0], sizes = [176, 16], strides = [1, 1]} : vector<232x16xbf16> to vector<176x16xbf16>
    %c5 = arith.constant 5 : index
    %c0_27 = arith.constant 0 : index
    %c0_28 = arith.constant 0 : index
    %122 = vector.load %arg6[%c5, %c0_27, %c0_28] : memref<9x16x128xbf16, #tpu.memory_space<vmem>>, vector<1x16x128xbf16>
    %123 = vector.shape_cast %122 : vector<1x16x128xbf16> to vector<16x128xbf16>
    %cst_29 = arith.constant dense<0.000000e+00> : vector<176x128xf32>
    %124 = tpu.matmul %121, %123, %cst_29 {dimension_numbers = #tpu.dot_dimension_numbers<[1], [0], [0], [1], [0, 0, 1, 1], [], []>} : vector<176x16xbf16>, vector<16x128xbf16>, vector<176x128xf32> -> vector<176x128xf32>
    %125 = arith.addf %120, %124 : vector<176x128xf32>
    %126 = vector.extract_strided_slice %94 {offsets = [53, 0], sizes = [176, 16], strides = [1, 1]} : vector<232x16xbf16> to vector<176x16xbf16>
    %c6 = arith.constant 6 : index
    %c0_30 = arith.constant 0 : index
    %c0_31 = arith.constant 0 : index
    %127 = vector.load %arg6[%c6, %c0_30, %c0_31] : memref<9x16x128xbf16, #tpu.memory_space<vmem>>, vector<1x16x128xbf16>
    %128 = vector.shape_cast %127 : vector<1x16x128xbf16> to vector<16x128xbf16>
    %cst_32 = arith.constant dense<0.000000e+00> : vector<176x128xf32>
    %129 = tpu.matmul %126, %128, %cst_32 {dimension_numbers = #tpu.dot_dimension_numbers<[1], [0], [0], [1], [0, 0, 1, 1], [], []>} : vector<176x16xbf16>, vector<16x128xbf16>, vector<176x128xf32> -> vector<176x128xf32>
    %130 = arith.addf %125, %129 : vector<176x128xf32>
    %131 = vector.extract_strided_slice %94 {offsets = [54, 0], sizes = [176, 16], strides = [1, 1]} : vector<232x16xbf16> to vector<176x16xbf16>
    %c7 = arith.constant 7 : index
    %c0_33 = arith.constant 0 : index
    %c0_34 = arith.constant 0 : index
    %132 = vector.load %arg6[%c7, %c0_33, %c0_34] : memref<9x16x128xbf16, #tpu.memory_space<vmem>>, vector<1x16x128xbf16>
    %133 = vector.shape_cast %132 : vector<1x16x128xbf16> to vector<16x128xbf16>
    %cst_35 = arith.constant dense<0.000000e+00> : vector<176x128xf32>
    %134 = tpu.matmul %131, %133, %cst_35 {dimension_numbers = #tpu.dot_dimension_numbers<[1], [0], [0], [1], [0, 0, 1, 1], [], []>} : vector<176x16xbf16>, vector<16x128xbf16>, vector<176x128xf32> -> vector<176x128xf32>
    %135 = arith.addf %130, %134 : vector<176x128xf32>
    %136 = vector.extract_strided_slice %94 {offsets = [55, 0], sizes = [176, 16], strides = [1, 1]} : vector<232x16xbf16> to vector<176x16xbf16>
    %c8 = arith.constant 8 : index
    %c0_36 = arith.constant 0 : index
    %c0_37 = arith.constant 0 : index
    %137 = vector.load %arg6[%c8, %c0_36, %c0_37] : memref<9x16x128xbf16, #tpu.memory_space<vmem>>, vector<1x16x128xbf16>
    %138 = vector.shape_cast %137 : vector<1x16x128xbf16> to vector<16x128xbf16>
    %cst_38 = arith.constant dense<0.000000e+00> : vector<176x128xf32>
    %139 = tpu.matmul %136, %138, %cst_38 {dimension_numbers = #tpu.dot_dimension_numbers<[1], [0], [0], [1], [0, 0, 1, 1], [], []>} : vector<176x16xbf16>, vector<16x128xbf16>, vector<176x128xf32> -> vector<176x128xf32>
    %140 = arith.addf %135, %139 : vector<176x128xf32>
    %141 = vector.shape_cast %140 : vector<176x128xf32> to vector<1x176x128xf32>
    %142 = arith.truncf %141 : vector<1x176x128xf32> to vector<1x176x128xbf16>
    %c0_39 = arith.constant 0 : index
    %c0_40 = arith.constant 0 : index
    %c0_41 = arith.constant 0 : index
    %143 = vector.load %arg7[%c0_39, %c0_40, %c0_41] : memref<1x176x128xbf16, #tpu.memory_space<vmem>>, vector<1x176x128xbf16>
    tpu.vector_store %arg7[%c0_39, %c0_40, %c0_41], %142 {strides = array<i32>} : memref<1x176x128xbf16, #tpu.memory_space<vmem>>, vector<1x176x128xbf16>,
    return
  }
  func.func @transform_0(%arg0: i32, %arg1: i32, %arg2: memref<2xi32, #tpu.memory_space<smem>>) -> (i32, i32, i32) {
    %c0_i32 = arith.constant 0 : i32
    %c0_i32_0 = arith.constant 0 : i32
    %c0_i32_1 = arith.constant 0 : i32
    return %arg0, %c0_i32, %c0_i32_0 : i32, i32, i32
  }
  func.func @transform_1(%arg0: i32, %arg1: i32, %arg2: memref<2xi32, #tpu.memory_space<smem>>) -> (i32, i32) {
    %c0_i32 = arith.constant 0 : i32
    %c0_i32_0 = arith.constant 0 : i32
    %c0_i32_1 = arith.constant 0 : i32
    return %c0_i32, %c0_i32_0 : i32, i32
  }
  func.func @transform_2(%arg0: i32, %arg1: i32, %arg2: memref<2xi32, #tpu.memory_space<smem>>) -> (i32, i32) {
    %c0_i32 = arith.constant 0 : i32
    %c0_i32_0 = arith.constant 0 : i32
    %c0_i32_1 = arith.constant 0 : i32
    return %c0_i32, %c0_i32_0 : i32, i32
  }
  func.func @transform_3(%arg0: i32, %arg1: i32, %arg2: memref<2xi32, #tpu.memory_space<smem>>) -> (i32, i32, i32) {
    %c0_i32 = arith.constant 0 : i32
    %c0_i32_0 = arith.constant 0 : i32
    %c0_i32_1 = arith.constant 0 : i32
    %c0_i32_2 = arith.constant 0 : i32
    return %c0_i32, %c0_i32_0, %c0_i32_1 : i32, i32, i32
  }
  func.func @transform_4(%arg0: i32, %arg1: i32, %arg2: memref<2xi32, #tpu.memory_space<smem>>) -> (i32, i32, i32) {
    %c0_i32 = arith.constant 0 : i32
    %c0_i32_0 = arith.constant 0 : i32
    return %arg0, %arg1, %c0_i32 : i32, i32, i32
  }
}

</mosaic_0001>

<llo_original>
// kernel: conv_block.1
$region0: #{conv_block.1}
  #allocation0 [shape = 'u32[]', space=smem, size = 0x4, offset = 0x4, fixed_abs, tag = 'smem constant byte address 0x4 - core index']
  #allocation1 [shape = 'u32[144,128]{1,0:T(1,128)}', space=vmem, size = 0x12000, scoped, tag = 'internal scratch']
  #allocation2 [shape = 's32[1]{0}', space=sflag, size = 0x4, scoped, tag = 'scoped memory for conv_block.1']
  #allocation3 [shape = 'u8[512]{0}', space=smem, size = 0x200, scoped, tag = 'prefetched SMEM operand 0']
  %s0 = inlined_call_operand.vmem [shape: s32[2], index: 0, kind: input, shape index: {}]
  %s1 = inlined_call_operand.vmem [shape: bf16[2,414,16], index: 1, kind: input, shape index: {}]
  %s2 = inlined_call_operand.vmem [shape: f32[1,16], index: 2, kind: input, shape index: {}]
  %s3 = inlined_call_operand.vmem [shape: f32[1,16], index: 3, kind: input, shape index: {}]
  %s4 = inlined_call_operand.vmem [shape: bf16[9,16,128], index: 4, kind: input, shape index: {}]
  %s5 = inlined_call_operand.vmem [shape: bf16[2,352,128], index: 5, kind: output, shape index: {}]
  %s6 = sld [smem:[#allocation0]]
  $region49: #{conv_block.1} parent=0
    _
  %s8 = ssub.s32 1, %s6
  %s9 = scalar_select 0, %s8, %s6
  %s10 = sshll.u32 %s0, 4
  %s11 = int_to_ptr.vmem [resolvable:$true] %s10
  %13 = dma.vmem_to_smem %s11, 16, [#allocation3], [#allocation2]
  %14 = dma.done [#allocation2], 16
  %15 = sfence
  loop: start=0, step=1, limit=6
  $region2: #{conv_block.1} parent=0 // loop_pre_header
    _
  $region3: #{conv_block.1} parent=0 // loop_header
    %s17 = sphi 0, %s21
    %p18 = scmp.ge.s32.totalorder %s17, 6
    %s24 = sphi 0, %s36
    %s25 = sphi 0, %s32
    %s26 = sphi 0, %s24
    %s27 = sphi 0, %s25
    %s28 = sphi 0, %s26
    %s29 = sphi 0, %s27
    %s39 = sphi 0, %s41
    %s42 = sphi 0, %s39
    %s43 = sphi 0, %s42
    %s59 = sphi 0, %s43
    %s63 = sphi 0, %s63
    %s65 = sphi 0, %s63
    %s66 = sphi 0, %s65
    %s80 = sphi 0, %s66
    %s84 = sphi 0, %s84
    %s86 = sphi 0, %s84
    %s87 = sphi 0, %s86
    %s101 = sphi 0, %s87
    %s105 = sphi 0, %s105
    %s107 = sphi 0, %s105
    %s108 = sphi 0, %s107
    %s122 = sphi 0, %s108
    %s130 = sphi 0, %s132
    %s133 = sphi 0, %s130
    %s134 = sphi 0, %s133
    %s150 = sphi 0, %s134
  $region4: #{conv_block.1} parent=0 // loop_header_branch
    %20 = sbr.rel (%p18) target = $region8
  $region5: #{conv_block.1} parent=0 // loop_body
    %s22 = ssub.s32 %s17, 1
    %s23 = ssub.s32 %s17, 2
    %s30 = sadd.s32 1, %s25
    %p31 = scmp.ge.s32.totalorder %s30, 2
    %s32 = scalar_select %p31, 0, %s30
    %s33 = sadd.s32 1, %s24
    %s34 = scalar_select %p31, %s33, %s24
    %p35 = scmp.ge.s32.totalorder %s34, 2
    %s36 = scalar_select %p35, 0, %s34
    %s37 = ssub.s32 %s24, %s36
    %p38 = scmp.eq.s32.totalorder %s37, 0
    %s40 = sadd.s32 %s39, 1
    %s41 = scalar_select %p38, %s39, %s40
    %p44 = pneg %p38
    %p45 = scmp.eq.s32.totalorder %s17, 3
    %p46 = por %p44, %p45
    %p47 = scmp.ne.s32.totalorder %s39, %s42
    %p48 = scmp.eq.s32.totalorder %s17, 0
    %p49 = por %p47, %p48
    %p50 = scmp.ne.s32.totalorder %s39, %s42
    %p51 = scmp.eq.s32.totalorder %s22, 3
    %p52 = por %p50, %p51
    %p53 = scmp.ne.s32.totalorder %s42, %s43
    %p54 = scmp.eq.s32.totalorder %s22, 0
    %p55 = por %p53, %p54
    %p56 = scmp.ne.s32.totalorder %s42, %s43
    %p57 = scmp.eq.s32.totalorder %s23, 3
    %p58 = por %p56, %p57
    %p60 = scmp.ne.s32.totalorder %s43, %s59
    %p61 = scmp.eq.s32.totalorder %s23, 0
    %p62 = por %p60, %p61
    %s64 = sadd.s32 %s63, 1
    %p67 = scmp.eq.s32.totalorder %s17, 3
    %p68 = scmp.ne.s32.totalorder %s63, %s65
    %p69 = scmp.eq.s32.totalorder %s17, 0
    %p70 = por %p68, %p69
    %p71 = scmp.ne.s32.totalorder %s63, %s65
    %p72 = scmp.eq.s32.totalorder %s22, 3
    %p73 = por %p71, %p72
    %p74 = scmp.ne.s32.totalorder %s65, %s66
    %p75 = scmp.eq.s32.totalorder %s22, 0
    %p76 = por %p74, %p75
    %p77 = scmp.ne.s32.totalorder %s65, %s66
    %p78 = scmp.eq.s32.totalorder %s23, 3
    %p79 = por %p77, %p78
    %p81 = scmp.ne.s32.totalorder %s66, %s80
    %p82 = scmp.eq.s32.totalorder %s23, 0
    %p83 = por %p81, %p82
    %s85 = sadd.s32 %s84, 1
    %p88 = scmp.eq.s32.totalorder %s17, 3
    %p89 = scmp.ne.s32.totalorder %s84, %s86
    %p90 = scmp.eq.s32.totalorder %s17, 0
    %p91 = por %p89, %p90
    %p92 = scmp.ne.s32.totalorder %s84, %s86
    %p93 = scmp.eq.s32.totalorder %s22, 3
    %p94 = por %p92, %p93
    %p95 = scmp.ne.s32.totalorder %s86, %s87
    %p96 = scmp.eq.s32.totalorder %s22, 0
    %p97 = por %p95, %p96
    %p98 = scmp.ne.s32.totalorder %s86, %s87
    %p99 = scmp.eq.s32.totalorder %s23, 3
    %p100 = por %p98, %p99
    %p102 = scmp.ne.s32.totalorder %s87, %s101
    %p103 = scmp.eq.s32.totalorder %s23, 0
    %p104 = por %p102, %p103
    %s106 = sadd.s32 %s105, 1
    %p109 = scmp.eq.s32.totalorder %s17, 3
    %p110 = scmp.ne.s32.totalorder %s105, %s107
    %p111 = scmp.eq.s32.totalorder %s17, 0
    %p112 = por %p110, %p111
    %p113 = scmp.ne.s32.totalorder %s105, %s107
    %p114 = scmp.eq.s32.totalorder %s22, 3
    %p115 = por %p113, %p114
    %p116 = scmp.ne.s32.totalorder %s107, %s108
    %p117 = scmp.eq.s32.totalorder %s22, 0
    %p118 = por %p116, %p117
    %p119 = scmp.ne.s32.totalorder %s107, %s108
    %p120 = scmp.eq.s32.totalorder %s23, 3
    %p121 = por %p119, %p120
    %p123 = scmp.ne.s32.totalorder %s108, %s122
    %p124 = scmp.eq.s32.totalorder %s23, 0
    %p125 = por %p123, %p124
    %s126 = ssub.s32 %s24, %s36
    %s127 = ssub.s32 %s25, %s32
    %s128 = sor.u32 %s126, %s127
    %p129 = scmp.eq.s32.totalorder %s128, 0
    %s131 = sadd.s32 %s130, 1
    %s132 = scalar_select %p129, %s130, %s131
    %p135 = pneg %p129
    %p136 = scmp.eq.s32.totalorder %s17, 3
    %p137 = por %p135, %p136
    %p138 = scmp.ne.s32.totalorder %s130, %s133
    %p139 = scmp.eq.s32.totalorder %s17, 0
    %p140 = por %p138, %p139
    %p141 = scmp.ne.s32.totalorder %s130, %s133
    %p142 = scmp.eq.s32.totalorder %s22, 3
    %p143 = por %p141, %p142
    %p144 = scmp.ne.s32.totalorder %s133, %s134
    %p145 = scmp.eq.s32.totalorder %s22, 0
    %p146 = por %p144, %p145
    %p147 = scmp.ne.s32.totalorder %s133, %s134
    %p148 = scmp.eq.s32.totalorder %s23, 3
    %p149 = por %p147, %p148
    %p151 = scmp.ne.s32.totalorder %s134, %s150
    %p152 = scmp.eq.s32.totalorder %s23, 0
    %p153 = por %p151, %p152
    %p154 = scmp.le.s32.totalorder 1, %s17
    %p155 = scmp.lt.s32.totalorder %s17, 5
    %p156 = pnand %p154, %p155
    %p157 = pneg %p156
    // Predicated region
    $region9: #{conv_block.1} parent=5 // pred_check
      _
    $region10: #{conv_block.1} parent=5 // pred_check_branch
      %159 = sbr.rel (%p156) target = $region12
    $region11: #{conv_block.1} parent=5 // pred_region
      %s160 = ssub.s32 %s17, 1
      // Predicated region
      $region13: #{conv_block.1} parent=11 // pred_check
        %p161 = pneg %p76
      $region14: #{conv_block.1} parent=11 // pred_check_branch
        %163 = sbr.rel (%p161) target = $region16
      $region15: #{conv_block.1} parent=11 // pred_region
        _
      $region16: #{conv_block.1} parent=11 // pred_fallthru
        _
      // Predicated region
      $region17: #{conv_block.1} parent=11 // pred_check
        %p164 = pneg %p97
      $region18: #{conv_block.1} parent=11 // pred_check_branch
        %166 = sbr.rel (%p164) target = $region20
      $region19: #{conv_block.1} parent=11 // pred_region
        _
      $region20: #{conv_block.1} parent=11 // pred_fallthru
        _
      // Predicated region
      $region21: #{conv_block.1} parent=11 // pred_check
        %p167 = pneg %p118
      $region22: #{conv_block.1} parent=11 // pred_check_branch
        %169 = sbr.rel (%p167) target = $region24
      $region23: #{conv_block.1} parent=11 // pred_region
        _
      $region24: #{conv_block.1} parent=11 // pred_fallthru
        _
    $region12: #{conv_block.1} parent=5 // pred_fallthru
      _
    %p170 = scmp.lt.s32.totalorder %s17, 4
    // Predicated region
    $region25: #{conv_block.1} parent=5 // pred_check
      %p171 = pneg %p170
    $region26: #{conv_block.1} parent=5 // pred_check_branch
      %173 = sbr.rel (%p171) target = $region28
    $region27: #{conv_block.1} parent=5 // pred_region
      // Predicated region
      $region29: #{conv_block.1} parent=27 // pred_check
        %p174 = pneg %p49
      $region30: #{conv_block.1} parent=27 // pred_check_branch
        %176 = sbr.rel (%p174) target = $region32
      $region31: #{conv_block.1} parent=27 // pred_region
        %p177 = scmp.lt.s32.totalorder %s24, 1
        %s178 = scalar_select %p177, %s24, 1
        %s179 = smul.addr %s178, 52
        %s180 = smul.addr %s179, 4
        %s181 = scalar_lea.vmem %s1, %s180
      $region32: #{conv_block.1} parent=27 // pred_fallthru
        _
    $region28: #{conv_block.1} parent=5 // pred_fallthru
      _
    %p182 = scmp.le.s32.totalorder 1, %s17
    %p183 = scmp.lt.s32.totalorder %s17, 5
    %p184 = pnand %p182, %p183
    %p185 = pneg %p184
    // Predicated region
    $region33: #{conv_block.1} parent=5 // pred_check
      _
    $region34: #{conv_block.1} parent=5 // pred_check_branch
      %187 = sbr.rel (%p184) target = $region36
    $region35: #{conv_block.1} parent=5 // pred_region
      %s188 = ssub.s32 %s17, 1
      %p189 = scmp.lt.s32.totalorder %s26, 1
      %s190 = scalar_select %p189, %s26, 1
      %s191 = smul.addr %s190, 52
      %s192 = smul.addr %s191, 4
      %s193 = scalar_lea.vmem %s1, %s192
      %p194 = pneg %p55
      %p195 = pneg %p52
      %p196 = pneg %p76
      %p197 = pneg %p73
      %p198 = pneg %p97
      %p199 = pneg %p94
      %p200 = pneg %p118
      %p201 = pneg %p115
      %p202 = pneg %p146
      %p203 = pneg %p143
      %s204 = smul.u32 22, %s27
      %p205 = scmp.lt.s32.totalorder %s26, 1
      %s206 = scalar_select %p205, %s26, 1
      %p207 = scmp.lt.s32.totalorder %s204, 43
      %s208 = scalar_select %p207, %s204, 43
      %s209 = smul.addr %s206, 44
      %s210 = sadd.s32 %s208, %s209
      %s211 = smul.addr %s210, 4
      %s212 = scalar_lea.vmem %s5, %s211
      %p213 = scmp.lt.s32.totalorder %s26, 1
      %s214 = scalar_select %p213, %s26, 1
      %s215 = smul.addr %s214, 52
      %s216 = smul.addr %s215, 4
      %s217 = scalar_lea.vmem %s1, %s216
      %s218 = smul.u32 22, %s27
      %p219 = scmp.lt.s32.totalorder %s26, 1
      %s220 = scalar_select %p219, %s26, 1
      %p221 = scmp.lt.s32.totalorder %s218, 43
      %s222 = scalar_select %p221, %s218, 43
      %s223 = smul.addr %s220, 44
      %s224 = sadd.s32 %s222, %s223
      %s225 = smul.addr %s224, 4
      %s226 = scalar_lea.vmem %s5, %s225
      %s227 = smul.u32 22, %s27
      %s229 = smul.u32 %s27, 176
      %s230 = sshra.s32 %s229, 3
      %s231 = sand.u32 %s229, 7
      %s232 = smul.addr %s230, 4
      %s233 = scalar_lea.vmem %s217, %s232
      %v234 = vld [vmem:[%s233 + $0x8] sm:$0xf]
      %v235 = vld [vmem:[%s233 + $0xc] sm:$0xf]
      %v236 = vld [vmem:[%s233 + $0x10] sm:$0xf]
      %v237 = vld [vmem:[%s233 + $0x14] sm:$0xf]
      %v238 = vld [vmem:[%s233 + $0x18] sm:$0xf]
      %v239 = vld [vmem:[%s233 + $0x1c] sm:$0xf]
      %v240 = vld [vmem:[%s233 + $0x20] sm:$0xf]
      %v241 = vld [vmem:[%s233 + $0x24] sm:$0xf]
      %v242 = vld [vmem:[%s233 + $0x28] sm:$0xf]
      %v243 = vld [vmem:[%s233 + $0x2c] sm:$0xf]
      %v244 = vld [vmem:[%s233 + $0x30] sm:$0xf]
      %v245 = vld [vmem:[%s233 + $0x34] sm:$0xf]
      %v246 = vld [vmem:[%s233 + $0x38] sm:$0xf]
      %v247 = vld [vmem:[%s233 + $0x3c] sm:$0xf]
      %v248 = vld [vmem:[%s233 + $0x40] sm:$0xf]
      %v249 = vld [vmem:[%s233 + $0x44] sm:$0xf]
      %v250 = vld [vmem:[%s233 + $0x48] sm:$0xf]
      %v251 = vld [vmem:[%s233 + $0x4c] sm:$0xf]
      %v252 = vld [vmem:[%s233 + $0x50] sm:$0xf]
      %v253 = vld [vmem:[%s233 + $0x54] sm:$0xf]
      %v254 = vld [vmem:[%s233 + $0x58] sm:$0xf]
      %v255 = vld [vmem:[%s233 + $0x5c] sm:$0xf]
      %v256 = vld [vmem:[%s233 + $0x60] sm:$0xf]
      %v257 = vld [vmem:[%s233 + $0x64] sm:$0xf]
      %v258 = vld [vmem:[%s233 + $0x68] sm:$0xf]
      %v259 = vld [vmem:[%s233 + $0x6c] sm:$0xf]
      %v260 = vld [vmem:[%s233 + $0x70] sm:$0xf]
      %v261 = vunpack.c.l.bf16 %v234
      %v262 = vunpack.c.l.bf16 %v235
      %v263 = vunpack.c.l.bf16 %v236
      %v264 = vunpack.c.l.bf16 %v237
      %v265 = vunpack.c.l.bf16 %v238
      %v266 = vunpack.c.l.bf16 %v239
      %v267 = vunpack.c.l.bf16 %v240
      %v268 = vunpack.c.l.bf16 %v241
      %v269 = vunpack.c.l.bf16 %v242
      %v270 = vunpack.c.l.bf16 %v243
      %v271 = vunpack.c.l.bf16 %v244
      %v272 = vunpack.c.l.bf16 %v245
      %v273 = vunpack.c.l.bf16 %v246
      %v274 = vunpack.c.l.bf16 %v247
      %v275 = vunpack.c.l.bf16 %v248
      %v276 = vunpack.c.l.bf16 %v249
      %v277 = vunpack.c.l.bf16 %v250
      %v278 = vunpack.c.l.bf16 %v251
      %v279 = vunpack.c.l.bf16 %v252
      %v280 = vunpack.c.l.bf16 %v253
      %v281 = vunpack.c.l.bf16 %v254
      %v282 = vunpack.c.l.bf16 %v255
      %v283 = vunpack.c.l.bf16 %v256
      %v284 = vunpack.c.l.bf16 %v257
      %v285 = vunpack.c.l.bf16 %v258
      %v286 = vunpack.c.l.bf16 %v259
      %v287 = vunpack.c.l.bf16 %v260
      %v288 = vld [vmem:[%s2] sm:$0x1]
      %v290 = vlaneseq
      %v291 = vshrl.u32 %v290, 7
      %v292 = vsub.s32 0, %v291
      %v293 = vrot.slane %v288, %v292
      %v295 = vmul.f32 %v261, %v293
      %v296 = vmul.f32 %v262, %v293
      %v297 = vmul.f32 %v263, %v293
      %v298 = vmul.f32 %v264, %v293
      %v299 = vmul.f32 %v265, %v293
      %v300 = vmul.f32 %v266, %v293
      %v301 = vmul.f32 %v267, %v293
      %v302 = vmul.f32 %v268, %v293
      %v303 = vmul.f32 %v269, %v293
      %v304 = vmul.f32 %v270, %v293
      %v305 = vmul.f32 %v271, %v293
      %v306 = vmul.f32 %v272, %v293
      %v307 = vmul.f32 %v273, %v293
      %v308 = vmul.f32 %v274, %v293
      %v309 = vmul.f32 %v275, %v293
      %v310 = vmul.f32 %v276, %v293
      %v311 = vmul.f32 %v277, %v293
      %v312 = vmul.f32 %v278, %v293
      %v313 = vmul.f32 %v279, %v293
      %v314 = vmul.f32 %v280, %v293
      %v315 = vmul.f32 %v281, %v293
      %v316 = vmul.f32 %v282, %v293
      %v317 = vmul.f32 %v283, %v293
      %v318 = vmul.f32 %v284, %v293
      %v319 = vmul.f32 %v285, %v293
      %v320 = vmul.f32 %v286, %v293
      %v321 = vmul.f32 %v287, %v293
      %v322 = vld [vmem:[%s3] sm:$0x1]
      %v324 = vlaneseq
      %v325 = vshrl.u32 %v324, 7
      %v326 = vsub.s32 0, %v325
      %v327 = vrot.slane %v322, %v326
      %v329 = vadd.f32 %v295, %v327
      %v330 = vadd.f32 %v296, %v327
      %v331 = vadd.f32 %v297, %v327
      %v332 = vadd.f32 %v298, %v327
      %v333 = vadd.f32 %v299, %v327
      %v334 = vadd.f32 %v300, %v327
      %v335 = vadd.f32 %v301, %v327
      %v336 = vadd.f32 %v302, %v327
      %v337 = vadd.f32 %v303, %v327
      %v338 = vadd.f32 %v304, %v327
      %v339 = vadd.f32 %v305, %v327
      %v340 = vadd.f32 %v306, %v327
      %v341 = vadd.f32 %v307, %v327
      %v342 = vadd.f32 %v308, %v327
      %v343 = vadd.f32 %v309, %v327
      %v344 = vadd.f32 %v310, %v327
      %v345 = vadd.f32 %v311, %v327
      %v346 = vadd.f32 %v312, %v327
      %v347 = vadd.f32 %v313, %v327
      %v348 = vadd.f32 %v314, %v327
      %v349 = vadd.f32 %v315, %v327
      %v350 = vadd.f32 %v316, %v327
      %v351 = vadd.f32 %v317, %v327
      %v352 = vadd.f32 %v318, %v327
      %v353 = vadd.f32 %v319, %v327
      %v354 = vadd.f32 %v320, %v327
      %v355 = vadd.f32 %v321, %v327
      %v356 = vmax.f32 %v329, 0.0
      %v357 = vmax.f32 %v330, 0.0
      %v358 = vmax.f32 %v331, 0.0
      %v359 = vmax.f32 %v332, 0.0
      %v360 = vmax.f32 %v333, 0.0
      %v361 = vmax.f32 %v334, 0.0
      %v362 = vmax.f32 %v335, 0.0
      %v363 = vmax.f32 %v336, 0.0
      %v364 = vmax.f32 %v337, 0.0
      %v365 = vmax.f32 %v338, 0.0
      %v366 = vmax.f32 %v339, 0.0
      %v367 = vmax.f32 %v340, 0.0
      %v368 = vmax.f32 %v341, 0.0
      %v369 = vmax.f32 %v342, 0.0
      %v370 = vmax.f32 %v343, 0.0
      %v371 = vmax.f32 %v344, 0.0
      %v372 = vmax.f32 %v345, 0.0
      %v373 = vmax.f32 %v346, 0.0
      %v374 = vmax.f32 %v347, 0.0
      %v375 = vmax.f32 %v348, 0.0
      %v376 = vmax.f32 %v349, 0.0
      %v377 = vmax.f32 %v350, 0.0
      %v378 = vmax.f32 %v351, 0.0
      %v379 = vmax.f32 %v352, 0.0
      %v380 = vmax.f32 %v353, 0.0
      %v381 = vmax.f32 %v354, 0.0
      %v382 = vmax.f32 %v355, 0.0
      %v383 = vlaneseq
      %v384 = vshrl.u32 %v383, 7
      %v385 = vadd.s32 %v384, 16
      %v386 = vadd.s32 %v384, 24
      %v387 = vadd.s32 %v384, 32
      %v388 = vadd.s32 %v384, 40
      %v389 = vadd.s32 %v384, 48
      %v390 = vadd.s32 %v384, 56
      %v391 = vadd.s32 %v384, 64
      %v392 = vadd.s32 %v384, 72
      %v393 = vadd.s32 %v384, 80
      %v394 = vadd.s32 %v384, 88
      %v395 = vadd.s32 %v384, 96
      %v396 = vadd.s32 %v384, 104
      %v397 = vadd.s32 %v384, 112
      %v398 = vadd.s32 %v384, 120
      %v399 = vadd.s32 %v384, 128
      %v400 = vadd.s32 %v384, 136
      %v401 = vadd.s32 %v384, 144
      %v402 = vadd.s32 %v384, 152
      %v403 = vadd.s32 %v384, 160
      %v404 = vadd.s32 %v384, 168
      %v405 = vadd.s32 %v384, 176
      %v406 = vadd.s32 %v384, 184
      %v407 = vadd.s32 %v384, 192
      %v408 = vadd.s32 %v384, 200
      %v409 = vadd.s32 %v384, 208
      %v410 = vadd.s32 %v384, 216
      %v411 = vadd.s32 %v384, 224
      %s412 = ssub.s32 %s229, 36
      %v413 = vstv %s412
      %v414 = vadd.s32 %v385, %v413
      %v415 = vadd.s32 %v386, %v413
      %v416 = vadd.s32 %v387, %v413
      %v417 = vadd.s32 %v388, %v413
      %v418 = vadd.s32 %v389, %v413
      %v419 = vadd.s32 %v390, %v413
      %v420 = vadd.s32 %v391, %v413
      %v421 = vadd.s32 %v392, %v413
      %v422 = vadd.s32 %v393, %v413
      %v423 = vadd.s32 %v394, %v413
      %v424 = vadd.s32 %v395, %v413
      %v425 = vadd.s32 %v396, %v413
      %v426 = vadd.s32 %v397, %v413
      %v427 = vadd.s32 %v398, %v413
      %v428 = vadd.s32 %v399, %v413
      %v429 = vadd.s32 %v400, %v413
      %v430 = vadd.s32 %v401, %v413
      %v431 = vadd.s32 %v402, %v413
      %v432 = vadd.s32 %v403, %v413
      %v433 = vadd.s32 %v404, %v413
      %v434 = vadd.s32 %v405, %v413
      %v435 = vadd.s32 %v406, %v413
      %v436 = vadd.s32 %v407, %v413
      %v437 = vadd.s32 %v408, %v413
      %v438 = vadd.s32 %v409, %v413
      %v439 = vadd.s32 %v410, %v413
      %v440 = vadd.s32 %v411, %v413
      %vm441 = vcmp.ge.s32.totalorder %v414, 18
      %vm442 = vcmp.ge.s32.totalorder %v415, 18
      %vm443 = vcmp.ge.s32.totalorder %v416, 18
      %vm444 = vcmp.ge.s32.totalorder %v417, 18
      %vm445 = vcmp.ge.s32.totalorder %v418, 18
      %vm446 = vcmp.ge.s32.totalorder %v419, 18
      %vm447 = vcmp.ge.s32.totalorder %v420, 18
      %vm448 = vcmp.ge.s32.totalorder %v421, 18
      %vm449 = vcmp.ge.s32.totalorder %v422, 18
      %vm450 = vcmp.ge.s32.totalorder %v423, 18
      %vm451 = vcmp.ge.s32.totalorder %v424, 18
      %vm452 = vcmp.ge.s32.totalorder %v425, 18
      %vm453 = vcmp.ge.s32.totalorder %v426, 18
      %vm454 = vcmp.ge.s32.totalorder %v427, 18
      %vm455 = vcmp.ge.s32.totalorder %v428, 18
      %vm456 = vcmp.ge.s32.totalorder %v429, 18
      %vm457 = vcmp.ge.s32.totalorder %v430, 18
      %vm458 = vcmp.ge.s32.totalorder %v431, 18
      %vm459 = vcmp.ge.s32.totalorder %v432, 18
      %vm460 = vcmp.ge.s32.totalorder %v433, 18
      %vm461 = vcmp.ge.s32.totalorder %v434, 18
      %vm462 = vcmp.ge.s32.totalorder %v435, 18
      %vm463 = vcmp.ge.s32.totalorder %v436, 18
      %vm464 = vcmp.ge.s32.totalorder %v437, 18
      %vm465 = vcmp.ge.s32.totalorder %v438, 18
      %vm466 = vcmp.ge.s32.totalorder %v439, 18
      %vm467 = vcmp.ge.s32.totalorder %v440, 18
      %vm468 = vcmp.lt.s32.totalorder %v414, 306
      %vm469 = vcmp.lt.s32.totalorder %v415, 306
      %vm470 = vcmp.lt.s32.totalorder %v416, 306
      %vm471 = vcmp.lt.s32.totalorder %v417, 306
      %vm472 = vcmp.lt.s32.totalorder %v418, 306
      %vm473 = vcmp.lt.s32.totalorder %v419, 306
      %vm474 = vcmp.lt.s32.totalorder %v420, 306
      %vm475 = vcmp.lt.s32.totalorder %v421, 306
      %vm476 = vcmp.lt.s32.totalorder %v422, 306
      %vm477 = vcmp.lt.s32.totalorder %v423, 306
      %vm478 = vcmp.lt.s32.totalorder %v424, 306
      %vm479 = vcmp.lt.s32.totalorder %v425, 306
      %vm480 = vcmp.lt.s32.totalorder %v426, 306
      %vm481 = vcmp.lt.s32.totalorder %v427, 306
      %vm482 = vcmp.lt.s32.totalorder %v428, 306
      %vm483 = vcmp.lt.s32.totalorder %v429, 306
      %vm484 = vcmp.lt.s32.totalorder %v430, 306
      %vm485 = vcmp.lt.s32.totalorder %v431, 306
      %vm486 = vcmp.lt.s32.totalorder %v432, 306
      %vm487 = vcmp.lt.s32.totalorder %v433, 306
      %vm488 = vcmp.lt.s32.totalorder %v434, 306
      %vm489 = vcmp.lt.s32.totalorder %v435, 306
      %vm490 = vcmp.lt.s32.totalorder %v436, 306
      %vm491 = vcmp.lt.s32.totalorder %v437, 306
      %vm492 = vcmp.lt.s32.totalorder %v438, 306
      %vm493 = vcmp.lt.s32.totalorder %v439, 306
      %vm494 = vcmp.lt.s32.totalorder %v440, 306
      %vm495 = vmand %vm441, %vm468
      %vm496 = vmand %vm442, %vm469
      %vm497 = vmand %vm443, %vm470
      %vm498 = vmand %vm444, %vm471
      %vm499 = vmand %vm445, %vm472
      %vm500 = vmand %vm446, %vm473
      %vm501 = vmand %vm447, %vm474
      %vm502 = vmand %vm448, %vm475
      %vm503 = vmand %vm449, %vm476
      %vm504 = vmand %vm450, %vm477
      %vm505 = vmand %vm451, %vm478
      %vm506 = vmand %vm452, %vm479
      %vm507 = vmand %vm453, %vm480
      %vm508 = vmand %vm454, %vm481
      %vm509 = vmand %vm455, %vm482
      %vm510 = vmand %vm456, %vm483
      %vm511 = vmand %vm457, %vm484
      %vm512 = vmand %vm458, %vm485
      %vm513 = vmand %vm459, %vm486
      %vm514 = vmand %vm460, %vm487
      %vm515 = vmand %vm461, %vm488
      %vm516 = vmand %vm462, %vm489
      %vm517 = vmand %vm463, %vm490
      %vm518 = vmand %vm464, %vm491
      %vm519 = vmand %vm465, %vm492
      %vm520 = vmand %vm466, %vm493
      %vm521 = vmand %vm467, %vm494
      %s522 = sld [smem:[#allocation3 + %s27]]
      %v523 = vstv %s522
      %v524 = vadd.s32 %v385, %v523
      %v525 = vadd.s32 %v386, %v523
      %v526 = vadd.s32 %v387, %v523
      %v527 = vadd.s32 %v388, %v523
      %v528 = vadd.s32 %v389, %v523
      %v529 = vadd.s32 %v390, %v523
      %v530 = vadd.s32 %v391, %v523
      %v531 = vadd.s32 %v392, %v523
      %v532 = vadd.s32 %v393, %v523
      %v533 = vadd.s32 %v394, %v523
      %v534 = vadd.s32 %v395, %v523
      %v535 = vadd.s32 %v396, %v523
      %v536 = vadd.s32 %v397, %v523
      %v537 = vadd.s32 %v398, %v523
      %v538 = vadd.s32 %v399, %v523
      %v539 = vadd.s32 %v400, %v523
      %v540 = vadd.s32 %v401, %v523
      %v541 = vadd.s32 %v402, %v523
      %v542 = vadd.s32 %v403, %v523
      %v543 = vadd.s32 %v404, %v523
      %v544 = vadd.s32 %v405, %v523
      %v545 = vadd.s32 %v406, %v523
      %v546 = vadd.s32 %v407, %v523
      %v547 = vadd.s32 %v408, %v523
      %v548 = vadd.s32 %v409, %v523
      %v549 = vadd.s32 %v410, %v523
      %v550 = vadd.s32 %v411, %v523
      %vm551 = vcmp.ge.s32.totalorder %v524, 18
      %vm552 = vcmp.ge.s32.totalorder %v525, 18
      %vm553 = vcmp.ge.s32.totalorder %v526, 18
      %vm554 = vcmp.ge.s32.totalorder %v527, 18
      %vm555 = vcmp.ge.s32.totalorder %v528, 18
      %vm556 = vcmp.ge.s32.totalorder %v529, 18
      %vm557 = vcmp.ge.s32.totalorder %v530, 18
      %vm558 = vcmp.ge.s32.totalorder %v531, 18
      %vm559 = vcmp.ge.s32.totalorder %v532, 18
      %vm560 = vcmp.ge.s32.totalorder %v533, 18
      %vm561 = vcmp.ge.s32.totalorder %v534, 18
      %vm562 = vcmp.ge.s32.totalorder %v535, 18
      %vm563 = vcmp.ge.s32.totalorder %v536, 18
      %vm564 = vcmp.ge.s32.totalorder %v537, 18
      %vm565 = vcmp.ge.s32.totalorder %v538, 18
      %vm566 = vcmp.ge.s32.totalorder %v539, 18
      %vm567 = vcmp.ge.s32.totalorder %v540, 18
      %vm568 = vcmp.ge.s32.totalorder %v541, 18
      %vm569 = vcmp.ge.s32.totalorder %v542, 18
      %vm570 = vcmp.ge.s32.totalorder %v543, 18
      %vm571 = vcmp.ge.s32.totalorder %v544, 18
      %vm572 = vcmp.ge.s32.totalorder %v545, 18
      %vm573 = vcmp.ge.s32.totalorder %v546, 18
      %vm574 = vcmp.ge.s32.totalorder %v547, 18
      %vm575 = vcmp.ge.s32.totalorder %v548, 18
      %vm576 = vcmp.ge.s32.totalorder %v549, 18
      %vm577 = vcmp.ge.s32.totalorder %v550, 18
      %v578 = vsel %vm551, 1, 0
      %v579 = vsel %vm552, 1, 0
      %v580 = vsel %vm553, 1, 0
      %v581 = vsel %vm554, 1, 0
      %v582 = vsel %vm555, 1, 0
      %v583 = vsel %vm556, 1, 0
      %v584 = vsel %vm557, 1, 0
      %v585 = vsel %vm558, 1, 0
      %v586 = vsel %vm559, 1, 0
      %v587 = vsel %vm560, 1, 0
      %v588 = vsel %vm561, 1, 0
      %v589 = vsel %vm562, 1, 0
      %v590 = vsel %vm563, 1, 0
      %v591 = vsel %vm564, 1, 0
      %v592 = vsel %vm565, 1, 0
      %v593 = vsel %vm566, 1, 0
      %v594 = vsel %vm567, 1, 0
      %v595 = vsel %vm568, 1, 0
      %v596 = vsel %vm569, 1, 0
      %v597 = vsel %vm570, 1, 0
      %v598 = vsel %vm571, 1, 0
      %v599 = vsel %vm572, 1, 0
      %v600 = vsel %vm573, 1, 0
      %v601 = vsel %vm574, 1, 0
      %v602 = vsel %vm575, 1, 0
      %v603 = vsel %vm576, 1, 0
      %v604 = vsel %vm577, 1, 0
      %vm605 = vcmp.ge.s32.totalorder %v524, 36
      %vm606 = vcmp.ge.s32.totalorder %v525, 36
      %vm607 = vcmp.ge.s32.totalorder %v526, 36
      %vm608 = vcmp.ge.s32.totalorder %v527, 36
      %vm609 = vcmp.ge.s32.totalorder %v528, 36
      %vm610 = vcmp.ge.s32.totalorder %v529, 36
      %vm611 = vcmp.ge.s32.totalorder %v530, 36
      %vm612 = vcmp.ge.s32.totalorder %v531, 36
      %vm613 = vcmp.ge.s32.totalorder %v532, 36
      %vm614 = vcmp.ge.s32.totalorder %v533, 36
      %vm615 = vcmp.ge.s32.totalorder %v534, 36
      %vm616 = vcmp.ge.s32.totalorder %v535, 36
      %vm617 = vcmp.ge.s32.totalorder %v536, 36
      %vm618 = vcmp.ge.s32.totalorder %v537, 36
      %vm619 = vcmp.ge.s32.totalorder %v538, 36
      %vm620 = vcmp.ge.s32.totalorder %v539, 36
      %vm621 = vcmp.ge.s32.totalorder %v540, 36
      %vm622 = vcmp.ge.s32.totalorder %v541, 36
      %vm623 = vcmp.ge.s32.totalorder %v542, 36
      %vm624 = vcmp.ge.s32.totalorder %v543, 36
      %vm625 = vcmp.ge.s32.totalorder %v544, 36
      %vm626 = vcmp.ge.s32.totalorder %v545, 36
      %vm627 = vcmp.ge.s32.totalorder %v546, 36
      %vm628 = vcmp.ge.s32.totalorder %v547, 36
      %vm629 = vcmp.ge.s32.totalorder %v548, 36
      %vm630 = vcmp.ge.s32.totalorder %v549, 36
      %vm631 = vcmp.ge.s32.totalorder %v550, 36
      %v632 = vsel %vm605, 1, 0
      %v633 = vsel %vm606, 1, 0
      %v634 = vsel %vm607, 1, 0
      %v635 = vsel %vm608, 1, 0
      %v636 = vsel %vm609, 1, 0
      %v637 = vsel %vm610, 1, 0
      %v638 = vsel %vm611, 1, 0
      %v639 = vsel %vm612, 1, 0
      %v640 = vsel %vm613, 1, 0
      %v641 = vsel %vm614, 1, 0
      %v642 = vsel %vm615, 1, 0
      %v643 = vsel %vm616, 1, 0
      %v644 = vsel %vm617, 1, 0
      %v645 = vsel %vm618, 1, 0
      %v646 = vsel %vm619, 1, 0
      %v647 = vsel %vm620, 1, 0
      %v648 = vsel %vm621, 1, 0
      %v649 = vsel %vm622, 1, 0
      %v650 = vsel %vm623, 1, 0
      %v651 = vsel %vm624, 1, 0
      %v652 = vsel %vm625, 1, 0
      %v653 = vsel %vm626, 1, 0
      %v654 = vsel %vm627, 1, 0
      %v655 = vsel %vm628, 1, 0
      %v656 = vsel %vm629, 1, 0
      %v657 = vsel %vm630, 1, 0
      %v658 = vsel %vm631, 1, 0
      %v659 = vadd.s32 %v578, %v632
      %v660 = vadd.s32 %v579, %v633
      %v661 = vadd.s32 %v580, %v634
      %v662 = vadd.s32 %v581, %v635
      %v663 = vadd.s32 %v582, %v636
      %v664 = vadd.s32 %v583, %v637
      %v665 = vadd.s32 %v584, %v638
      %v666 = vadd.s32 %v585, %v639
      %v667 = vadd.s32 %v586, %v640
      %v668 = vadd.s32 %v587, %v641
      %v669 = vadd.s32 %v588, %v642
      %v670 = vadd.s32 %v589, %v643
      %v671 = vadd.s32 %v590, %v644
      %v672 = vadd.s32 %v591, %v645
      %v673 = vadd.s32 %v592, %v646
      %v674 = vadd.s32 %v593, %v647
      %v675 = vadd.s32 %v594, %v648
      %v676 = vadd.s32 %v595, %v649
      %v677 = vadd.s32 %v596, %v650
      %v678 = vadd.s32 %v597, %v651
      %v679 = vadd.s32 %v598, %v652
      %v680 = vadd.s32 %v599, %v653
      %v681 = vadd.s32 %v600, %v654
      %v682 = vadd.s32 %v601, %v655
      %v683 = vadd.s32 %v602, %v656
      %v684 = vadd.s32 %v603, %v657
      %v685 = vadd.s32 %v604, %v658
      %vm686 = vcmp.ge.s32.totalorder %v524, 54
      %vm687 = vcmp.ge.s32.totalorder %v525, 54
      %vm688 = vcmp.ge.s32.totalorder %v526, 54
      %vm689 = vcmp.ge.s32.totalorder %v527, 54
      %vm690 = vcmp.ge.s32.totalorder %v528, 54
      %vm691 = vcmp.ge.s32.totalorder %v529, 54
      %vm692 = vcmp.ge.s32.totalorder %v530, 54
      %vm693 = vcmp.ge.s32.totalorder %v531, 54
      %vm694 = vcmp.ge.s32.totalorder %v532, 54
      %vm695 = vcmp.ge.s32.totalorder %v533, 54
      %vm696 = vcmp.ge.s32.totalorder %v534, 54
      %vm697 = vcmp.ge.s32.totalorder %v535, 54
      %vm698 = vcmp.ge.s32.totalorder %v536, 54
      %vm699 = vcmp.ge.s32.totalorder %v537, 54
      %vm700 = vcmp.ge.s32.totalorder %v538, 54
      %vm701 = vcmp.ge.s32.totalorder %v539, 54
      %vm702 = vcmp.ge.s32.totalorder %v540, 54
      %vm703 = vcmp.ge.s32.totalorder %v541, 54
      %vm704 = vcmp.ge.s32.totalorder %v542, 54
      %vm705 = vcmp.ge.s32.totalorder %v543, 54
      %vm706 = vcmp.ge.s32.totalorder %v544, 54
      %vm707 = vcmp.ge.s32.totalorder %v545, 54
      %vm708 = vcmp.ge.s32.totalorder %v546, 54
      %vm709 = vcmp.ge.s32.totalorder %v547, 54
      %vm710 = vcmp.ge.s32.totalorder %v548, 54
      %vm711 = vcmp.ge.s32.totalorder %v549, 54
      %vm712 = vcmp.ge.s32.totalorder %v550, 54
      %v713 = vsel %vm686, 1, 0
      %v714 = vsel %vm687, 1, 0
      %v715 = vsel %vm688, 1, 0
      %v716 = vsel %vm689, 1, 0
      %v717 = vsel %vm690, 1, 0
      %v718 = vsel %vm691, 1, 0
      %v719 = vsel %vm692, 1, 0
      %v720 = vsel %vm693, 1, 0
      %v721 = vsel %vm694, 1, 0
      %v722 = vsel %vm695, 1, 0
      %v723 = vsel %vm696, 1, 0
      %v724 = vsel %vm697, 1, 0
      %v725 = vsel %vm698, 1, 0
      %v726 = vsel %vm699, 1, 0
      %v727 = vsel %vm700, 1, 0
      %v728 = vsel %vm701, 1, 0
      %v729 = vsel %vm702, 1, 0
      %v730 = vsel %vm703, 1, 0
      %v731 = vsel %vm704, 1, 0
      %v732 = vsel %vm705, 1, 0
      %v733 = vsel %vm706, 1, 0
      %v734 = vsel %vm707, 1, 0
      %v735 = vsel %vm708, 1, 0
      %v736 = vsel %vm709, 1, 0
      %v737 = vsel %vm710, 1, 0
      %v738 = vsel %vm711, 1, 0
      %v739 = vsel %vm712, 1, 0
      %v740 = vadd.s32 %v659, %v713
      %v741 = vadd.s32 %v660, %v714
      %v742 = vadd.s32 %v661, %v715
      %v743 = vadd.s32 %v662, %v716
      %v744 = vadd.s32 %v663, %v717
      %v745 = vadd.s32 %v664, %v718
      %v746 = vadd.s32 %v665, %v719
      %v747 = vadd.s32 %v666, %v720
      %v748 = vadd.s32 %v667, %v721
      %v749 = vadd.s32 %v668, %v722
      %v750 = vadd.s32 %v669, %v723
      %v751 = vadd.s32 %v670, %v724
      %v752 = vadd.s32 %v671, %v725
      %v753 = vadd.s32 %v672, %v726
      %v754 = vadd.s32 %v673, %v727
      %v755 = vadd.s32 %v674, %v728
      %v756 = vadd.s32 %v675, %v729
      %v757 = vadd.s32 %v676, %v730
      %v758 = vadd.s32 %v677, %v731
      %v759 = vadd.s32 %v678, %v732
      %v760 = vadd.s32 %v679, %v733
      %v761 = vadd.s32 %v680, %v734
      %v762 = vadd.s32 %v681, %v735
      %v763 = vadd.s32 %v682, %v736
      %v764 = vadd.s32 %v683, %v737
      %v765 = vadd.s32 %v684, %v738
      %v766 = vadd.s32 %v685, %v739
      %vm767 = vcmp.ge.s32.totalorder %v524, 72
      %vm768 = vcmp.ge.s32.totalorder %v525, 72
      %vm769 = vcmp.ge.s32.totalorder %v526, 72
      %vm770 = vcmp.ge.s32.totalorder %v527, 72
      %vm771 = vcmp.ge.s32.totalorder %v528, 72
      %vm772 = vcmp.ge.s32.totalorder %v529, 72
      %vm773 = vcmp.ge.s32.totalorder %v530, 72
      %vm774 = vcmp.ge.s32.totalorder %v531, 72
      %vm775 = vcmp.ge.s32.totalorder %v532, 72
      %vm776 = vcmp.ge.s32.totalorder %v533, 72
      %vm777 = vcmp.ge.s32.totalorder %v534, 72
      %vm778 = vcmp.ge.s32.totalorder %v535, 72
      %vm779 = vcmp.ge.s32.totalorder %v536, 72
      %vm780 = vcmp.ge.s32.totalorder %v537, 72
      %vm781 = vcmp.ge.s32.totalorder %v538, 72
      %vm782 = vcmp.ge.s32.totalorder %v539, 72
      %vm783 = vcmp.ge.s32.totalorder %v540, 72
      %vm784 = vcmp.ge.s32.totalorder %v541, 72
      %vm785 = vcmp.ge.s32.totalorder %v542, 72
      %vm786 = vcmp.ge.s32.totalorder %v543, 72
      %vm787 = vcmp.ge.s32.totalorder %v544, 72
      %vm788 = vcmp.ge.s32.totalorder %v545, 72
      %vm789 = vcmp.ge.s32.totalorder %v546, 72
      %vm790 = vcmp.ge.s32.totalorder %v547, 72
      %vm791 = vcmp.ge.s32.totalorder %v548, 72
      %vm792 = vcmp.ge.s32.totalorder %v549, 72
      %vm793 = vcmp.ge.s32.totalorder %v550, 72
      %v794 = vsel %vm767, 1, 0
      %v795 = vsel %vm768, 1, 0
      %v796 = vsel %vm769, 1, 0
      %v797 = vsel %vm770, 1, 0
      %v798 = vsel %vm771, 1, 0
      %v799 = vsel %vm772, 1, 0
      %v800 = vsel %vm773, 1, 0
      %v801 = vsel %vm774, 1, 0
      %v802 = vsel %vm775, 1, 0
      %v803 = vsel %vm776, 1, 0
      %v804 = vsel %vm777, 1, 0
      %v805 = vsel %vm778, 1, 0
      %v806 = vsel %vm779, 1, 0
      %v807 = vsel %vm780, 1, 0
      %v808 = vsel %vm781, 1, 0
      %v809 = vsel %vm782, 1, 0
      %v810 = vsel %vm783, 1, 0
      %v811 = vsel %vm784, 1, 0
      %v812 = vsel %vm785, 1, 0
      %v813 = vsel %vm786, 1, 0
      %v814 = vsel %vm787, 1, 0
      %v815 = vsel %vm788, 1, 0
      %v816 = vsel %vm789, 1, 0
      %v817 = vsel %vm790, 1, 0
      %v818 = vsel %vm791, 1, 0
      %v819 = vsel %vm792, 1, 0
      %v820 = vsel %vm793, 1, 0
      %v821 = vadd.s32 %v740, %v794
      %v822 = vadd.s32 %v741, %v795
      %v823 = vadd.s32 %v742, %v796
      %v824 = vadd.s32 %v743, %v797
      %v825 = vadd.s32 %v744, %v798
      %v826 = vadd.s32 %v745, %v799
      %v827 = vadd.s32 %v746, %v800
      %v828 = vadd.s32 %v747, %v801
      %v829 = vadd.s32 %v748, %v802
      %v830 = vadd.s32 %v749, %v803
      %v831 = vadd.s32 %v750, %v804
      %v832 = vadd.s32 %v751, %v805
      %v833 = vadd.s32 %v752, %v806
      %v834 = vadd.s32 %v753, %v807
      %v835 = vadd.s32 %v754, %v808
      %v836 = vadd.s32 %v755, %v809
      %v837 = vadd.s32 %v756, %v810
      %v838 = vadd.s32 %v757, %v811
      %v839 = vadd.s32 %v758, %v812
      %v840 = vadd.s32 %v759, %v813
      %v841 = vadd.s32 %v760, %v814
      %v842 = vadd.s32 %v761, %v815
      %v843 = vadd.s32 %v762, %v816
      %v844 = vadd.s32 %v763, %v817
      %v845 = vadd.s32 %v764, %v818
      %v846 = vadd.s32 %v765, %v819
      %v847 = vadd.s32 %v766, %v820
      %vm848 = vcmp.ge.s32.totalorder %v524, 90
      %vm849 = vcmp.ge.s32.totalorder %v525, 90
      %vm850 = vcmp.ge.s32.totalorder %v526, 90
      %vm851 = vcmp.ge.s32.totalorder %v527, 90
      %vm852 = vcmp.ge.s32.totalorder %v528, 90
      %vm853 = vcmp.ge.s32.totalorder %v529, 90
      %vm854 = vcmp.ge.s32.totalorder %v530, 90
      %vm855 = vcmp.ge.s32.totalorder %v531, 90
      %vm856 = vcmp.ge.s32.totalorder %v532, 90
      %vm857 = vcmp.ge.s32.totalorder %v533, 90
      %vm858 = vcmp.ge.s32.totalorder %v534, 90
      %vm859 = vcmp.ge.s32.totalorder %v535, 90
      %vm860 = vcmp.ge.s32.totalorder %v536, 90
      %vm861 = vcmp.ge.s32.totalorder %v537, 90
      %vm862 = vcmp.ge.s32.totalorder %v538, 90
      %vm863 = vcmp.ge.s32.totalorder %v539, 90
      %vm864 = vcmp.ge.s32.totalorder %v540, 90
      %vm865 = vcmp.ge.s32.totalorder %v541, 90
      %vm866 = vcmp.ge.s32.totalorder %v542, 90
      %vm867 = vcmp.ge.s32.totalorder %v543, 90
      %vm868 = vcmp.ge.s32.totalorder %v544, 90
      %vm869 = vcmp.ge.s32.totalorder %v545, 90
      %vm870 = vcmp.ge.s32.totalorder %v546, 90
      %vm871 = vcmp.ge.s32.totalorder %v547, 90
      %vm872 = vcmp.ge.s32.totalorder %v548, 90
      %vm873 = vcmp.ge.s32.totalorder %v549, 90
      %vm874 = vcmp.ge.s32.totalorder %v550, 90
      %v875 = vsel %vm848, 1, 0
      %v876 = vsel %vm849, 1, 0
      %v877 = vsel %vm850, 1, 0
      %v878 = vsel %vm851, 1, 0
      %v879 = vsel %vm852, 1, 0
      %v880 = vsel %vm853, 1, 0
      %v881 = vsel %vm854, 1, 0
      %v882 = vsel %vm855, 1, 0
      %v883 = vsel %vm856, 1, 0
      %v884 = vsel %vm857, 1, 0
      %v885 = vsel %vm858, 1, 0
      %v886 = vsel %vm859, 1, 0
      %v887 = vsel %vm860, 1, 0
      %v888 = vsel %vm861, 1, 0
      %v889 = vsel %vm862, 1, 0
      %v890 = vsel %vm863, 1, 0
      %v891 = vsel %vm864, 1, 0
      %v892 = vsel %vm865, 1, 0
      %v893 = vsel %vm866, 1, 0
      %v894 = vsel %vm867, 1, 0
      %v895 = vsel %vm868, 1, 0
      %v896 = vsel %vm869, 1, 0
      %v897 = vsel %vm870, 1, 0
      %v898 = vsel %vm871, 1, 0
      %v899 = vsel %vm872, 1, 0
      %v900 = vsel %vm873, 1, 0
      %v901 = vsel %vm874, 1, 0
      %v902 = vadd.s32 %v821, %v875
      %v903 = vadd.s32 %v822, %v876
      %v904 = vadd.s32 %v823, %v877
      %v905 = vadd.s32 %v824, %v878
      %v906 = vadd.s32 %v825, %v879
      %v907 = vadd.s32 %v826, %v880
      %v908 = vadd.s32 %v827, %v881
      %v909 = vadd.s32 %v828, %v882
      %v910 = vadd.s32 %v829, %v883
      %v911 = vadd.s32 %v830, %v884
      %v912 = vadd.s32 %v831, %v885
      %v913 = vadd.s32 %v832, %v886
      %v914 = vadd.s32 %v833, %v887
      %v915 = vadd.s32 %v834, %v888
      %v916 = vadd.s32 %v835, %v889
      %v917 = vadd.s32 %v836, %v890
      %v918 = vadd.s32 %v837, %v891
      %v919 = vadd.s32 %v838, %v892
      %v920 = vadd.s32 %v839, %v893
      %v921 = vadd.s32 %v840, %v894
      %v922 = vadd.s32 %v841, %v895
      %v923 = vadd.s32 %v842, %v896
      %v924 = vadd.s32 %v843, %v897
      %v925 = vadd.s32 %v844, %v898
      %v926 = vadd.s32 %v845, %v899
      %v927 = vadd.s32 %v846, %v900
      %v928 = vadd.s32 %v847, %v901
      %vm929 = vcmp.ge.s32.totalorder %v524, 108
      %vm930 = vcmp.ge.s32.totalorder %v525, 108
      %vm931 = vcmp.ge.s32.totalorder %v526, 108
      %vm932 = vcmp.ge.s32.totalorder %v527, 108
      %vm933 = vcmp.ge.s32.totalorder %v528, 108
      %vm934 = vcmp.ge.s32.totalorder %v529, 108
      %vm935 = vcmp.ge.s32.totalorder %v530, 108
      %vm936 = vcmp.ge.s32.totalorder %v531, 108
      %vm937 = vcmp.ge.s32.totalorder %v532, 108
      %vm938 = vcmp.ge.s32.totalorder %v533, 108
      %vm939 = vcmp.ge.s32.totalorder %v534, 108
      %vm940 = vcmp.ge.s32.totalorder %v535, 108
      %vm941 = vcmp.ge.s32.totalorder %v536, 108
      %vm942 = vcmp.ge.s32.totalorder %v537, 108
      %vm943 = vcmp.ge.s32.totalorder %v538, 108
      %vm944 = vcmp.ge.s32.totalorder %v539, 108
      %vm945 = vcmp.ge.s32.totalorder %v540, 108
      %vm946 = vcmp.ge.s32.totalorder %v541, 108
      %vm947 = vcmp.ge.s32.totalorder %v542, 108
      %vm948 = vcmp.ge.s32.totalorder %v543, 108
      %vm949 = vcmp.ge.s32.totalorder %v544, 108
      %vm950 = vcmp.ge.s32.totalorder %v545, 108
      %vm951 = vcmp.ge.s32.totalorder %v546, 108
      %vm952 = vcmp.ge.s32.totalorder %v547, 108
      %vm953 = vcmp.ge.s32.totalorder %v548, 108
      %vm954 = vcmp.ge.s32.totalorder %v549, 108
      %vm955 = vcmp.ge.s32.totalorder %v550, 108
      %v956 = vsel %vm929, 1, 0
      %v957 = vsel %vm930, 1, 0
      %v958 = vsel %vm931, 1, 0
      %v959 = vsel %vm932, 1, 0
      %v960 = vsel %vm933, 1, 0
      %v961 = vsel %vm934, 1, 0
      %v962 = vsel %vm935, 1, 0
      %v963 = vsel %vm936, 1, 0
      %v964 = vsel %vm937, 1, 0
      %v965 = vsel %vm938, 1, 0
      %v966 = vsel %vm939, 1, 0
      %v967 = vsel %vm940, 1, 0
      %v968 = vsel %vm941, 1, 0
      %v969 = vsel %vm942, 1, 0
      %v970 = vsel %vm943, 1, 0
      %v971 = vsel %vm944, 1, 0
      %v972 = vsel %vm945, 1, 0
      %v973 = vsel %vm946, 1, 0
      %v974 = vsel %vm947, 1, 0
      %v975 = vsel %vm948, 1, 0
      %v976 = vsel %vm949, 1, 0
      %v977 = vsel %vm950, 1, 0
      %v978 = vsel %vm951, 1, 0
      %v979 = vsel %vm952, 1, 0
      %v980 = vsel %vm953, 1, 0
      %v981 = vsel %vm954, 1, 0
      %v982 = vsel %vm955, 1, 0
      %v983 = vadd.s32 %v902, %v956
      %v984 = vadd.s32 %v903, %v957
      %v985 = vadd.s32 %v904, %v958
      %v986 = vadd.s32 %v905, %v959
      %v987 = vadd.s32 %v906, %v960
      %v988 = vadd.s32 %v907, %v961
      %v989 = vadd.s32 %v908, %v962
      %v990 = vadd.s32 %v909, %v963
      %v991 = vadd.s32 %v910, %v964
      %v992 = vadd.s32 %v911, %v965
      %v993 = vadd.s32 %v912, %v966
      %v994 = vadd.s32 %v913, %v967
      %v995 = vadd.s32 %v914, %v968
      %v996 = vadd.s32 %v915, %v969
      %v997 = vadd.s32 %v916, %v970
      %v998 = vadd.s32 %v917, %v971
      %v999 = vadd.s32 %v918, %v972
      %v1000 = vadd.s32 %v919, %v973
      %v1001 = vadd.s32 %v920, %v974
      %v1002 = vadd.s32 %v921, %v975
      %v1003 = vadd.s32 %v922, %v976
      %v1004 = vadd.s32 %v923, %v977
      %v1005 = vadd.s32 %v924, %v978
      %v1006 = vadd.s32 %v925, %v979
      %v1007 = vadd.s32 %v926, %v980
      %v1008 = vadd.s32 %v927, %v981
      %v1009 = vadd.s32 %v928, %v982
      %vm1010 = vcmp.ge.s32.totalorder %v524, 126
      %vm1011 = vcmp.ge.s32.totalorder %v525, 126
      %vm1012 = vcmp.ge.s32.totalorder %v526, 126
      %vm1013 = vcmp.ge.s32.totalorder %v527, 126
      %vm1014 = vcmp.ge.s32.totalorder %v528, 126
      %vm1015 = vcmp.ge.s32.totalorder %v529, 126
      %vm1016 = vcmp.ge.s32.totalorder %v530, 126
      %vm1017 = vcmp.ge.s32.totalorder %v531, 126
      %vm1018 = vcmp.ge.s32.totalorder %v532, 126
      %vm1019 = vcmp.ge.s32.totalorder %v533, 126
      %vm1020 = vcmp.ge.s32.totalorder %v534, 126
      %vm1021 = vcmp.ge.s32.totalorder %v535, 126
      %vm1022 = vcmp.ge.s32.totalorder %v536, 126
      %vm1023 = vcmp.ge.s32.totalorder %v537, 126
      %vm1024 = vcmp.ge.s32.totalorder %v538, 126
      %vm1025 = vcmp.ge.s32.totalorder %v539, 126
      %vm1026 = vcmp.ge.s32.totalorder %v540, 126
      %vm1027 = vcmp.ge.s32.totalorder %v541, 126
      %vm1028 = vcmp.ge.s32.totalorder %v542, 126
      %vm1029 = vcmp.ge.s32.totalorder %v543, 126
      %vm1030 = vcmp.ge.s32.totalorder %v544, 126
      %vm1031 = vcmp.ge.s32.totalorder %v545, 126
      %vm1032 = vcmp.ge.s32.totalorder %v546, 126
      %vm1033 = vcmp.ge.s32.totalorder %v547, 126
      %vm1034 = vcmp.ge.s32.totalorder %v548, 126
      %vm1035 = vcmp.ge.s32.totalorder %v549, 126
      %vm1036 = vcmp.ge.s32.totalorder %v550, 126
      %v1037 = vsel %vm1010, 1, 0
      %v1038 = vsel %vm1011, 1, 0
      %v1039 = vsel %vm1012, 1, 0
      %v1040 = vsel %vm1013, 1, 0
      %v1041 = vsel %vm1014, 1, 0
      %v1042 = vsel %vm1015, 1, 0
      %v1043 = vsel %vm1016, 1, 0
      %v1044 = vsel %vm1017, 1, 0
      %v1045 = vsel %vm1018, 1, 0
      %v1046 = vsel %vm1019, 1, 0
      %v1047 = vsel %vm1020, 1, 0
      %v1048 = vsel %vm1021, 1, 0
      %v1049 = vsel %vm1022, 1, 0
      %v1050 = vsel %vm1023, 1, 0
      %v1051 = vsel %vm1024, 1, 0
      %v1052 = vsel %vm1025, 1, 0
      %v1053 = vsel %vm1026, 1, 0
      %v1054 = vsel %vm1027, 1, 0
      %v1055 = vsel %vm1028, 1, 0
      %v1056 = vsel %vm1029, 1, 0
      %v1057 = vsel %vm1030, 1, 0
      %v1058 = vsel %vm1031, 1, 0
      %v1059 = vsel %vm1032, 1, 0
      %v1060 = vsel %vm1033, 1, 0
      %v1061 = vsel %vm1034, 1, 0
      %v1062 = vsel %vm1035, 1, 0
      %v1063 = vsel %vm1036, 1, 0
      %v1064 = vadd.s32 %v983, %v1037
      %v1065 = vadd.s32 %v984, %v1038
      %v1066 = vadd.s32 %v985, %v1039
      %v1067 = vadd.s32 %v986, %v1040
      %v1068 = vadd.s32 %v987, %v1041
      %v1069 = vadd.s32 %v988, %v1042
      %v1070 = vadd.s32 %v989, %v1043
      %v1071 = vadd.s32 %v990, %v1044
      %v1072 = vadd.s32 %v991, %v1045
      %v1073 = vadd.s32 %v992, %v1046
      %v1074 = vadd.s32 %v993, %v1047
      %v1075 = vadd.s32 %v994, %v1048
      %v1076 = vadd.s32 %v995, %v1049
      %v1077 = vadd.s32 %v996, %v1050
      %v1078 = vadd.s32 %v997, %v1051
      %v1079 = vadd.s32 %v998, %v1052
      %v1080 = vadd.s32 %v999, %v1053
      %v1081 = vadd.s32 %v1000, %v1054
      %v1082 = vadd.s32 %v1001, %v1055
      %v1083 = vadd.s32 %v1002, %v1056
      %v1084 = vadd.s32 %v1003, %v1057
      %v1085 = vadd.s32 %v1004, %v1058
      %v1086 = vadd.s32 %v1005, %v1059
      %v1087 = vadd.s32 %v1006, %v1060
      %v1088 = vadd.s32 %v1007, %v1061
      %v1089 = vadd.s32 %v1008, %v1062
      %v1090 = vadd.s32 %v1009, %v1063
      %vm1091 = vcmp.ge.s32.totalorder %v524, 144
      %vm1092 = vcmp.ge.s32.totalorder %v525, 144
      %vm1093 = vcmp.ge.s32.totalorder %v526, 144
      %vm1094 = vcmp.ge.s32.totalorder %v527, 144
      %vm1095 = vcmp.ge.s32.totalorder %v528, 144
      %vm1096 = vcmp.ge.s32.totalorder %v529, 144
      %vm1097 = vcmp.ge.s32.totalorder %v530, 144
      %vm1098 = vcmp.ge.s32.totalorder %v531, 144
      %vm1099 = vcmp.ge.s32.totalorder %v532, 144
      %vm1100 = vcmp.ge.s32.totalorder %v533, 144
      %vm1101 = vcmp.ge.s32.totalorder %v534, 144
      %vm1102 = vcmp.ge.s32.totalorder %v535, 144
      %vm1103 = vcmp.ge.s32.totalorder %v536, 144
      %vm1104 = vcmp.ge.s32.totalorder %v537, 144
      %vm1105 = vcmp.ge.s32.totalorder %v538, 144
      %vm1106 = vcmp.ge.s32.totalorder %v539, 144
      %vm1107 = vcmp.ge.s32.totalorder %v540, 144
      %vm1108 = vcmp.ge.s32.totalorder %v541, 144
      %vm1109 = vcmp.ge.s32.totalorder %v542, 144
      %vm1110 = vcmp.ge.s32.totalorder %v543, 144
      %vm1111 = vcmp.ge.s32.totalorder %v544, 144
      %vm1112 = vcmp.ge.s32.totalorder %v545, 144
      %vm1113 = vcmp.ge.s32.totalorder %v546, 144
      %vm1114 = vcmp.ge.s32.totalorder %v547, 144
      %vm1115 = vcmp.ge.s32.totalorder %v548, 144
      %vm1116 = vcmp.ge.s32.totalorder %v549, 144
      %vm1117 = vcmp.ge.s32.totalorder %v550, 144
      %v1118 = vsel %vm1091, 1, 0
      %v1119 = vsel %vm1092, 1, 0
      %v1120 = vsel %vm1093, 1, 0
      %v1121 = vsel %vm1094, 1, 0
      %v1122 = vsel %vm1095, 1, 0
      %v1123 = vsel %vm1096, 1, 0
      %v1124 = vsel %vm1097, 1, 0
      %v1125 = vsel %vm1098, 1, 0
      %v1126 = vsel %vm1099, 1, 0
      %v1127 = vsel %vm1100, 1, 0
      %v1128 = vsel %vm1101, 1, 0
      %v1129 = vsel %vm1102, 1, 0
      %v1130 = vsel %vm1103, 1, 0
      %v1131 = vsel %vm1104, 1, 0
      %v1132 = vsel %vm1105, 1, 0
      %v1133 = vsel %vm1106, 1, 0
      %v1134 = vsel %vm1107, 1, 0
      %v1135 = vsel %vm1108, 1, 0
      %v1136 = vsel %vm1109, 1, 0
      %v1137 = vsel %vm1110, 1, 0
      %v1138 = vsel %vm1111, 1, 0
      %v1139 = vsel %vm1112, 1, 0
      %v1140 = vsel %vm1113, 1, 0
      %v1141 = vsel %vm1114, 1, 0
      %v1142 = vsel %vm1115, 1, 0
      %v1143 = vsel %vm1116, 1, 0
      %v1144 = vsel %vm1117, 1, 0
      %v1145 = vadd.s32 %v1064, %v1118
      %v1146 = vadd.s32 %v1065, %v1119
      %v1147 = vadd.s32 %v1066, %v1120
      %v1148 = vadd.s32 %v1067, %v1121
      %v1149 = vadd.s32 %v1068, %v1122
      %v1150 = vadd.s32 %v1069, %v1123
      %v1151 = vadd.s32 %v1070, %v1124
      %v1152 = vadd.s32 %v1071, %v1125
      %v1153 = vadd.s32 %v1072, %v1126
      %v1154 = vadd.s32 %v1073, %v1127
      %v1155 = vadd.s32 %v1074, %v1128
      %v1156 = vadd.s32 %v1075, %v1129
      %v1157 = vadd.s32 %v1076, %v1130
      %v1158 = vadd.s32 %v1077, %v1131
      %v1159 = vadd.s32 %v1078, %v1132
      %v1160 = vadd.s32 %v1079, %v1133
      %v1161 = vadd.s32 %v1080, %v1134
      %v1162 = vadd.s32 %v1081, %v1135
      %v1163 = vadd.s32 %v1082, %v1136
      %v1164 = vadd.s32 %v1083, %v1137
      %v1165 = vadd.s32 %v1084, %v1138
      %v1166 = vadd.s32 %v1085, %v1139
      %v1167 = vadd.s32 %v1086, %v1140
      %v1168 = vadd.s32 %v1087, %v1141
      %v1169 = vadd.s32 %v1088, %v1142
      %v1170 = vadd.s32 %v1089, %v1143
      %v1171 = vadd.s32 %v1090, %v1144
      %vm1172 = vcmp.ge.s32.totalorder %v524, 162
      %vm1173 = vcmp.ge.s32.totalorder %v525, 162
      %vm1174 = vcmp.ge.s32.totalorder %v526, 162
      %vm1175 = vcmp.ge.s32.totalorder %v527, 162
      %vm1176 = vcmp.ge.s32.totalorder %v528, 162
      %vm1177 = vcmp.ge.s32.totalorder %v529, 162
      %vm1178 = vcmp.ge.s32.totalorder %v530, 162
      %vm1179 = vcmp.ge.s32.totalorder %v531, 162
      %vm1180 = vcmp.ge.s32.totalorder %v532, 162
      %vm1181 = vcmp.ge.s32.totalorder %v533, 162
      %vm1182 = vcmp.ge.s32.totalorder %v534, 162
      %vm1183 = vcmp.ge.s32.totalorder %v535, 162
      %vm1184 = vcmp.ge.s32.totalorder %v536, 162
      %vm1185 = vcmp.ge.s32.totalorder %v537, 162
      %vm1186 = vcmp.ge.s32.totalorder %v538, 162
      %vm1187 = vcmp.ge.s32.totalorder %v539, 162
      %vm1188 = vcmp.ge.s32.totalorder %v540, 162
      %vm1189 = vcmp.ge.s32.totalorder %v541, 162
      %vm1190 = vcmp.ge.s32.totalorder %v542, 162
      %vm1191 = vcmp.ge.s32.totalorder %v543, 162
      %vm1192 = vcmp.ge.s32.totalorder %v544, 162
      %vm1193 = vcmp.ge.s32.totalorder %v545, 162
      %vm1194 = vcmp.ge.s32.totalorder %v546, 162
      %vm1195 = vcmp.ge.s32.totalorder %v547, 162
      %vm1196 = vcmp.ge.s32.totalorder %v548, 162
      %vm1197 = vcmp.ge.s32.totalorder %v549, 162
      %vm1198 = vcmp.ge.s32.totalorder %v550, 162
      %v1199 = vsel %vm1172, 1, 0
      %v1200 = vsel %vm1173, 1, 0
      %v1201 = vsel %vm1174, 1, 0
      %v1202 = vsel %vm1175, 1, 0
      %v1203 = vsel %vm1176, 1, 0
      %v1204 = vsel %vm1177, 1, 0
      %v1205 = vsel %vm1178, 1, 0
      %v1206 = vsel %vm1179, 1, 0
      %v1207 = vsel %vm1180, 1, 0
      %v1208 = vsel %vm1181, 1, 0
      %v1209 = vsel %vm1182, 1, 0
      %v1210 = vsel %vm1183, 1, 0
      %v1211 = vsel %vm1184, 1, 0
      %v1212 = vsel %vm1185, 1, 0
      %v1213 = vsel %vm1186, 1, 0
      %v1214 = vsel %vm1187, 1, 0
      %v1215 = vsel %vm1188, 1, 0
      %v1216 = vsel %vm1189, 1, 0
      %v1217 = vsel %vm1190, 1, 0
      %v1218 = vsel %vm1191, 1, 0
      %v1219 = vsel %vm1192, 1, 0
      %v1220 = vsel %vm1193, 1, 0
      %v1221 = vsel %vm1194, 1, 0
      %v1222 = vsel %vm1195, 1, 0
      %v1223 = vsel %vm1196, 1, 0
      %v1224 = vsel %vm1197, 1, 0
      %v1225 = vsel %vm1198, 1, 0
      %v1226 = vadd.s32 %v1145, %v1199
      %v1227 = vadd.s32 %v1146, %v1200
      %v1228 = vadd.s32 %v1147, %v1201
      %v1229 = vadd.s32 %v1148, %v1202
      %v1230 = vadd.s32 %v1149, %v1203
      %v1231 = vadd.s32 %v1150, %v1204
      %v1232 = vadd.s32 %v1151, %v1205
      %v1233 = vadd.s32 %v1152, %v1206
      %v1234 = vadd.s32 %v1153, %v1207
      %v1235 = vadd.s32 %v1154, %v1208
      %v1236 = vadd.s32 %v1155, %v1209
      %v1237 = vadd.s32 %v1156, %v1210
      %v1238 = vadd.s32 %v1157, %v1211
      %v1239 = vadd.s32 %v1158, %v1212
      %v1240 = vadd.s32 %v1159, %v1213
      %v1241 = vadd.s32 %v1160, %v1214
      %v1242 = vadd.s32 %v1161, %v1215
      %v1243 = vadd.s32 %v1162, %v1216
      %v1244 = vadd.s32 %v1163, %v1217
      %v1245 = vadd.s32 %v1164, %v1218
      %v1246 = vadd.s32 %v1165, %v1219
      %v1247 = vadd.s32 %v1166, %v1220
      %v1248 = vadd.s32 %v1167, %v1221
      %v1249 = vadd.s32 %v1168, %v1222
      %v1250 = vadd.s32 %v1169, %v1223
      %v1251 = vadd.s32 %v1170, %v1224
      %v1252 = vadd.s32 %v1171, %v1225
      %vm1253 = vcmp.ge.s32.totalorder %v524, 180
      %vm1254 = vcmp.ge.s32.totalorder %v525, 180
      %vm1255 = vcmp.ge.s32.totalorder %v526, 180
      %vm1256 = vcmp.ge.s32.totalorder %v527, 180
      %vm1257 = vcmp.ge.s32.totalorder %v528, 180
      %vm1258 = vcmp.ge.s32.totalorder %v529, 180
      %vm1259 = vcmp.ge.s32.totalorder %v530, 180
      %vm1260 = vcmp.ge.s32.totalorder %v531, 180
      %vm1261 = vcmp.ge.s32.totalorder %v532, 180
      %vm1262 = vcmp.ge.s32.totalorder %v533, 180
      %vm1263 = vcmp.ge.s32.totalorder %v534, 180
      %vm1264 = vcmp.ge.s32.totalorder %v535, 180
      %vm1265 = vcmp.ge.s32.totalorder %v536, 180
      %vm1266 = vcmp.ge.s32.totalorder %v537, 180
      %vm1267 = vcmp.ge.s32.totalorder %v538, 180
      %vm1268 = vcmp.ge.s32.totalorder %v539, 180
      %vm1269 = vcmp.ge.s32.totalorder %v540, 180
      %vm1270 = vcmp.ge.s32.totalorder %v541, 180
      %vm1271 = vcmp.ge.s32.totalorder %v542, 180
      %vm1272 = vcmp.ge.s32.totalorder %v543, 180
      %vm1273 = vcmp.ge.s32.totalorder %v544, 180
      %vm1274 = vcmp.ge.s32.totalorder %v545, 180
      %vm1275 = vcmp.ge.s32.totalorder %v546, 180
      %vm1276 = vcmp.ge.s32.totalorder %v547, 180
      %vm1277 = vcmp.ge.s32.totalorder %v548, 180
      %vm1278 = vcmp.ge.s32.totalorder %v549, 180
      %vm1279 = vcmp.ge.s32.totalorder %v550, 180
      %v1280 = vsel %vm1253, 1, 0
      %v1281 = vsel %vm1254, 1, 0
      %v1282 = vsel %vm1255, 1, 0
      %v1283 = vsel %vm1256, 1, 0
      %v1284 = vsel %vm1257, 1, 0
      %v1285 = vsel %vm1258, 1, 0
      %v1286 = vsel %vm1259, 1, 0
      %v1287 = vsel %vm1260, 1, 0
      %v1288 = vsel %vm1261, 1, 0
      %v1289 = vsel %vm1262, 1, 0
      %v1290 = vsel %vm1263, 1, 0
      %v1291 = vsel %vm1264, 1, 0
      %v1292 = vsel %vm1265, 1, 0
      %v1293 = vsel %vm1266, 1, 0
      %v1294 = vsel %vm1267, 1, 0
      %v1295 = vsel %vm1268, 1, 0
      %v1296 = vsel %vm1269, 1, 0
      %v1297 = vsel %vm1270, 1, 0
      %v1298 = vsel %vm1271, 1, 0
      %v1299 = vsel %vm1272, 1, 0
      %v1300 = vsel %vm1273, 1, 0
      %v1301 = vsel %vm1274, 1, 0
      %v1302 = vsel %vm1275, 1, 0
      %v1303 = vsel %vm1276, 1, 0
      %v1304 = vsel %vm1277, 1, 0
      %v1305 = vsel %vm1278, 1, 0
      %v1306 = vsel %vm1279, 1, 0
      %v1307 = vadd.s32 %v1226, %v1280
      %v1308 = vadd.s32 %v1227, %v1281
      %v1309 = vadd.s32 %v1228, %v1282
      %v1310 = vadd.s32 %v1229, %v1283
      %v1311 = vadd.s32 %v1230, %v1284
      %v1312 = vadd.s32 %v1231, %v1285
      %v1313 = vadd.s32 %v1232, %v1286
      %v1314 = vadd.s32 %v1233, %v1287
      %v1315 = vadd.s32 %v1234, %v1288
      %v1316 = vadd.s32 %v1235, %v1289
      %v1317 = vadd.s32 %v1236, %v1290
      %v1318 = vadd.s32 %v1237, %v1291
      %v1319 = vadd.s32 %v1238, %v1292
      %v1320 = vadd.s32 %v1239, %v1293
      %v1321 = vadd.s32 %v1240, %v1294
      %v1322 = vadd.s32 %v1241, %v1295
      %v1323 = vadd.s32 %v1242, %v1296
      %v1324 = vadd.s32 %v1243, %v1297
      %v1325 = vadd.s32 %v1244, %v1298
      %v1326 = vadd.s32 %v1245, %v1299
      %v1327 = vadd.s32 %v1246, %v1300
      %v1328 = vadd.s32 %v1247, %v1301
      %v1329 = vadd.s32 %v1248, %v1302
      %v1330 = vadd.s32 %v1249, %v1303
      %v1331 = vadd.s32 %v1250, %v1304
      %v1332 = vadd.s32 %v1251, %v1305
      %v1333 = vadd.s32 %v1252, %v1306
      %vm1334 = vcmp.ge.s32.totalorder %v524, 198
      %vm1335 = vcmp.ge.s32.totalorder %v525, 198
      %vm1336 = vcmp.ge.s32.totalorder %v526, 198
      %vm1337 = vcmp.ge.s32.totalorder %v527, 198
      %vm1338 = vcmp.ge.s32.totalorder %v528, 198
      %vm1339 = vcmp.ge.s32.totalorder %v529, 198
      %vm1340 = vcmp.ge.s32.totalorder %v530, 198
      %vm1341 = vcmp.ge.s32.totalorder %v531, 198
      %vm1342 = vcmp.ge.s32.totalorder %v532, 198
      %vm1343 = vcmp.ge.s32.totalorder %v533, 198
      %vm1344 = vcmp.ge.s32.totalorder %v534, 198
      %vm1345 = vcmp.ge.s32.totalorder %v535, 198
      %vm1346 = vcmp.ge.s32.totalorder %v536, 198
      %vm1347 = vcmp.ge.s32.totalorder %v537, 198
      %vm1348 = vcmp.ge.s32.totalorder %v538, 198
      %vm1349 = vcmp.ge.s32.totalorder %v539, 198
      %vm1350 = vcmp.ge.s32.totalorder %v540, 198
      %vm1351 = vcmp.ge.s32.totalorder %v541, 198
      %vm1352 = vcmp.ge.s32.totalorder %v542, 198
      %vm1353 = vcmp.ge.s32.totalorder %v543, 198
      %vm1354 = vcmp.ge.s32.totalorder %v544, 198
      %vm1355 = vcmp.ge.s32.totalorder %v545, 198
      %vm1356 = vcmp.ge.s32.totalorder %v546, 198
      %vm1357 = vcmp.ge.s32.totalorder %v547, 198
      %vm1358 = vcmp.ge.s32.totalorder %v548, 198
      %vm1359 = vcmp.ge.s32.totalorder %v549, 198
      %vm1360 = vcmp.ge.s32.totalorder %v550, 198
      %v1361 = vsel %vm1334, 1, 0
      %v1362 = vsel %vm1335, 1, 0
      %v1363 = vsel %vm1336, 1, 0
      %v1364 = vsel %vm1337, 1, 0
      %v1365 = vsel %vm1338, 1, 0
      %v1366 = vsel %vm1339, 1, 0
      %v1367 = vsel %vm1340, 1, 0
      %v1368 = vsel %vm1341, 1, 0
      %v1369 = vsel %vm1342, 1, 0
      %v1370 = vsel %vm1343, 1, 0
      %v1371 = vsel %vm1344, 1, 0
      %v1372 = vsel %vm1345, 1, 0
      %v1373 = vsel %vm1346, 1, 0
      %v1374 = vsel %vm1347, 1, 0
      %v1375 = vsel %vm1348, 1, 0
      %v1376 = vsel %vm1349, 1, 0
      %v1377 = vsel %vm1350, 1, 0
      %v1378 = vsel %vm1351, 1, 0
      %v1379 = vsel %vm1352, 1, 0
      %v1380 = vsel %vm1353, 1, 0
      %v1381 = vsel %vm1354, 1, 0
      %v1382 = vsel %vm1355, 1, 0
      %v1383 = vsel %vm1356, 1, 0
      %v1384 = vsel %vm1357, 1, 0
      %v1385 = vsel %vm1358, 1, 0
      %v1386 = vsel %vm1359, 1, 0
      %v1387 = vsel %vm1360, 1, 0
      %v1388 = vadd.s32 %v1307, %v1361
      %v1389 = vadd.s32 %v1308, %v1362
      %v1390 = vadd.s32 %v1309, %v1363
      %v1391 = vadd.s32 %v1310, %v1364
      %v1392 = vadd.s32 %v1311, %v1365
      %v1393 = vadd.s32 %v1312, %v1366
      %v1394 = vadd.s32 %v1313, %v1367
      %v1395 = vadd.s32 %v1314, %v1368
      %v1396 = vadd.s32 %v1315, %v1369
      %v1397 = vadd.s32 %v1316, %v1370
      %v1398 = vadd.s32 %v1317, %v1371
      %v1399 = vadd.s32 %v1318, %v1372
      %v1400 = vadd.s32 %v1319, %v1373
      %v1401 = vadd.s32 %v1320, %v1374
      %v1402 = vadd.s32 %v1321, %v1375
      %v1403 = vadd.s32 %v1322, %v1376
      %v1404 = vadd.s32 %v1323, %v1377
      %v1405 = vadd.s32 %v1324, %v1378
      %v1406 = vadd.s32 %v1325, %v1379
      %v1407 = vadd.s32 %v1326, %v1380
      %v1408 = vadd.s32 %v1327, %v1381
      %v1409 = vadd.s32 %v1328, %v1382
      %v1410 = vadd.s32 %v1329, %v1383
      %v1411 = vadd.s32 %v1330, %v1384
      %v1412 = vadd.s32 %v1331, %v1385
      %v1413 = vadd.s32 %v1332, %v1386
      %v1414 = vadd.s32 %v1333, %v1387
      %vm1415 = vcmp.ge.s32.totalorder %v524, 216
      %vm1416 = vcmp.ge.s32.totalorder %v525, 216
      %vm1417 = vcmp.ge.s32.totalorder %v526, 216
      %vm1418 = vcmp.ge.s32.totalorder %v527, 216
      %vm1419 = vcmp.ge.s32.totalorder %v528, 216
      %vm1420 = vcmp.ge.s32.totalorder %v529, 216
      %vm1421 = vcmp.ge.s32.totalorder %v530, 216
      %vm1422 = vcmp.ge.s32.totalorder %v531, 216
      %vm1423 = vcmp.ge.s32.totalorder %v532, 216
      %vm1424 = vcmp.ge.s32.totalorder %v533, 216
      %vm1425 = vcmp.ge.s32.totalorder %v534, 216
      %vm1426 = vcmp.ge.s32.totalorder %v535, 216
      %vm1427 = vcmp.ge.s32.totalorder %v536, 216
      %vm1428 = vcmp.ge.s32.totalorder %v537, 216
      %vm1429 = vcmp.ge.s32.totalorder %v538, 216
      %vm1430 = vcmp.ge.s32.totalorder %v539, 216
      %vm1431 = vcmp.ge.s32.totalorder %v540, 216
      %vm1432 = vcmp.ge.s32.totalorder %v541, 216
      %vm1433 = vcmp.ge.s32.totalorder %v542, 216
      %vm1434 = vcmp.ge.s32.totalorder %v543, 216
      %vm1435 = vcmp.ge.s32.totalorder %v544, 216
      %vm1436 = vcmp.ge.s32.totalorder %v545, 216
      %vm1437 = vcmp.ge.s32.totalorder %v546, 216
      %vm1438 = vcmp.ge.s32.totalorder %v547, 216
      %vm1439 = vcmp.ge.s32.totalorder %v548, 216
      %vm1440 = vcmp.ge.s32.totalorder %v549, 216
      %vm1441 = vcmp.ge.s32.totalorder %v550, 216
      %v1442 = vsel %vm1415, 1, 0
      %v1443 = vsel %vm1416, 1, 0
      %v1444 = vsel %vm1417, 1, 0
      %v1445 = vsel %vm1418, 1, 0
      %v1446 = vsel %vm1419, 1, 0
      %v1447 = vsel %vm1420, 1, 0
      %v1448 = vsel %vm1421, 1, 0
      %v1449 = vsel %vm1422, 1, 0
      %v1450 = vsel %vm1423, 1, 0
      %v1451 = vsel %vm1424, 1, 0
      %v1452 = vsel %vm1425, 1, 0
      %v1453 = vsel %vm1426, 1, 0
      %v1454 = vsel %vm1427, 1, 0
      %v1455 = vsel %vm1428, 1, 0
      %v1456 = vsel %vm1429, 1, 0
      %v1457 = vsel %vm1430, 1, 0
      %v1458 = vsel %vm1431, 1, 0
      %v1459 = vsel %vm1432, 1, 0
      %v1460 = vsel %vm1433, 1, 0
      %v1461 = vsel %vm1434, 1, 0
      %v1462 = vsel %vm1435, 1, 0
      %v1463 = vsel %vm1436, 1, 0
      %v1464 = vsel %vm1437, 1, 0
      %v1465 = vsel %vm1438, 1, 0
      %v1466 = vsel %vm1439, 1, 0
      %v1467 = vsel %vm1440, 1, 0
      %v1468 = vsel %vm1441, 1, 0
      %v1469 = vadd.s32 %v1388, %v1442
      %v1470 = vadd.s32 %v1389, %v1443
      %v1471 = vadd.s32 %v1390, %v1444
      %v1472 = vadd.s32 %v1391, %v1445
      %v1473 = vadd.s32 %v1392, %v1446
      %v1474 = vadd.s32 %v1393, %v1447
      %v1475 = vadd.s32 %v1394, %v1448
      %v1476 = vadd.s32 %v1395, %v1449
      %v1477 = vadd.s32 %v1396, %v1450
      %v1478 = vadd.s32 %v1397, %v1451
      %v1479 = vadd.s32 %v1398, %v1452
      %v1480 = vadd.s32 %v1399, %v1453
      %v1481 = vadd.s32 %v1400, %v1454
      %v1482 = vadd.s32 %v1401, %v1455
      %v1483 = vadd.s32 %v1402, %v1456
      %v1484 = vadd.s32 %v1403, %v1457
      %v1485 = vadd.s32 %v1404, %v1458
      %v1486 = vadd.s32 %v1405, %v1459
      %v1487 = vadd.s32 %v1406, %v1460
      %v1488 = vadd.s32 %v1407, %v1461
      %v1489 = vadd.s32 %v1408, %v1462
      %v1490 = vadd.s32 %v1409, %v1463
      %v1491 = vadd.s32 %v1410, %v1464
      %v1492 = vadd.s32 %v1411, %v1465
      %v1493 = vadd.s32 %v1412, %v1466
      %v1494 = vadd.s32 %v1413, %v1467
      %v1495 = vadd.s32 %v1414, %v1468
      %vm1496 = vcmp.ge.s32.totalorder %v524, 234
      %vm1497 = vcmp.ge.s32.totalorder %v525, 234
      %vm1498 = vcmp.ge.s32.totalorder %v526, 234
      %vm1499 = vcmp.ge.s32.totalorder %v527, 234
      %vm1500 = vcmp.ge.s32.totalorder %v528, 234
      %vm1501 = vcmp.ge.s32.totalorder %v529, 234
      %vm1502 = vcmp.ge.s32.totalorder %v530, 234
      %vm1503 = vcmp.ge.s32.totalorder %v531, 234
      %vm1504 = vcmp.ge.s32.totalorder %v532, 234
      %vm1505 = vcmp.ge.s32.totalorder %v533, 234
      %vm1506 = vcmp.ge.s32.totalorder %v534, 234
      %vm1507 = vcmp.ge.s32.totalorder %v535, 234
      %vm1508 = vcmp.ge.s32.totalorder %v536, 234
      %vm1509 = vcmp.ge.s32.totalorder %v537, 234
      %vm1510 = vcmp.ge.s32.totalorder %v538, 234
      %vm1511 = vcmp.ge.s32.totalorder %v539, 234
      %vm1512 = vcmp.ge.s32.totalorder %v540, 234
      %vm1513 = vcmp.ge.s32.totalorder %v541, 234
      %vm1514 = vcmp.ge.s32.totalorder %v542, 234
      %vm1515 = vcmp.ge.s32.totalorder %v543, 234
      %vm1516 = vcmp.ge.s32.totalorder %v544, 234
      %vm1517 = vcmp.ge.s32.totalorder %v545, 234
      %vm1518 = vcmp.ge.s32.totalorder %v546, 234
      %vm1519 = vcmp.ge.s32.totalorder %v547, 234
      %vm1520 = vcmp.ge.s32.totalorder %v548, 234
      %vm1521 = vcmp.ge.s32.totalorder %v549, 234
      %vm1522 = vcmp.ge.s32.totalorder %v550, 234
      %v1523 = vsel %vm1496, 1, 0
      %v1524 = vsel %vm1497, 1, 0
      %v1525 = vsel %vm1498, 1, 0
      %v1526 = vsel %vm1499, 1, 0
      %v1527 = vsel %vm1500, 1, 0
      %v1528 = vsel %vm1501, 1, 0
      %v1529 = vsel %vm1502, 1, 0
      %v1530 = vsel %vm1503, 1, 0
      %v1531 = vsel %vm1504, 1, 0
      %v1532 = vsel %vm1505, 1, 0
      %v1533 = vsel %vm1506, 1, 0
      %v1534 = vsel %vm1507, 1, 0
      %v1535 = vsel %vm1508, 1, 0
      %v1536 = vsel %vm1509, 1, 0
      %v1537 = vsel %vm1510, 1, 0
      %v1538 = vsel %vm1511, 1, 0
      %v1539 = vsel %vm1512, 1, 0
      %v1540 = vsel %vm1513, 1, 0
      %v1541 = vsel %vm1514, 1, 0
      %v1542 = vsel %vm1515, 1, 0
      %v1543 = vsel %vm1516, 1, 0
      %v1544 = vsel %vm1517, 1, 0
      %v1545 = vsel %vm1518, 1, 0
      %v1546 = vsel %vm1519, 1, 0
      %v1547 = vsel %vm1520, 1, 0
      %v1548 = vsel %vm1521, 1, 0
      %v1549 = vsel %vm1522, 1, 0
      %v1550 = vadd.s32 %v1469, %v1523
      %v1551 = vadd.s32 %v1470, %v1524
      %v1552 = vadd.s32 %v1471, %v1525
      %v1553 = vadd.s32 %v1472, %v1526
      %v1554 = vadd.s32 %v1473, %v1527
      %v1555 = vadd.s32 %v1474, %v1528
      %v1556 = vadd.s32 %v1475, %v1529
      %v1557 = vadd.s32 %v1476, %v1530
      %v1558 = vadd.s32 %v1477, %v1531
      %v1559 = vadd.s32 %v1478, %v1532
      %v1560 = vadd.s32 %v1479, %v1533
      %v1561 = vadd.s32 %v1480, %v1534
      %v1562 = vadd.s32 %v1481, %v1535
      %v1563 = vadd.s32 %v1482, %v1536
      %v1564 = vadd.s32 %v1483, %v1537
      %v1565 = vadd.s32 %v1484, %v1538
      %v1566 = vadd.s32 %v1485, %v1539
      %v1567 = vadd.s32 %v1486, %v1540
      %v1568 = vadd.s32 %v1487, %v1541
      %v1569 = vadd.s32 %v1488, %v1542
      %v1570 = vadd.s32 %v1489, %v1543
      %v1571 = vadd.s32 %v1490, %v1544
      %v1572 = vadd.s32 %v1491, %v1545
      %v1573 = vadd.s32 %v1492, %v1546
      %v1574 = vadd.s32 %v1493, %v1547
      %v1575 = vadd.s32 %v1494, %v1548
      %v1576 = vadd.s32 %v1495, %v1549
      %v1577 = vmul.u32 %v1550, 18
      %v1578 = vmul.u32 %v1551, 18
      %v1579 = vmul.u32 %v1552, 18
      %v1580 = vmul.u32 %v1553, 18
      %v1581 = vmul.u32 %v1554, 18
      %v1582 = vmul.u32 %v1555, 18
      %v1583 = vmul.u32 %v1556, 18
      %v1584 = vmul.u32 %v1557, 18
      %v1585 = vmul.u32 %v1558, 18
      %v1586 = vmul.u32 %v1559, 18
      %v1587 = vmul.u32 %v1560, 18
      %v1588 = vmul.u32 %v1561, 18
      %v1589 = vmul.u32 %v1562, 18
      %v1590 = vmul.u32 %v1563, 18
      %v1591 = vmul.u32 %v1564, 18
      %v1592 = vmul.u32 %v1565, 18
      %v1593 = vmul.u32 %v1566, 18
      %v1594 = vmul.u32 %v1567, 18
      %v1595 = vmul.u32 %v1568, 18
      %v1596 = vmul.u32 %v1569, 18
      %v1597 = vmul.u32 %v1570, 18
      %v1598 = vmul.u32 %v1571, 18
      %v1599 = vmul.u32 %v1572, 18
      %v1600 = vmul.u32 %v1573, 18
      %v1601 = vmul.u32 %v1574, 18
      %v1602 = vmul.u32 %v1575, 18
      %v1603 = vmul.u32 %v1576, 18
      %v1604 = vsub.s32 %v524, %v1577
      %v1605 = vsub.s32 %v525, %v1578
      %v1606 = vsub.s32 %v526, %v1579
      %v1607 = vsub.s32 %v527, %v1580
      %v1608 = vsub.s32 %v528, %v1581
      %v1609 = vsub.s32 %v529, %v1582
      %v1610 = vsub.s32 %v530, %v1583
      %v1611 = vsub.s32 %v531, %v1584
      %v1612 = vsub.s32 %v532, %v1585
      %v1613 = vsub.s32 %v533, %v1586
      %v1614 = vsub.s32 %v534, %v1587
      %v1615 = vsub.s32 %v535, %v1588
      %v1616 = vsub.s32 %v536, %v1589
      %v1617 = vsub.s32 %v537, %v1590
      %v1618 = vsub.s32 %v538, %v1591
      %v1619 = vsub.s32 %v539, %v1592
      %v1620 = vsub.s32 %v540, %v1593
      %v1621 = vsub.s32 %v541, %v1594
      %v1622 = vsub.s32 %v542, %v1595
      %v1623 = vsub.s32 %v543, %v1596
      %v1624 = vsub.s32 %v544, %v1597
      %v1625 = vsub.s32 %v545, %v1598
      %v1626 = vsub.s32 %v546, %v1599
      %v1627 = vsub.s32 %v547, %v1600
      %v1628 = vsub.s32 %v548, %v1601
      %v1629 = vsub.s32 %v549, %v1602
      %v1630 = vsub.s32 %v550, %v1603
      %vm1631 = vcmp.ge.s32.totalorder %v1604, 1
      %vm1632 = vcmp.ge.s32.totalorder %v1605, 1
      %vm1633 = vcmp.ge.s32.totalorder %v1606, 1
      %vm1634 = vcmp.ge.s32.totalorder %v1607, 1
      %vm1635 = vcmp.ge.s32.totalorder %v1608, 1
      %vm1636 = vcmp.ge.s32.totalorder %v1609, 1
      %vm1637 = vcmp.ge.s32.totalorder %v1610, 1
      %vm1638 = vcmp.ge.s32.totalorder %v1611, 1
      %vm1639 = vcmp.ge.s32.totalorder %v1612, 1
      %vm1640 = vcmp.ge.s32.totalorder %v1613, 1
      %vm1641 = vcmp.ge.s32.totalorder %v1614, 1
      %vm1642 = vcmp.ge.s32.totalorder %v1615, 1
      %vm1643 = vcmp.ge.s32.totalorder %v1616, 1
      %vm1644 = vcmp.ge.s32.totalorder %v1617, 1
      %vm1645 = vcmp.ge.s32.totalorder %v1618, 1
      %vm1646 = vcmp.ge.s32.totalorder %v1619, 1
      %vm1647 = vcmp.ge.s32.totalorder %v1620, 1
      %vm1648 = vcmp.ge.s32.totalorder %v1621, 1
      %vm1649 = vcmp.ge.s32.totalorder %v1622, 1
      %vm1650 = vcmp.ge.s32.totalorder %v1623, 1
      %vm1651 = vcmp.ge.s32.totalorder %v1624, 1
      %vm1652 = vcmp.ge.s32.totalorder %v1625, 1
      %vm1653 = vcmp.ge.s32.totalorder %v1626, 1
      %vm1654 = vcmp.ge.s32.totalorder %v1627, 1
      %vm1655 = vcmp.ge.s32.totalorder %v1628, 1
      %vm1656 = vcmp.ge.s32.totalorder %v1629, 1
      %vm1657 = vcmp.ge.s32.totalorder %v1630, 1
      %vm1658 = vmand %vm495, %vm1631
      %vm1659 = vmand %vm496, %vm1632
      %vm1660 = vmand %vm497, %vm1633
      %vm1661 = vmand %vm498, %vm1634
      %vm1662 = vmand %vm499, %vm1635
      %vm1663 = vmand %vm500, %vm1636
      %vm1664 = vmand %vm501, %vm1637
      %vm1665 = vmand %vm502, %vm1638
      %vm1666 = vmand %vm503, %vm1639
      %vm1667 = vmand %vm504, %vm1640
      %vm1668 = vmand %vm505, %vm1641
      %vm1669 = vmand %vm506, %vm1642
      %vm1670 = vmand %vm507, %vm1643
      %vm1671 = vmand %vm508, %vm1644
      %vm1672 = vmand %vm509, %vm1645
      %vm1673 = vmand %vm510, %vm1646
      %vm1674 = vmand %vm511, %vm1647
      %vm1675 = vmand %vm512, %vm1648
      %vm1676 = vmand %vm513, %vm1649
      %vm1677 = vmand %vm514, %vm1650
      %vm1678 = vmand %vm515, %vm1651
      %vm1679 = vmand %vm516, %vm1652
      %vm1680 = vmand %vm517, %vm1653
      %vm1681 = vmand %vm518, %vm1654
      %vm1682 = vmand %vm519, %vm1655
      %vm1683 = vmand %vm520, %vm1656
      %vm1684 = vmand %vm521, %vm1657
      %vm1685 = vcmp.le.s32.totalorder %v1604, 16
      %vm1686 = vcmp.le.s32.totalorder %v1605, 16
      %vm1687 = vcmp.le.s32.totalorder %v1606, 16
      %vm1688 = vcmp.le.s32.totalorder %v1607, 16
      %vm1689 = vcmp.le.s32.totalorder %v1608, 16
      %vm1690 = vcmp.le.s32.totalorder %v1609, 16
      %vm1691 = vcmp.le.s32.totalorder %v1610, 16
      %vm1692 = vcmp.le.s32.totalorder %v1611, 16
      %vm1693 = vcmp.le.s32.totalorder %v1612, 16
      %vm1694 = vcmp.le.s32.totalorder %v1613, 16
      %vm1695 = vcmp.le.s32.totalorder %v1614, 16
      %vm1696 = vcmp.le.s32.totalorder %v1615, 16
      %vm1697 = vcmp.le.s32.totalorder %v1616, 16
      %vm1698 = vcmp.le.s32.totalorder %v1617, 16
      %vm1699 = vcmp.le.s32.totalorder %v1618, 16
      %vm1700 = vcmp.le.s32.totalorder %v1619, 16
      %vm1701 = vcmp.le.s32.totalorder %v1620, 16
      %vm1702 = vcmp.le.s32.totalorder %v1621, 16
      %vm1703 = vcmp.le.s32.totalorder %v1622, 16
      %vm1704 = vcmp.le.s32.totalorder %v1623, 16
      %vm1705 = vcmp.le.s32.totalorder %v1624, 16
      %vm1706 = vcmp.le.s32.totalorder %v1625, 16
      %vm1707 = vcmp.le.s32.totalorder %v1626, 16
      %vm1708 = vcmp.le.s32.totalorder %v1627, 16
      %vm1709 = vcmp.le.s32.totalorder %v1628, 16
      %vm1710 = vcmp.le.s32.totalorder %v1629, 16
      %vm1711 = vcmp.le.s32.totalorder %v1630, 16
      %vm1712 = vmand %vm1658, %vm1685
      %vm1713 = vmand %vm1659, %vm1686
      %vm1714 = vmand %vm1660, %vm1687
      %vm1715 = vmand %vm1661, %vm1688
      %vm1716 = vmand %vm1662, %vm1689
      %vm1717 = vmand %vm1663, %vm1690
      %vm1718 = vmand %vm1664, %vm1691
      %vm1719 = vmand %vm1665, %vm1692
      %vm1720 = vmand %vm1666, %vm1693
      %vm1721 = vmand %vm1667, %vm1694
      %vm1722 = vmand %vm1668, %vm1695
      %vm1723 = vmand %vm1669, %vm1696
      %vm1724 = vmand %vm1670, %vm1697
      %vm1725 = vmand %vm1671, %vm1698
      %vm1726 = vmand %vm1672, %vm1699
      %vm1727 = vmand %vm1673, %vm1700
      %vm1728 = vmand %vm1674, %vm1701
      %vm1729 = vmand %vm1675, %vm1702
      %vm1730 = vmand %vm1676, %vm1703
      %vm1731 = vmand %vm1677, %vm1704
      %vm1732 = vmand %vm1678, %vm1705
      %vm1733 = vmand %vm1679, %vm1706
      %vm1734 = vmand %vm1680, %vm1707
      %vm1735 = vmand %vm1681, %vm1708
      %vm1736 = vmand %vm1682, %vm1709
      %vm1737 = vmand %vm1683, %vm1710
      %vm1738 = vmand %vm1684, %vm1711
      %v1739 = vsel %vm1712, 1, 0
      %v1740 = vsel %vm1713, 1, 0
      %v1741 = vsel %vm1714, 1, 0
      %v1742 = vsel %vm1715, 1, 0
      %v1743 = vsel %vm1716, 1, 0
      %v1744 = vsel %vm1717, 1, 0
      %v1745 = vsel %vm1718, 1, 0
      %v1746 = vsel %vm1719, 1, 0
      %v1747 = vsel %vm1720, 1, 0
      %v1748 = vsel %vm1721, 1, 0
      %v1749 = vsel %vm1722, 1, 0
      %v1750 = vsel %vm1723, 1, 0
      %v1751 = vsel %vm1724, 1, 0
      %v1752 = vsel %vm1725, 1, 0
      %v1753 = vsel %vm1726, 1, 0
      %v1754 = vsel %vm1727, 1, 0
      %v1755 = vsel %vm1728, 1, 0
      %v1756 = vsel %vm1729, 1, 0
      %v1757 = vsel %vm1730, 1, 0
      %v1758 = vsel %vm1731, 1, 0
      %v1759 = vsel %vm1732, 1, 0
      %v1760 = vsel %vm1733, 1, 0
      %v1761 = vsel %vm1734, 1, 0
      %v1762 = vsel %vm1735, 1, 0
      %v1763 = vsel %vm1736, 1, 0
      %v1764 = vsel %vm1737, 1, 0
      %v1765 = vsel %vm1738, 1, 0
      %vm1766 = vcmp.eq.s32.totalorder %v1739, 1
      %vm1767 = vcmp.eq.s32.totalorder %v1740, 1
      %vm1768 = vcmp.eq.s32.totalorder %v1741, 1
      %vm1769 = vcmp.eq.s32.totalorder %v1742, 1
      %vm1770 = vcmp.eq.s32.totalorder %v1743, 1
      %vm1771 = vcmp.eq.s32.totalorder %v1744, 1
      %vm1772 = vcmp.eq.s32.totalorder %v1745, 1
      %vm1773 = vcmp.eq.s32.totalorder %v1746, 1
      %vm1774 = vcmp.eq.s32.totalorder %v1747, 1
      %vm1775 = vcmp.eq.s32.totalorder %v1748, 1
      %vm1776 = vcmp.eq.s32.totalorder %v1749, 1
      %vm1777 = vcmp.eq.s32.totalorder %v1750, 1
      %vm1778 = vcmp.eq.s32.totalorder %v1751, 1
      %vm1779 = vcmp.eq.s32.totalorder %v1752, 1
      %vm1780 = vcmp.eq.s32.totalorder %v1753, 1
      %vm1781 = vcmp.eq.s32.totalorder %v1754, 1
      %vm1782 = vcmp.eq.s32.totalorder %v1755, 1
      %vm1783 = vcmp.eq.s32.totalorder %v1756, 1
      %vm1784 = vcmp.eq.s32.totalorder %v1757, 1
      %vm1785 = vcmp.eq.s32.totalorder %v1758, 1
      %vm1786 = vcmp.eq.s32.totalorder %v1759, 1
      %vm1787 = vcmp.eq.s32.totalorder %v1760, 1
      %vm1788 = vcmp.eq.s32.totalorder %v1761, 1
      %vm1789 = vcmp.eq.s32.totalorder %v1762, 1
      %vm1790 = vcmp.eq.s32.totalorder %v1763, 1
      %vm1791 = vcmp.eq.s32.totalorder %v1764, 1
      %vm1792 = vcmp.eq.s32.totalorder %v1765, 1
      %v1793 = vsel %vm1766, %v356, 0.0
      %v1794 = vsel %vm1767, %v357, 0.0
      %v1795 = vsel %vm1768, %v358, 0.0
      %v1796 = vsel %vm1769, %v359, 0.0
      %v1797 = vsel %vm1770, %v360, 0.0
      %v1798 = vsel %vm1771, %v361, 0.0
      %v1799 = vsel %vm1772, %v362, 0.0
      %v1800 = vsel %vm1773, %v363, 0.0
      %v1801 = vsel %vm1774, %v364, 0.0
      %v1802 = vsel %vm1775, %v365, 0.0
      %v1803 = vsel %vm1776, %v366, 0.0
      %v1804 = vsel %vm1777, %v367, 0.0
      %v1805 = vsel %vm1778, %v368, 0.0
      %v1806 = vsel %vm1779, %v369, 0.0
      %v1807 = vsel %vm1780, %v370, 0.0
      %v1808 = vsel %vm1781, %v371, 0.0
      %v1809 = vsel %vm1782, %v372, 0.0
      %v1810 = vsel %vm1783, %v373, 0.0
      %v1811 = vsel %vm1784, %v374, 0.0
      %v1812 = vsel %vm1785, %v375, 0.0
      %v1813 = vsel %vm1786, %v376, 0.0
      %v1814 = vsel %vm1787, %v377, 0.0
      %v1815 = vsel %vm1788, %v378, 0.0
      %v1816 = vsel %vm1789, %v379, 0.0
      %v1817 = vsel %vm1790, %v380, 0.0
      %v1818 = vsel %vm1791, %v381, 0.0
      %v1819 = vsel %vm1792, %v382, 0.0
      %v1820 = vpack.c.bf16 %v1794, %v1793
      %v1821 = vpack.c.bf16 %v1796, %v1795
      %v1822 = vpack.c.bf16 %v1798, %v1797
      %v1823 = vpack.c.bf16 %v1800, %v1799
      %v1824 = vpack.c.bf16 %v1802, %v1801
      %v1825 = vpack.c.bf16 %v1804, %v1803
      %v1826 = vpack.c.bf16 %v1806, %v1805
      %v1827 = vpack.c.bf16 %v1808, %v1807
      %v1828 = vpack.c.bf16 %v1810, %v1809
      %v1829 = vpack.c.bf16 %v1812, %v1811
      %v1830 = vpack.c.bf16 %v1814, %v1813
      %v1831 = vpack.c.bf16 %v1816, %v1815
      %v1832 = vpack.c.bf16 %v1818, %v1817
      %v1833 = vpack.c.bf16 %v1819, %v1819
      %v1834 = vld [vmem:[%s4] sm:$0xf]
      %v1835 = vld [vmem:[%s4 + $0x4] sm:$0xf]
      %s1836 = scalar_lea.vmem %s4, 8
      %v1837 = vld [vmem:[%s1836] sm:$0xf]
      %v1838 = vld [vmem:[%s1836 + $0x4] sm:$0xf]
      %vm1851 = vcmask 1046528
      %v1852 = vrot.slane %v1820, 1
      %v1853 = vrot.slane %v1821, 1
      %v1854 = vsel %vm1851, %v1852, %v1853
      %v1855 = vrot.slane %v1822, 1
      %v1856 = vsel %vm1851, %v1853, %v1855
      %v1857 = vrot.slane %v1823, 1
      %v1858 = vsel %vm1851, %v1855, %v1857
      %v1859 = vrot.slane %v1824, 1
      %v1860 = vsel %vm1851, %v1857, %v1859
      %v1861 = vrot.slane %v1825, 1
      %v1862 = vsel %vm1851, %v1859, %v1861
      %v1863 = vrot.slane %v1826, 1
      %v1864 = vsel %vm1851, %v1861, %v1863
      %v1865 = vrot.slane %v1827, 1
      %v1866 = vsel %vm1851, %v1863, %v1865
      %v1867 = vrot.slane %v1828, 1
      %v1868 = vsel %vm1851, %v1865, %v1867
      %v1869 = vrot.slane %v1829, 1
      %v1870 = vsel %vm1851, %v1867, %v1869
      %v1871 = vrot.slane %v1830, 1
      %v1872 = vsel %vm1851, %v1869, %v1871
      %v1873 = vrot.slane %v1831, 1
      %v1874 = vsel %vm1851, %v1871, %v1873
      %v1877 = vunpack.c.l.b16 %v1837
      %v1878 = vunpack.c.l.b16 %v1838
      %v1879 = vpack.c.b16 %v1878, %v1877
      %vm1881 = vcmask 130048
      %v1883 = vsel %vm1881, %v1854, 0
      %v1886 = vsel %vm1881, %v1856, 0
      %v1889 = vsel %vm1881, %v1858, 0
      %v1892 = vsel %vm1881, %v1860, 0
      %v1895 = vsel %vm1881, %v1862, 0
      %v1898 = vsel %vm1881, %v1864, 0
      %v1901 = vsel %vm1881, %v1866, 0
      %v1904 = vsel %vm1881, %v1868, 0
      %v1907 = vsel %vm1881, %v1870, 0
      %v1910 = vsel %vm1881, %v1872, 0
      %v1913 = vsel %vm1881, %v1874, 0
      %1915 = vmatprep.subr.bf16.mxu0 0
      %1916 = vmatpush1.bf16.msra.mxu0 %v1879
      %1917 = vmatprep.subr.bf16.mxu0 0
      %1918 = vmatpush1.bf16.msra.mxu0 0
      %1919 = vmatprep.subr.bf16.mxu0 0
      %1920 = vmatpush1.bf16.msra.mxu0 0
      %1921 = vmatprep.subr.bf16.mxu0 0
      %1922 = vmatpush1.bf16.msra.mxu0 0
      %1923 = vmatprep.subr.bf16.mxu0 0
      %1924 = vmatpush1.bf16.msra.mxu0 0
      %1925 = vmatprep.subr.bf16.mxu0 0
      %1926 = vmatpush1.bf16.msra.mxu0 0
      %1927 = vmatprep.subr.bf16.mxu0 0
      %1928 = vmatpush1.bf16.msra.mxu0 0
      %1929 = vmatprep.subr.bf16.mxu0 0
      %1930 = vmatpush1.bf16.msra.mxu0 0
      %1931 = vmatprep.subr.bf16.mxu0 0
      %1932 = vmatpush1.bf16.msra.mxu0 0
      %1933 = vmatprep.subr.bf16.mxu0 0
      %1934 = vmatpush1.bf16.msra.mxu0 0
      %1935 = vmatprep.subr.bf16.mxu0 0
      %1936 = vmatpush1.bf16.msra.mxu0 0
      %1937 = vmatprep.subr.bf16.mxu0 0
      %1938 = vmatpush1.bf16.msra.mxu0 0
      %1939 = vmatprep.subr.bf16.mxu0 0
      %1940 = vmatpush1.bf16.msra.mxu0 0
      %1941 = vmatprep.subr.bf16.mxu0 0
      %1942 = vmatpush1.bf16.msra.mxu0 0
      %1943 = vmatprep.subr.bf16.mxu0 0
      %1944 = vmatpush1.bf16.msra.mxu0 0
      %1945 = vmatprep.subr.bf16.mxu0 0
      %1946 = vmatpush1.bf16.msra.mxu0 0
      %1947 = vmatprep.mubr.bf16.mxu0 0
      %1948 = vmatmul.mubr.bf16.gmra.mrb[0].mxu0 %v1883
      %v1949 = vpop.f32.mrb[0].mxu0
      %v1950 = vadd.f32 0.0, %v1949
      %v1951 = vpop.f32.mrb[0].mxu0
      %v1952 = vpop.f32.mrb[0].mxu0
      %v1953 = vadd.f32 0.0, %v1952
      %v1954 = vpop.f32.mrb[0].mxu0
      %1955 = vmatprep.mubr.bf16.mxu0 0
      %1956 = vmatmul.mubr.bf16.gmra.mrb[0].mxu0 %v1886
      %v1957 = vpop.f32.mrb[0].mxu0
      %v1958 = vadd.f32 0.0, %v1957
      %v1959 = vpop.f32.mrb[0].mxu0
      %v1960 = vpop.f32.mrb[0].mxu0
      %v1961 = vadd.f32 0.0, %v1960
      %v1962 = vpop.f32.mrb[0].mxu0
      %1963 = vmatprep.mubr.bf16.mxu0 0
      %1964 = vmatmul.mubr.bf16.gmra.mrb[0].mxu0 %v1889
      %v1965 = vpop.f32.mrb[0].mxu0
      %v1966 = vadd.f32 0.0, %v1965
      %v1967 = vpop.f32.mrb[0].mxu0
      %v1968 = vpop.f32.mrb[0].mxu0
      %v1969 = vadd.f32 0.0, %v1968
      %v1970 = vpop.f32.mrb[0].mxu0
      %1971 = vmatprep.mubr.bf16.mxu0 0
      %1972 = vmatmul.mubr.bf16.gmra.mrb[0].mxu0 %v1892
      %v1973 = vpop.f32.mrb[0].mxu0
      %v1974 = vadd.f32 0.0, %v1973
      %v1975 = vpop.f32.mrb[0].mxu0
      %v1976 = vpop.f32.mrb[0].mxu0
      %v1977 = vadd.f32 0.0, %v1976
      %v1978 = vpop.f32.mrb[0].mxu0
      %1979 = vmatprep.mubr.bf16.mxu0 0
      %1980 = vmatmul.mubr.bf16.gmra.mrb[0].mxu0 %v1895
      %v1981 = vpop.f32.mrb[0].mxu0
      %v1982 = vadd.f32 0.0, %v1981
      %v1983 = vpop.f32.mrb[0].mxu0
      %v1984 = vpop.f32.mrb[0].mxu0
      %v1985 = vadd.f32 0.0, %v1984
      %v1986 = vpop.f32.mrb[0].mxu0
      %1987 = vmatprep.mubr.bf16.mxu0 0
      %1988 = vmatmul.mubr.bf16.gmra.mrb[0].mxu0 %v1898
      %v1989 = vpop.f32.mrb[0].mxu0
      %v1990 = vadd.f32 0.0, %v1989
      %v1991 = vpop.f32.mrb[0].mxu0
      %v1992 = vpop.f32.mrb[0].mxu0
      %v1993 = vadd.f32 0.0, %v1992
      %v1994 = vpop.f32.mrb[0].mxu0
      %1995 = vmatprep.mubr.bf16.mxu0 0
      %1996 = vmatmul.mubr.bf16.gmra.mrb[0].mxu0 %v1901
      %v1997 = vpop.f32.mrb[0].mxu0
      %v1998 = vadd.f32 0.0, %v1997
      %v1999 = vpop.f32.mrb[0].mxu0
      %v2000 = vpop.f32.mrb[0].mxu0
      %v2001 = vadd.f32 0.0, %v2000
      %v2002 = vpop.f32.mrb[0].mxu0
      %2003 = vmatprep.mubr.bf16.mxu0 0
      %2004 = vmatmul.mubr.bf16.gmra.mrb[0].mxu0 %v1904
      %v2005 = vpop.f32.mrb[0].mxu0
      %v2006 = vadd.f32 0.0, %v2005
      %v2007 = vpop.f32.mrb[0].mxu0
      %v2008 = vpop.f32.mrb[0].mxu0
      %v2009 = vadd.f32 0.0, %v2008
      %v2010 = vpop.f32.mrb[0].mxu0
      %2011 = vmatprep.mubr.bf16.mxu0 0
      %2012 = vmatmul.mubr.bf16.gmra.mrb[0].mxu0 %v1907
      %v2013 = vpop.f32.mrb[0].mxu0
      %v2014 = vadd.f32 0.0, %v2013
      %v2015 = vpop.f32.mrb[0].mxu0
      %v2016 = vpop.f32.mrb[0].mxu0
      %v2017 = vadd.f32 0.0, %v2016
      %v2018 = vpop.f32.mrb[0].mxu0
      %2019 = vmatprep.mubr.bf16.mxu0 0
      %2020 = vmatmul.mubr.bf16.gmra.mrb[0].mxu0 %v1910
      %v2021 = vpop.f32.mrb[0].mxu0
      %v2022 = vadd.f32 0.0, %v2021
      %v2023 = vpop.f32.mrb[0].mxu0
      %v2024 = vpop.f32.mrb[0].mxu0
      %v2025 = vadd.f32 0.0, %v2024
      %v2026 = vpop.f32.mrb[0].mxu0
      %2027 = vmatprep.mubr.bf16.mxu0 0
      %2028 = vmatmul.mubr.bf16.gmra.mrb[0].mxu0 %v1913
      %v2029 = vpop.f32.mrb[0].mxu0
      %v2030 = vadd.f32 0.0, %v2029
      %v2031 = vpop.f32.mrb[0].mxu0
      %v2032 = vpop.f32.mrb[0].mxu0
      %v2033 = vadd.f32 0.0, %v2032
      %v2034 = vpop.f32.mrb[0].mxu0
      %2035 = vdwg.mxu0
      %vm2036 = vsmask.f32 7424
      %v2038 = vshrl.u32 %v1820, 16
      %v2040 = vshll.u32 %v1820, 16
      %v2042 = vrot.slane %v2040, 1
      %v2043 = vor.u32 %v2038, %v2042
      %v2045 = vshll.u32 %v1821, 16
      %v2047 = vrot.slane %v2045, 1
      %v2048 = vsel %vm2036, %v2043, %v2047
      %v2049 = vshrl.u32 %v1821, 16
      %v2051 = vor.u32 %v2049, %v2047
      %v2053 = vshll.u32 %v1822, 16
      %v2055 = vrot.slane %v2053, 1
      %v2056 = vsel %vm2036, %v2051, %v2055
      %v2057 = vshrl.u32 %v1822, 16
      %v2059 = vor.u32 %v2057, %v2055
      %v2061 = vshll.u32 %v1823, 16
      %v2063 = vrot.slane %v2061, 1
      %v2064 = vsel %vm2036, %v2059, %v2063
      %v2065 = vshrl.u32 %v1823, 16
      %v2067 = vor.u32 %v2065, %v2063
      %v2069 = vshll.u32 %v1824, 16
      %v2071 = vrot.slane %v2069, 1
      %v2072 = vsel %vm2036, %v2067, %v2071
      %v2073 = vshrl.u32 %v1824, 16
      %v2075 = vor.u32 %v2073, %v2071
      %v2077 = vshll.u32 %v1825, 16
      %v2079 = vrot.slane %v2077, 1
      %v2080 = vsel %vm2036, %v2075, %v2079
      %v2081 = vshrl.u32 %v1825, 16
      %v2083 = vor.u32 %v2081, %v2079
      %v2085 = vshll.u32 %v1826, 16
      %v2087 = vrot.slane %v2085, 1
      %v2088 = vsel %vm2036, %v2083, %v2087
      %v2089 = vshrl.u32 %v1826, 16
      %v2091 = vor.u32 %v2089, %v2087
      %v2093 = vshll.u32 %v1827, 16
      %v2095 = vrot.slane %v2093, 1
      %v2096 = vsel %vm2036, %v2091, %v2095
      %v2097 = vshrl.u32 %v1827, 16
      %v2099 = vor.u32 %v2097, %v2095
      %v2101 = vshll.u32 %v1828, 16
      %v2103 = vrot.slane %v2101, 1
      %v2104 = vsel %vm2036, %v2099, %v2103
      %v2105 = vshrl.u32 %v1828, 16
      %v2107 = vor.u32 %v2105, %v2103
      %v2109 = vshll.u32 %v1829, 16
      %v2111 = vrot.slane %v2109, 1
      %v2112 = vsel %vm2036, %v2107, %v2111
      %v2113 = vshrl.u32 %v1829, 16
      %v2115 = vor.u32 %v2113, %v2111
      %v2117 = vshll.u32 %v1830, 16
      %v2119 = vrot.slane %v2117, 1
      %v2120 = vsel %vm2036, %v2115, %v2119
      %v2121 = vshrl.u32 %v1830, 16
      %v2123 = vor.u32 %v2121, %v2119
      %v2125 = vshll.u32 %v1831, 16
      %v2127 = vrot.slane %v2125, 1
      %v2128 = vsel %vm2036, %v2123, %v2127
      %v2131 = vunpack.c.l.b16 %v1834
      %v2132 = vunpack.c.l.b16 %v1835
      %v2133 = vpack.c.b16 %v2132, %v2131
      %v2136 = vsel %vm1881, %v2048, 0
      %v2139 = vsel %vm1881, %v2056, 0
      %v2142 = vsel %vm1881, %v2064, 0
      %v2145 = vsel %vm1881, %v2072, 0
      %v2148 = vsel %vm1881, %v2080, 0
      %v2151 = vsel %vm1881, %v2088, 0
      %v2154 = vsel %vm1881, %v2096, 0
      %v2157 = vsel %vm1881, %v2104, 0
      %v2160 = vsel %vm1881, %v2112, 0
      %v2163 = vsel %vm1881, %v2120, 0
      %v2166 = vsel %vm1881, %v2128, 0
      %2168 = vmatprep.subr.bf16.mxu0 0
      %2169 = vmatpush1.bf16.msra.mxu0 %v2133
      %2170 = vmatprep.subr.bf16.mxu0 0
      %2171 = vmatpush1.bf16.msra.mxu0 0
      %2172 = vmatprep.subr.bf16.mxu0 0
      %2173 = vmatpush1.bf16.msra.mxu0 0
      %2174 = vmatprep.subr.bf16.mxu0 0
      %2175 = vmatpush1.bf16.msra.mxu0 0
      %2176 = vmatprep.subr.bf16.mxu0 0
      %2177 = vmatpush1.bf16.msra.mxu0 0
      %2178 = vmatprep.subr.bf16.mxu0 0
      %2179 = vmatpush1.bf16.msra.mxu0 0
      %2180 = vmatprep.subr.bf16.mxu0 0
      %2181 = vmatpush1.bf16.msra.mxu0 0
      %2182 = vmatprep.subr.bf16.mxu0 0
      %2183 = vmatpush1.bf16.msra.mxu0 0
      %2184 = vmatprep.subr.bf16.mxu0 0
      %2185 = vmatpush1.bf16.msra.mxu0 0
      %2186 = vmatprep.subr.bf16.mxu0 0
      %2187 = vmatpush1.bf16.msra.mxu0 0
      %2188 = vmatprep.subr.bf16.mxu0 0
      %2189 = vmatpush1.bf16.msra.mxu0 0
      %2190 = vmatprep.subr.bf16.mxu0 0
      %2191 = vmatpush1.bf16.msra.mxu0 0
      %2192 = vmatprep.subr.bf16.mxu0 0
      %2193 = vmatpush1.bf16.msra.mxu0 0
      %2194 = vmatprep.subr.bf16.mxu0 0
      %2195 = vmatpush1.bf16.msra.mxu0 0
      %2196 = vmatprep.subr.bf16.mxu0 0
      %2197 = vmatpush1.bf16.msra.mxu0 0
      %2198 = vmatprep.subr.bf16.mxu0 0
      %2199 = vmatpush1.bf16.msra.mxu0 0
      %2200 = vmatprep.mubr.bf16.mxu0 0
      %2201 = vmatmul.mubr.bf16.gmra.mrb[0].mxu0 %v2136
      %v2202 = vpop.f32.mrb[0].mxu0
      %v2203 = vadd.f32 %v1950, %v2202
      %v2204 = vpop.f32.mrb[0].mxu0
      %v2205 = vpop.f32.mrb[0].mxu0
      %v2206 = vadd.f32 %v1953, %v2205
      %v2207 = vpop.f32.mrb[0].mxu0
      %2208 = vmatprep.mubr.bf16.mxu0 0
      %2209 = vmatmul.mubr.bf16.gmra.mrb[0].mxu0 %v2139
      %v2210 = vpop.f32.mrb[0].mxu0
      %v2211 = vadd.f32 %v1958, %v2210
      %v2212 = vpop.f32.mrb[0].mxu0
      %v2213 = vpop.f32.mrb[0].mxu0
      %v2214 = vadd.f32 %v1961, %v2213
      %v2215 = vpop.f32.mrb[0].mxu0
      %2216 = vmatprep.mubr.bf16.mxu0 0
      %2217 = vmatmul.mubr.bf16.gmra.mrb[0].mxu0 %v2142
      %v2218 = vpop.f32.mrb[0].mxu0
      %v2219 = vadd.f32 %v1966, %v2218
      %v2220 = vpop.f32.mrb[0].mxu0
      %v2221 = vpop.f32.mrb[0].mxu0
      %v2222 = vadd.f32 %v1969, %v2221
      %v2223 = vpop.f32.mrb[0].mxu0
      %2224 = vmatprep.mubr.bf16.mxu0 0
      %2225 = vmatmul.mubr.bf16.gmra.mrb[0].mxu0 %v2145
      %v2226 = vpop.f32.mrb[0].mxu0
      %v2227 = vadd.f32 %v1974, %v2226
      %v2228 = vpop.f32.mrb[0].mxu0
      %v2229 = vpop.f32.mrb[0].mxu0
      %v2230 = vadd.f32 %v1977, %v2229
      %v2231 = vpop.f32.mrb[0].mxu0
      %2232 = vmatprep.mubr.bf16.mxu0 0
      %2233 = vmatmul.mubr.bf16.gmra.mrb[0].mxu0 %v2148
      %v2234 = vpop.f32.mrb[0].mxu0
      %v2235 = vadd.f32 %v1982, %v2234
      %v2236 = vpop.f32.mrb[0].mxu0
      %v2237 = vpop.f32.mrb[0].mxu0
      %v2238 = vadd.f32 %v1985, %v2237
      %v2239 = vpop.f32.mrb[0].mxu0
      %2240 = vmatprep.mubr.bf16.mxu0 0
      %2241 = vmatmul.mubr.bf16.gmra.mrb[0].mxu0 %v2151
      %v2242 = vpop.f32.mrb[0].mxu0
      %v2243 = vadd.f32 %v1990, %v2242
      %v2244 = vpop.f32.mrb[0].mxu0
      %v2245 = vpop.f32.mrb[0].mxu0
      %v2246 = vadd.f32 %v1993, %v2245
      %v2247 = vpop.f32.mrb[0].mxu0
      %2248 = vmatprep.mubr.bf16.mxu0 0
      %2249 = vmatmul.mubr.bf16.gmra.mrb[0].mxu0 %v2154
      %v2250 = vpop.f32.mrb[0].mxu0
      %v2251 = vadd.f32 %v1998, %v2250
      %v2252 = vpop.f32.mrb[0].mxu0
      %v2253 = vpop.f32.mrb[0].mxu0
      %v2254 = vadd.f32 %v2001, %v2253
      %v2255 = vpop.f32.mrb[0].mxu0
      %2256 = vmatprep.mubr.bf16.mxu0 0
      %2257 = vmatmul.mubr.bf16.gmra.mrb[0].mxu0 %v2157
      %v2258 = vpop.f32.mrb[0].mxu0
      %v2259 = vadd.f32 %v2006, %v2258
      %v2260 = vpop.f32.mrb[0].mxu0
      %v2261 = vpop.f32.mrb[0].mxu0
      %v2262 = vadd.f32 %v2009, %v2261
      %v2263 = vpop.f32.mrb[0].mxu0
      %2264 = vmatprep.mubr.bf16.mxu0 0
      %2265 = vmatmul.mubr.bf16.gmra.mrb[0].mxu0 %v2160
      %v2266 = vpop.f32.mrb[0].mxu0
      %v2267 = vadd.f32 %v2014, %v2266
      %v2268 = vpop.f32.mrb[0].mxu0
      %v2269 = vpop.f32.mrb[0].mxu0
      %v2270 = vadd.f32 %v2017, %v2269
      %v2271 = vpop.f32.mrb[0].mxu0
      %2272 = vmatprep.mubr.bf16.mxu0 0
      %2273 = vmatmul.mubr.bf16.gmra.mrb[0].mxu0 %v2163
      %v2274 = vpop.f32.mrb[0].mxu0
      %v2275 = vadd.f32 %v2022, %v2274
      %v2276 = vpop.f32.mrb[0].mxu0
      %v2277 = vpop.f32.mrb[0].mxu0
      %v2278 = vadd.f32 %v2025, %v2277
      %v2279 = vpop.f32.mrb[0].mxu0
      %2280 = vmatprep.mubr.bf16.mxu0 0
      %2281 = vmatmul.mubr.bf16.gmra.mrb[0].mxu0 %v2166
      %v2282 = vpop.f32.mrb[0].mxu0
      %v2283 = vadd.f32 %v2030, %v2282
      %v2284 = vpop.f32.mrb[0].mxu0
      %v2285 = vpop.f32.mrb[0].mxu0
      %v2286 = vadd.f32 %v2033, %v2285
      %v2287 = vpop.f32.mrb[0].mxu0
      %2288 = vdwg.mxu0
      %s2289 = scalar_lea.vmem %s4, 16
      %v2290 = vld [vmem:[%s2289] sm:$0xf]
      %v2291 = vld [vmem:[%s2289 + $0x4] sm:$0xf]
      %vm2292 = vsmask.f32 6400
      %v2293 = vrot.slane %v2038, 1
      %v2294 = vrot.slane %v2040, 2
      %v2295 = vor.u32 %v2293, %v2294
      %v2296 = vrot.slane %v2049, 1
      %v2297 = vrot.slane %v2045, 2
      %v2298 = vor.u32 %v2296, %v2297
      %v2299 = vsel %vm2292, %v2295, %v2298
      %v2300 = vrot.slane %v2057, 1
      %v2301 = vrot.slane %v2053, 2
      %v2302 = vor.u32 %v2300, %v2301
      %v2303 = vsel %vm2292, %v2298, %v2302
      %v2304 = vrot.slane %v2065, 1
      %v2305 = vrot.slane %v2061, 2
      %v2306 = vor.u32 %v2304, %v2305
      %v2307 = vsel %vm2292, %v2302, %v2306
      %v2308 = vrot.slane %v2073, 1
      %v2309 = vrot.slane %v2069, 2
      %v2310 = vor.u32 %v2308, %v2309
      %v2311 = vsel %vm2292, %v2306, %v2310
      %v2312 = vrot.slane %v2081, 1
      %v2313 = vrot.slane %v2077, 2
      %v2314 = vor.u32 %v2312, %v2313
      %v2315 = vsel %vm2292, %v2310, %v2314
      %v2316 = vrot.slane %v2089, 1
      %v2317 = vrot.slane %v2085, 2
      %v2318 = vor.u32 %v2316, %v2317
      %v2319 = vsel %vm2292, %v2314, %v2318
      %v2320 = vrot.slane %v2097, 1
      %v2321 = vrot.slane %v2093, 2
      %v2322 = vor.u32 %v2320, %v2321
      %v2323 = vsel %vm2292, %v2318, %v2322
      %v2324 = vrot.slane %v2105, 1
      %v2325 = vrot.slane %v2101, 2
      %v2326 = vor.u32 %v2324, %v2325
      %v2327 = vsel %vm2292, %v2322, %v2326
      %v2328 = vrot.slane %v2113, 1
      %v2329 = vrot.slane %v2109, 2
      %v2330 = vor.u32 %v2328, %v2329
      %v2331 = vsel %vm2292, %v2326, %v2330
      %v2332 = vrot.slane %v2121, 1
      %v2333 = vrot.slane %v2117, 2
      %v2334 = vor.u32 %v2332, %v2333
      %v2335 = vsel %vm2292, %v2330, %v2334
      %v2336 = vshrl.u32 %v1831, 16
      %v2338 = vrot.slane %v2336, 1
      %v2339 = vrot.slane %v2125, 2
      %v2340 = vor.u32 %v2338, %v2339
      %v2341 = vsel %vm2292, %v2334, %v2340
      %v2344 = vunpack.c.l.b16 %v2290
      %v2345 = vunpack.c.l.b16 %v2291
      %v2346 = vpack.c.b16 %v2345, %v2344
      %v2349 = vsel %vm1881, %v2299, 0
      %v2352 = vsel %vm1881, %v2303, 0
      %v2355 = vsel %vm1881, %v2307, 0
      %v2358 = vsel %vm1881, %v2311, 0
      %v2361 = vsel %vm1881, %v2315, 0
      %v2364 = vsel %vm1881, %v2319, 0
      %v2367 = vsel %vm1881, %v2323, 0
      %v2370 = vsel %vm1881, %v2327, 0
      %v2373 = vsel %vm1881, %v2331, 0
      %v2376 = vsel %vm1881, %v2335, 0
      %v2379 = vsel %vm1881, %v2341, 0
      %2381 = vmatprep.subr.bf16.mxu0 0
      %2382 = vmatpush1.bf16.msra.mxu0 %v2346
      %2383 = vmatprep.subr.bf16.mxu0 0
      %2384 = vmatpush1.bf16.msra.mxu0 0
      %2385 = vmatprep.subr.bf16.mxu0 0
      %2386 = vmatpush1.bf16.msra.mxu0 0
      %2387 = vmatprep.subr.bf16.mxu0 0
      %2388 = vmatpush1.bf16.msra.mxu0 0
      %2389 = vmatprep.subr.bf16.mxu0 0
      %2390 = vmatpush1.bf16.msra.mxu0 0
      %2391 = vmatprep.subr.bf16.mxu0 0
      %2392 = vmatpush1.bf16.msra.mxu0 0
      %2393 = vmatprep.subr.bf16.mxu0 0
      %2394 = vmatpush1.bf16.msra.mxu0 0
      %2395 = vmatprep.subr.bf16.mxu0 0
      %2396 = vmatpush1.bf16.msra.mxu0 0
      %2397 = vmatprep.subr.bf16.mxu0 0
      %2398 = vmatpush1.bf16.msra.mxu0 0
      %2399 = vmatprep.subr.bf16.mxu0 0
      %2400 = vmatpush1.bf16.msra.mxu0 0
      %2401 = vmatprep.subr.bf16.mxu0 0
      %2402 = vmatpush1.bf16.msra.mxu0 0
      %2403 = vmatprep.subr.bf16.mxu0 0
      %2404 = vmatpush1.bf16.msra.mxu0 0
      %2405 = vmatprep.subr.bf16.mxu0 0
      %2406 = vmatpush1.bf16.msra.mxu0 0
      %2407 = vmatprep.subr.bf16.mxu0 0
      %2408 = vmatpush1.bf16.msra.mxu0 0
      %2409 = vmatprep.subr.bf16.mxu0 0
      %2410 = vmatpush1.bf16.msra.mxu0 0
      %2411 = vmatprep.subr.bf16.mxu0 0
      %2412 = vmatpush1.bf16.msra.mxu0 0
      %2413 = vmatprep.mubr.bf16.mxu0 0
      %2414 = vmatmul.mubr.bf16.gmra.mrb[0].mxu0 %v2349
      %v2415 = vpop.f32.mrb[0].mxu0
      %v2416 = vadd.f32 0.0, %v2415
      %v2417 = vpop.f32.mrb[0].mxu0
      %v2418 = vpop.f32.mrb[0].mxu0
      %v2419 = vadd.f32 0.0, %v2418
      %v2420 = vpop.f32.mrb[0].mxu0
      %2421 = vmatprep.mubr.bf16.mxu0 0
      %2422 = vmatmul.mubr.bf16.gmra.mrb[0].mxu0 %v2352
      %v2423 = vpop.f32.mrb[0].mxu0
      %v2424 = vadd.f32 0.0, %v2423
      %v2425 = vpop.f32.mrb[0].mxu0
      %v2426 = vpop.f32.mrb[0].mxu0
      %v2427 = vadd.f32 0.0, %v2426
      %v2428 = vpop.f32.mrb[0].mxu0
      %2429 = vmatprep.mubr.bf16.mxu0 0
      %2430 = vmatmul.mubr.bf16.gmra.mrb[0].mxu0 %v2355
      %v2431 = vpop.f32.mrb[0].mxu0
      %v2432 = vadd.f32 0.0, %v2431
      %v2433 = vpop.f32.mrb[0].mxu0
      %v2434 = vpop.f32.mrb[0].mxu0
      %v2435 = vadd.f32 0.0, %v2434
      %v2436 = vpop.f32.mrb[0].mxu0
      %2437 = vmatprep.mubr.bf16.mxu0 0
      %2438 = vmatmul.mubr.bf16.gmra.mrb[0].mxu0 %v2358
      %v2439 = vpop.f32.mrb[0].mxu0
      %v2440 = vadd.f32 0.0, %v2439
      %v2441 = vpop.f32.mrb[0].mxu0
      %v2442 = vpop.f32.mrb[0].mxu0
      %v2443 = vadd.f32 0.0, %v2442
      %v2444 = vpop.f32.mrb[0].mxu0
      %2445 = vmatprep.mubr.bf16.mxu0 0
      %2446 = vmatmul.mubr.bf16.gmra.mrb[0].mxu0 %v2361
      %v2447 = vpop.f32.mrb[0].mxu0
      %v2448 = vadd.f32 0.0, %v2447
      %v2449 = vpop.f32.mrb[0].mxu0
      %v2450 = vpop.f32.mrb[0].mxu0
      %v2451 = vadd.f32 0.0, %v2450
      %v2452 = vpop.f32.mrb[0].mxu0
      %2453 = vmatprep.mubr.bf16.mxu0 0
      %2454 = vmatmul.mubr.bf16.gmra.mrb[0].mxu0 %v2364
      %v2455 = vpop.f32.mrb[0].mxu0
      %v2456 = vadd.f32 0.0, %v2455
      %v2457 = vpop.f32.mrb[0].mxu0
      %v2458 = vpop.f32.mrb[0].mxu0
      %v2459 = vadd.f32 0.0, %v2458
      %v2460 = vpop.f32.mrb[0].mxu0
      %2461 = vmatprep.mubr.bf16.mxu0 0
      %2462 = vmatmul.mubr.bf16.gmra.mrb[0].mxu0 %v2367
      %v2463 = vpop.f32.mrb[0].mxu0
      %v2464 = vadd.f32 0.0, %v2463
      %v2465 = vpop.f32.mrb[0].mxu0
      %v2466 = vpop.f32.mrb[0].mxu0
      %v2467 = vadd.f32 0.0, %v2466
      %v2468 = vpop.f32.mrb[0].mxu0
      %2469 = vmatprep.mubr.bf16.mxu0 0
      %2470 = vmatmul.mubr.bf16.gmra.mrb[0].mxu0 %v2370
      %v2471 = vpop.f32.mrb[0].mxu0
      %v2472 = vadd.f32 0.0, %v2471
      %v2473 = vpop.f32.mrb[0].mxu0
      %v2474 = vpop.f32.mrb[0].mxu0
      %v2475 = vadd.f32 0.0, %v2474
      %v2476 = vpop.f32.mrb[0].mxu0
      %2477 = vmatprep.mubr.bf16.mxu0 0
      %2478 = vmatmul.mubr.bf16.gmra.mrb[0].mxu0 %v2373
      %v2479 = vpop.f32.mrb[0].mxu0
      %v2480 = vadd.f32 0.0, %v2479
      %v2481 = vpop.f32.mrb[0].mxu0
      %v2482 = vpop.f32.mrb[0].mxu0
      %v2483 = vadd.f32 0.0, %v2482
      %v2484 = vpop.f32.mrb[0].mxu0
      %2485 = vmatprep.mubr.bf16.mxu0 0
      %2486 = vmatmul.mubr.bf16.gmra.mrb[0].mxu0 %v2376
      %v2487 = vpop.f32.mrb[0].mxu0
      %v2488 = vadd.f32 0.0, %v2487
      %v2489 = vpop.f32.mrb[0].mxu0
      %v2490 = vpop.f32.mrb[0].mxu0
      %v2491 = vadd.f32 0.0, %v2490
      %v2492 = vpop.f32.mrb[0].mxu0
      %2493 = vmatprep.mubr.bf16.mxu0 0
      %2494 = vmatmul.mubr.bf16.gmra.mrb[0].mxu0 %v2379
      %v2495 = vpop.f32.mrb[0].mxu0
      %v2496 = vadd.f32 0.0, %v2495
      %v2497 = vpop.f32.mrb[0].mxu0
      %v2498 = vpop.f32.mrb[0].mxu0
      %v2499 = vadd.f32 0.0, %v2498
      %v2500 = vpop.f32.mrb[0].mxu0
      %2501 = vdwg.mxu0
      %v2502 = vadd.f32 %v2203, %v2416
      %v2503 = vadd.f32 %v2206, %v2419
      %v2504 = vadd.f32 %v2211, %v2424
      %v2505 = vadd.f32 %v2214, %v2427
      %v2506 = vadd.f32 %v2219, %v2432
      %v2507 = vadd.f32 %v2222, %v2435
      %v2508 = vadd.f32 %v2227, %v2440
      %v2509 = vadd.f32 %v2230, %v2443
      %v2510 = vadd.f32 %v2235, %v2448
      %v2511 = vadd.f32 %v2238, %v2451
      %v2512 = vadd.f32 %v2243, %v2456
      %v2513 = vadd.f32 %v2246, %v2459
      %v2514 = vadd.f32 %v2251, %v2464
      %v2515 = vadd.f32 %v2254, %v2467
      %v2516 = vadd.f32 %v2259, %v2472
      %v2517 = vadd.f32 %v2262, %v2475
      %v2518 = vadd.f32 %v2267, %v2480
      %v2519 = vadd.f32 %v2270, %v2483
      %v2520 = vadd.f32 %v2275, %v2488
      %v2521 = vadd.f32 %v2278, %v2491
      %v2522 = vadd.f32 %v2283, %v2496
      %v2523 = vadd.f32 %v2286, %v2499
      %s2524 = scalar_lea.vmem %s4, 24
      %v2525 = vld [vmem:[%s2524] sm:$0xf]
      %v2526 = vld [vmem:[%s2524 + $0x4] sm:$0xf]
      %v2528 = vshrl.u32 %v1832, 16
      %v2530 = vrot.slane %v2528, 1
      %v2531 = vshll.u32 %v1832, 16
      %v2533 = vrot.slane %v2531, 2
      %v2534 = vor.u32 %v2530, %v2533
      %v2535 = vsel %vm2292, %v2340, %v2534
      %v2538 = vunpack.c.l.b16 %v2525
      %v2539 = vunpack.c.l.b16 %v2526
      %v2540 = vpack.c.b16 %v2539, %v2538
      %v2543 = vsel %vm1881, %v2535, 0
      %2545 = vmatprep.subr.bf16.mxu0 0
      %2546 = vmatpush1.bf16.msra.mxu0 %v2540
      %2547 = vmatprep.subr.bf16.mxu0 0
      %2548 = vmatpush1.bf16.msra.mxu0 0
      %2549 = vmatprep.subr.bf16.mxu0 0
      %2550 = vmatpush1.bf16.msra.mxu0 0
      %2551 = vmatprep.subr.bf16.mxu0 0
      %2552 = vmatpush1.bf16.msra.mxu0 0
      %2553 = vmatprep.subr.bf16.mxu0 0
      %2554 = vmatpush1.bf16.msra.mxu0 0
      %2555 = vmatprep.subr.bf16.mxu0 0
      %2556 = vmatpush1.bf16.msra.mxu0 0
      %2557 = vmatprep.subr.bf16.mxu0 0
      %2558 = vmatpush1.bf16.msra.mxu0 0
      %2559 = vmatprep.subr.bf16.mxu0 0
      %2560 = vmatpush1.bf16.msra.mxu0 0
      %2561 = vmatprep.subr.bf16.mxu0 0
      %2562 = vmatpush1.bf16.msra.mxu0 0
      %2563 = vmatprep.subr.bf16.mxu0 0
      %2564 = vmatpush1.bf16.msra.mxu0 0
      %2565 = vmatprep.subr.bf16.mxu0 0
      %2566 = vmatpush1.bf16.msra.mxu0 0
      %2567 = vmatprep.subr.bf16.mxu0 0
      %2568 = vmatpush1.bf16.msra.mxu0 0
      %2569 = vmatprep.subr.bf16.mxu0 0
      %2570 = vmatpush1.bf16.msra.mxu0 0
      %2571 = vmatprep.subr.bf16.mxu0 0
      %2572 = vmatpush1.bf16.msra.mxu0 0
      %2573 = vmatprep.subr.bf16.mxu0 0
      %2574 = vmatpush1.bf16.msra.mxu0 0
      %2575 = vmatprep.subr.bf16.mxu0 0
      %2576 = vmatpush1.bf16.msra.mxu0 0
      %2577 = vmatprep.mubr.bf16.mxu0 0
      %2578 = vmatmul.mubr.bf16.gmra.mrb[0].mxu0 %v2352
      %v2579 = vpop.f32.mrb[0].mxu0
      %v2580 = vadd.f32 0.0, %v2579
      %v2581 = vpop.f32.mrb[0].mxu0
      %v2582 = vpop.f32.mrb[0].mxu0
      %v2583 = vadd.f32 0.0, %v2582
      %v2584 = vpop.f32.mrb[0].mxu0
      %2585 = vmatprep.mubr.bf16.mxu0 0
      %2586 = vmatmul.mubr.bf16.gmra.mrb[0].mxu0 %v2355
      %v2587 = vpop.f32.mrb[0].mxu0
      %v2588 = vadd.f32 0.0, %v2587
      %v2589 = vpop.f32.mrb[0].mxu0
      %v2590 = vpop.f32.mrb[0].mxu0
      %v2591 = vadd.f32 0.0, %v2590
      %v2592 = vpop.f32.mrb[0].mxu0
      %2593 = vmatprep.mubr.bf16.mxu0 0
      %2594 = vmatmul.mubr.bf16.gmra.mrb[0].mxu0 %v2358
      %v2595 = vpop.f32.mrb[0].mxu0
      %v2596 = vadd.f32 0.0, %v2595
      %v2597 = vpop.f32.mrb[0].mxu0
      %v2598 = vpop.f32.mrb[0].mxu0
      %v2599 = vadd.f32 0.0, %v2598
      %v2600 = vpop.f32.mrb[0].mxu0
      %2601 = vmatprep.mubr.bf16.mxu0 0
      %2602 = vmatmul.mubr.bf16.gmra.mrb[0].mxu0 %v2361
      %v2603 = vpop.f32.mrb[0].mxu0
      %v2604 = vadd.f32 0.0, %v2603
      %v2605 = vpop.f32.mrb[0].mxu0
      %v2606 = vpop.f32.mrb[0].mxu0
      %v2607 = vadd.f32 0.0, %v2606
      %v2608 = vpop.f32.mrb[0].mxu0
      %2609 = vmatprep.mubr.bf16.mxu0 0
      %2610 = vmatmul.mubr.bf16.gmra.mrb[0].mxu0 %v2364
      %v2611 = vpop.f32.mrb[0].mxu0
      %v2612 = vadd.f32 0.0, %v2611
      %v2613 = vpop.f32.mrb[0].mxu0
      %v2614 = vpop.f32.mrb[0].mxu0
      %v2615 = vadd.f32 0.0, %v2614
      %v2616 = vpop.f32.mrb[0].mxu0
      %2617 = vmatprep.mubr.bf16.mxu0 0
      %2618 = vmatmul.mubr.bf16.gmra.mrb[0].mxu0 %v2367
      %v2619 = vpop.f32.mrb[0].mxu0
      %v2620 = vadd.f32 0.0, %v2619
      %v2621 = vpop.f32.mrb[0].mxu0
      %v2622 = vpop.f32.mrb[0].mxu0
      %v2623 = vadd.f32 0.0, %v2622
      %v2624 = vpop.f32.mrb[0].mxu0
      %2625 = vmatprep.mubr.bf16.mxu0 0
      %2626 = vmatmul.mubr.bf16.gmra.mrb[0].mxu0 %v2370
      %v2627 = vpop.f32.mrb[0].mxu0
      %v2628 = vadd.f32 0.0, %v2627
      %v2629 = vpop.f32.mrb[0].mxu0
      %v2630 = vpop.f32.mrb[0].mxu0
      %v2631 = vadd.f32 0.0, %v2630
      %v2632 = vpop.f32.mrb[0].mxu0
      %2633 = vmatprep.mubr.bf16.mxu0 0
      %2634 = vmatmul.mubr.bf16.gmra.mrb[0].mxu0 %v2373
      %v2635 = vpop.f32.mrb[0].mxu0
      %v2636 = vadd.f32 0.0, %v2635
      %v2637 = vpop.f32.mrb[0].mxu0
      %v2638 = vpop.f32.mrb[0].mxu0
      %v2639 = vadd.f32 0.0, %v2638
      %v2640 = vpop.f32.mrb[0].mxu0
      %2641 = vmatprep.mubr.bf16.mxu0 0
      %2642 = vmatmul.mubr.bf16.gmra.mrb[0].mxu0 %v2376
      %v2643 = vpop.f32.mrb[0].mxu0
      %v2644 = vadd.f32 0.0, %v2643
      %v2645 = vpop.f32.mrb[0].mxu0
      %v2646 = vpop.f32.mrb[0].mxu0
      %v2647 = vadd.f32 0.0, %v2646
      %v2648 = vpop.f32.mrb[0].mxu0
      %2649 = vmatprep.mubr.bf16.mxu0 0
      %2650 = vmatmul.mubr.bf16.gmra.mrb[0].mxu0 %v2379
      %v2651 = vpop.f32.mrb[0].mxu0
      %v2652 = vadd.f32 0.0, %v2651
      %v2653 = vpop.f32.mrb[0].mxu0
      %v2654 = vpop.f32.mrb[0].mxu0
      %v2655 = vadd.f32 0.0, %v2654
      %v2656 = vpop.f32.mrb[0].mxu0
      %2657 = vmatprep.mubr.bf16.mxu0 0
      %2658 = vmatmul.mubr.bf16.gmra.mrb[0].mxu0 %v2543
      %v2659 = vpop.f32.mrb[0].mxu0
      %v2660 = vadd.f32 0.0, %v2659
      %v2661 = vpop.f32.mrb[0].mxu0
      %v2662 = vpop.f32.mrb[0].mxu0
      %v2663 = vadd.f32 0.0, %v2662
      %v2664 = vpop.f32.mrb[0].mxu0
      %2665 = vdwg.mxu0
      %v2666 = vadd.f32 %v2502, %v2580
      %v2667 = vadd.f32 %v2503, %v2583
      %v2668 = vadd.f32 %v2504, %v2588
      %v2669 = vadd.f32 %v2505, %v2591
      %v2670 = vadd.f32 %v2506, %v2596
      %v2671 = vadd.f32 %v2507, %v2599
      %v2672 = vadd.f32 %v2508, %v2604
      %v2673 = vadd.f32 %v2509, %v2607
      %v2674 = vadd.f32 %v2510, %v2612
      %v2675 = vadd.f32 %v2511, %v2615
      %v2676 = vadd.f32 %v2512, %v2620
      %v2677 = vadd.f32 %v2513, %v2623
      %v2678 = vadd.f32 %v2514, %v2628
      %v2679 = vadd.f32 %v2515, %v2631
      %v2680 = vadd.f32 %v2516, %v2636
      %v2681 = vadd.f32 %v2517, %v2639
      %v2682 = vadd.f32 %v2518, %v2644
      %v2683 = vadd.f32 %v2519, %v2647
      %v2684 = vadd.f32 %v2520, %v2652
      %v2685 = vadd.f32 %v2521, %v2655
      %v2686 = vadd.f32 %v2522, %v2660
      %v2687 = vadd.f32 %v2523, %v2663
      %s2688 = scalar_lea.vmem %s4, 32
      %v2689 = vld [vmem:[%s2688] sm:$0xf]
      %v2690 = vld [vmem:[%s2688 + $0x4] sm:$0xf]
      %vm2692 = vcmask 1045504
      %v2693 = vrot.slane %v1821, 2
      %v2694 = vrot.slane %v1822, 2
      %v2695 = vsel %vm2692, %v2693, %v2694
      %v2696 = vrot.slane %v1823, 2
      %v2697 = vsel %vm2692, %v2694, %v2696
      %v2698 = vrot.slane %v1824, 2
      %v2699 = vsel %vm2692, %v2696, %v2698
      %v2700 = vrot.slane %v1825, 2
      %v2701 = vsel %vm2692, %v2698, %v2700
      %v2702 = vrot.slane %v1826, 2
      %v2703 = vsel %vm2692, %v2700, %v2702
      %v2704 = vrot.slane %v1827, 2
      %v2705 = vsel %vm2692, %v2702, %v2704
      %v2706 = vrot.slane %v1828, 2
      %v2707 = vsel %vm2692, %v2704, %v2706
      %v2708 = vrot.slane %v1829, 2
      %v2709 = vsel %vm2692, %v2706, %v2708
      %v2710 = vrot.slane %v1830, 2
      %v2711 = vsel %vm2692, %v2708, %v2710
      %v2712 = vrot.slane %v1831, 2
      %v2713 = vsel %vm2692, %v2710, %v2712
      %v2714 = vrot.slane %v1832, 2
      %v2715 = vsel %vm2692, %v2712, %v2714
      %v2718 = vunpack.c.l.b16 %v2689
      %v2719 = vunpack.c.l.b16 %v2690
      %v2720 = vpack.c.b16 %v2719, %v2718
      %v2723 = vsel %vm1881, %v2695, 0
      %v2726 = vsel %vm1881, %v2697, 0
      %v2729 = vsel %vm1881, %v2699, 0
      %v2732 = vsel %vm1881, %v2701, 0
      %v2735 = vsel %vm1881, %v2703, 0
      %v2738 = vsel %vm1881, %v2705, 0
      %v2741 = vsel %vm1881, %v2707, 0
      %v2744 = vsel %vm1881, %v2709, 0
      %v2747 = vsel %vm1881, %v2711, 0
      %v2750 = vsel %vm1881, %v2713, 0
      %v2753 = vsel %vm1881, %v2715, 0
      %2755 = vmatprep.subr.bf16.mxu0 0
      %2756 = vmatpush1.bf16.msra.mxu0 %v2720
      %2757 = vmatprep.subr.bf16.mxu0 0
      %2758 = vmatpush1.bf16.msra.mxu0 0
      %2759 = vmatprep.subr.bf16.mxu0 0
      %2760 = vmatpush1.bf16.msra.mxu0 0
      %2761 = vmatprep.subr.bf16.mxu0 0
      %2762 = vmatpush1.bf16.msra.mxu0 0
      %2763 = vmatprep.subr.bf16.mxu0 0
      %2764 = vmatpush1.bf16.msra.mxu0 0
      %2765 = vmatprep.subr.bf16.mxu0 0
      %2766 = vmatpush1.bf16.msra.mxu0 0
      %2767 = vmatprep.subr.bf16.mxu0 0
      %2768 = vmatpush1.bf16.msra.mxu0 0
      %2769 = vmatprep.subr.bf16.mxu0 0
      %2770 = vmatpush1.bf16.msra.mxu0 0
      %2771 = vmatprep.subr.bf16.mxu0 0
      %2772 = vmatpush1.bf16.msra.mxu0 0
      %2773 = vmatprep.subr.bf16.mxu0 0
      %2774 = vmatpush1.bf16.msra.mxu0 0
      %2775 = vmatprep.subr.bf16.mxu0 0
      %2776 = vmatpush1.bf16.msra.mxu0 0
      %2777 = vmatprep.subr.bf16.mxu0 0
      %2778 = vmatpush1.bf16.msra.mxu0 0
      %2779 = vmatprep.subr.bf16.mxu0 0
      %2780 = vmatpush1.bf16.msra.mxu0 0
      %2781 = vmatprep.subr.bf16.mxu0 0
      %2782 = vmatpush1.bf16.msra.mxu0 0
      %2783 = vmatprep.subr.bf16.mxu0 0
      %2784 = vmatpush1.bf16.msra.mxu0 0
      %2785 = vmatprep.subr.bf16.mxu0 0
      %2786 = vmatpush1.bf16.msra.mxu0 0
      %2787 = vmatprep.mubr.bf16.mxu0 0
      %2788 = vmatmul.mubr.bf16.gmra.mrb[0].mxu0 %v2723
      %v2789 = vpop.f32.mrb[0].mxu0
      %v2790 = vadd.f32 0.0, %v2789
      %v2791 = vpop.f32.mrb[0].mxu0
      %v2792 = vpop.f32.mrb[0].mxu0
      %v2793 = vadd.f32 0.0, %v2792
      %v2794 = vpop.f32.mrb[0].mxu0
      %2795 = vmatprep.mubr.bf16.mxu0 0
      %2796 = vmatmul.mubr.bf16.gmra.mrb[0].mxu0 %v2726
      %v2797 = vpop.f32.mrb[0].mxu0
      %v2798 = vadd.f32 0.0, %v2797
      %v2799 = vpop.f32.mrb[0].mxu0
      %v2800 = vpop.f32.mrb[0].mxu0
      %v2801 = vadd.f32 0.0, %v2800
      %v2802 = vpop.f32.mrb[0].mxu0
      %2803 = vmatprep.mubr.bf16.mxu0 0
      %2804 = vmatmul.mubr.bf16.gmra.mrb[0].mxu0 %v2729
      %v2805 = vpop.f32.mrb[0].mxu0
      %v2806 = vadd.f32 0.0, %v2805
      %v2807 = vpop.f32.mrb[0].mxu0
      %v2808 = vpop.f32.mrb[0].mxu0
      %v2809 = vadd.f32 0.0, %v2808
      %v2810 = vpop.f32.mrb[0].mxu0
      %2811 = vmatprep.mubr.bf16.mxu0 0
      %2812 = vmatmul.mubr.bf16.gmra.mrb[0].mxu0 %v2732
      %v2813 = vpop.f32.mrb[0].mxu0
      %v2814 = vadd.f32 0.0, %v2813
      %v2815 = vpop.f32.mrb[0].mxu0
      %v2816 = vpop.f32.mrb[0].mxu0
      %v2817 = vadd.f32 0.0, %v2816
      %v2818 = vpop.f32.mrb[0].mxu0
      %2819 = vmatprep.mubr.bf16.mxu0 0
      %2820 = vmatmul.mubr.bf16.gmra.mrb[0].mxu0 %v2735
      %v2821 = vpop.f32.mrb[0].mxu0
      %v2822 = vadd.f32 0.0, %v2821
      %v2823 = vpop.f32.mrb[0].mxu0
      %v2824 = vpop.f32.mrb[0].mxu0
      %v2825 = vadd.f32 0.0, %v2824
      %v2826 = vpop.f32.mrb[0].mxu0
      %2827 = vmatprep.mubr.bf16.mxu0 0
      %2828 = vmatmul.mubr.bf16.gmra.mrb[0].mxu0 %v2738
      %v2829 = vpop.f32.mrb[0].mxu0
      %v2830 = vadd.f32 0.0, %v2829
      %v2831 = vpop.f32.mrb[0].mxu0
      %v2832 = vpop.f32.mrb[0].mxu0
      %v2833 = vadd.f32 0.0, %v2832
      %v2834 = vpop.f32.mrb[0].mxu0
      %2835 = vmatprep.mubr.bf16.mxu0 0
      %2836 = vmatmul.mubr.bf16.gmra.mrb[0].mxu0 %v2741
      %v2837 = vpop.f32.mrb[0].mxu0
      %v2838 = vadd.f32 0.0, %v2837
      %v2839 = vpop.f32.mrb[0].mxu0
      %v2840 = vpop.f32.mrb[0].mxu0
      %v2841 = vadd.f32 0.0, %v2840
      %v2842 = vpop.f32.mrb[0].mxu0
      %2843 = vmatprep.mubr.bf16.mxu0 0
      %2844 = vmatmul.mubr.bf16.gmra.mrb[0].mxu0 %v2744
      %v2845 = vpop.f32.mrb[0].mxu0
      %v2846 = vadd.f32 0.0, %v2845
      %v2847 = vpop.f32.mrb[0].mxu0
      %v2848 = vpop.f32.mrb[0].mxu0
      %v2849 = vadd.f32 0.0, %v2848
      %v2850 = vpop.f32.mrb[0].mxu0
      %2851 = vmatprep.mubr.bf16.mxu0 0
      %2852 = vmatmul.mubr.bf16.gmra.mrb[0].mxu0 %v2747
      %v2853 = vpop.f32.mrb[0].mxu0
      %v2854 = vadd.f32 0.0, %v2853
      %v2855 = vpop.f32.mrb[0].mxu0
      %v2856 = vpop.f32.mrb[0].mxu0
      %v2857 = vadd.f32 0.0, %v2856
      %v2858 = vpop.f32.mrb[0].mxu0
      %2859 = vmatprep.mubr.bf16.mxu0 0
      %2860 = vmatmul.mubr.bf16.gmra.mrb[0].mxu0 %v2750
      %v2861 = vpop.f32.mrb[0].mxu0
      %v2862 = vadd.f32 0.0, %v2861
      %v2863 = vpop.f32.mrb[0].mxu0
      %v2864 = vpop.f32.mrb[0].mxu0
      %v2865 = vadd.f32 0.0, %v2864
      %v2866 = vpop.f32.mrb[0].mxu0
      %2867 = vmatprep.mubr.bf16.mxu0 0
      %2868 = vmatmul.mubr.bf16.gmra.mrb[0].mxu0 %v2753
      %v2869 = vpop.f32.mrb[0].mxu0
      %v2870 = vadd.f32 0.0, %v2869
      %v2871 = vpop.f32.mrb[0].mxu0
      %v2872 = vpop.f32.mrb[0].mxu0
      %v2873 = vadd.f32 0.0, %v2872
      %v2874 = vpop.f32.mrb[0].mxu0
      %2875 = vdwg.mxu0
      %v2876 = vadd.f32 %v2666, %v2790
      %v2877 = vadd.f32 %v2667, %v2793
      %v2878 = vadd.f32 %v2668, %v2798
      %v2879 = vadd.f32 %v2669, %v2801
      %v2880 = vadd.f32 %v2670, %v2806
      %v2881 = vadd.f32 %v2671, %v2809
      %v2882 = vadd.f32 %v2672, %v2814
      %v2883 = vadd.f32 %v2673, %v2817
      %v2884 = vadd.f32 %v2674, %v2822
      %v2885 = vadd.f32 %v2675, %v2825
      %v2886 = vadd.f32 %v2676, %v2830
      %v2887 = vadd.f32 %v2677, %v2833
      %v2888 = vadd.f32 %v2678, %v2838
      %v2889 = vadd.f32 %v2679, %v2841
      %v2890 = vadd.f32 %v2680, %v2846
      %v2891 = vadd.f32 %v2681, %v2849
      %v2892 = vadd.f32 %v2682, %v2854
      %v2893 = vadd.f32 %v2683, %v2857
      %v2894 = vadd.f32 %v2684, %v2862
      %v2895 = vadd.f32 %v2685, %v2865
      %v2896 = vadd.f32 %v2686, %v2870
      %v2897 = vadd.f32 %v2687, %v2873
      %s2898 = scalar_lea.vmem %s4, 40
      %v2899 = vld [vmem:[%s2898] sm:$0xf]
      %v2900 = vld [vmem:[%s2898 + $0x4] sm:$0xf]
      %vm2901 = vsmask.f32 5376
      %v2902 = vrot.slane %v2049, 2
      %v2903 = vrot.slane %v2045, 3
      %v2904 = vor.u32 %v2902, %v2903
      %v2905 = vrot.slane %v2057, 2
      %v2906 = vrot.slane %v2053, 3
      %v2907 = vor.u32 %v2905, %v2906
      %v2908 = vsel %vm2901, %v2904, %v2907
      %v2909 = vrot.slane %v2065, 2
      %v2910 = vrot.slane %v2061, 3
      %v2911 = vor.u32 %v2909, %v2910
      %v2912 = vsel %vm2901, %v2907, %v2911
      %v2913 = vrot.slane %v2073, 2
      %v2914 = vrot.slane %v2069, 3
      %v2915 = vor.u32 %v2913, %v2914
      %v2916 = vsel %vm2901, %v2911, %v2915
      %v2917 = vrot.slane %v2081, 2
      %v2918 = vrot.slane %v2077, 3
      %v2919 = vor.u32 %v2917, %v2918
      %v2920 = vsel %vm2901, %v2915, %v2919
      %v2921 = vrot.slane %v2089, 2
      %v2922 = vrot.slane %v2085, 3
      %v2923 = vor.u32 %v2921, %v2922
      %v2924 = vsel %vm2901, %v2919, %v2923
      %v2925 = vrot.slane %v2097, 2
      %v2926 = vrot.slane %v2093, 3
      %v2927 = vor.u32 %v2925, %v2926
      %v2928 = vsel %vm2901, %v2923, %v2927
      %v2929 = vrot.slane %v2105, 2
      %v2930 = vrot.slane %v2101, 3
      %v2931 = vor.u32 %v2929, %v2930
      %v2932 = vsel %vm2901, %v2927, %v2931
      %v2933 = vrot.slane %v2113, 2
      %v2934 = vrot.slane %v2109, 3
      %v2935 = vor.u32 %v2933, %v2934
      %v2936 = vsel %vm2901, %v2931, %v2935
      %v2937 = vrot.slane %v2121, 2
      %v2938 = vrot.slane %v2117, 3
      %v2939 = vor.u32 %v2937, %v2938
      %v2940 = vsel %vm2901, %v2935, %v2939
      %v2941 = vrot.slane %v2336, 2
      %v2942 = vrot.slane %v2125, 3
      %v2943 = vor.u32 %v2941, %v2942
      %v2944 = vsel %vm2901, %v2939, %v2943
      %v2945 = vrot.slane %v2528, 2
      %v2946 = vrot.slane %v2531, 3
      %v2947 = vor.u32 %v2945, %v2946
      %v2948 = vsel %vm2901, %v2943, %v2947
      %v2951 = vunpack.c.l.b16 %v2899
      %v2952 = vunpack.c.l.b16 %v2900
      %v2953 = vpack.c.b16 %v2952, %v2951
      %v2956 = vsel %vm1881, %v2908, 0
      %v2959 = vsel %vm1881, %v2912, 0
      %v2962 = vsel %vm1881, %v2916, 0
      %v2965 = vsel %vm1881, %v2920, 0
      %v2968 = vsel %vm1881, %v2924, 0
      %v2971 = vsel %vm1881, %v2928, 0
      %v2974 = vsel %vm1881, %v2932, 0
      %v2977 = vsel %vm1881, %v2936, 0
      %v2980 = vsel %vm1881, %v2940, 0
      %v2983 = vsel %vm1881, %v2944, 0
      %v2986 = vsel %vm1881, %v2948, 0
      %2988 = vmatprep.subr.bf16.mxu0 0
      %2989 = vmatpush1.bf16.msra.mxu0 %v2953
      %2990 = vmatprep.subr.bf16.mxu0 0
      %2991 = vmatpush1.bf16.msra.mxu0 0
      %2992 = vmatprep.subr.bf16.mxu0 0
      %2993 = vmatpush1.bf16.msra.mxu0 0
      %2994 = vmatprep.subr.bf16.mxu0 0
      %2995 = vmatpush1.bf16.msra.mxu0 0
      %2996 = vmatprep.subr.bf16.mxu0 0
      %2997 = vmatpush1.bf16.msra.mxu0 0
      %2998 = vmatprep.subr.bf16.mxu0 0
      %2999 = vmatpush1.bf16.msra.mxu0 0
      %3000 = vmatprep.subr.bf16.mxu0 0
      %3001 = vmatpush1.bf16.msra.mxu0 0
      %3002 = vmatprep.subr.bf16.mxu0 0
      %3003 = vmatpush1.bf16.msra.mxu0 0
      %3004 = vmatprep.subr.bf16.mxu0 0
      %3005 = vmatpush1.bf16.msra.mxu0 0
      %3006 = vmatprep.subr.bf16.mxu0 0
      %3007 = vmatpush1.bf16.msra.mxu0 0
      %3008 = vmatprep.subr.bf16.mxu0 0
      %3009 = vmatpush1.bf16.msra.mxu0 0
      %3010 = vmatprep.subr.bf16.mxu0 0
      %3011 = vmatpush1.bf16.msra.mxu0 0
      %3012 = vmatprep.subr.bf16.mxu0 0
      %3013 = vmatpush1.bf16.msra.mxu0 0
      %3014 = vmatprep.subr.bf16.mxu0 0
      %3015 = vmatpush1.bf16.msra.mxu0 0
      %3016 = vmatprep.subr.bf16.mxu0 0
      %3017 = vmatpush1.bf16.msra.mxu0 0
      %3018 = vmatprep.subr.bf16.mxu0 0
      %3019 = vmatpush1.bf16.msra.mxu0 0
      %3020 = vmatprep.mubr.bf16.mxu0 0
      %3021 = vmatmul.mubr.bf16.gmra.mrb[0].mxu0 %v2956
      %v3022 = vpop.f32.mrb[0].mxu0
      %v3023 = vadd.f32 0.0, %v3022
      %v3024 = vpop.f32.mrb[0].mxu0
      %v3025 = vpop.f32.mrb[0].mxu0
      %v3026 = vadd.f32 0.0, %v3025
      %v3027 = vpop.f32.mrb[0].mxu0
      %3028 = vmatprep.mubr.bf16.mxu0 0
      %3029 = vmatmul.mubr.bf16.gmra.mrb[0].mxu0 %v2959
      %v3030 = vpop.f32.mrb[0].mxu0
      %v3031 = vadd.f32 0.0, %v3030
      %v3032 = vpop.f32.mrb[0].mxu0
      %v3033 = vpop.f32.mrb[0].mxu0
      %v3034 = vadd.f32 0.0, %v3033
      %v3035 = vpop.f32.mrb[0].mxu0
      %3036 = vmatprep.mubr.bf16.mxu0 0
      %3037 = vmatmul.mubr.bf16.gmra.mrb[0].mxu0 %v2962
      %v3038 = vpop.f32.mrb[0].mxu0
      %v3039 = vadd.f32 0.0, %v3038
      %v3040 = vpop.f32.mrb[0].mxu0
      %v3041 = vpop.f32.mrb[0].mxu0
      %v3042 = vadd.f32 0.0, %v3041
      %v3043 = vpop.f32.mrb[0].mxu0
      %3044 = vmatprep.mubr.bf16.mxu0 0
      %3045 = vmatmul.mubr.bf16.gmra.mrb[0].mxu0 %v2965
      %v3046 = vpop.f32.mrb[0].mxu0
      %v3047 = vadd.f32 0.0, %v3046
      %v3048 = vpop.f32.mrb[0].mxu0
      %v3049 = vpop.f32.mrb[0].mxu0
      %v3050 = vadd.f32 0.0, %v3049
      %v3051 = vpop.f32.mrb[0].mxu0
      %3052 = vmatprep.mubr.bf16.mxu0 0
      %3053 = vmatmul.mubr.bf16.gmra.mrb[0].mxu0 %v2968
      %v3054 = vpop.f32.mrb[0].mxu0
      %v3055 = vadd.f32 0.0, %v3054
      %v3056 = vpop.f32.mrb[0].mxu0
      %v3057 = vpop.f32.mrb[0].mxu0
      %v3058 = vadd.f32 0.0, %v3057
      %v3059 = vpop.f32.mrb[0].mxu0
      %3060 = vmatprep.mubr.bf16.mxu0 0
      %3061 = vmatmul.mubr.bf16.gmra.mrb[0].mxu0 %v2971
      %v3062 = vpop.f32.mrb[0].mxu0
      %v3063 = vadd.f32 0.0, %v3062
      %v3064 = vpop.f32.mrb[0].mxu0
      %v3065 = vpop.f32.mrb[0].mxu0
      %v3066 = vadd.f32 0.0, %v3065
      %v3067 = vpop.f32.mrb[0].mxu0
      %3068 = vmatprep.mubr.bf16.mxu0 0
      %3069 = vmatmul.mubr.bf16.gmra.mrb[0].mxu0 %v2974
      %v3070 = vpop.f32.mrb[0].mxu0
      %v3071 = vadd.f32 0.0, %v3070
      %v3072 = vpop.f32.mrb[0].mxu0
      %v3073 = vpop.f32.mrb[0].mxu0
      %v3074 = vadd.f32 0.0, %v3073
      %v3075 = vpop.f32.mrb[0].mxu0
      %3076 = vmatprep.mubr.bf16.mxu0 0
      %3077 = vmatmul.mubr.bf16.gmra.mrb[0].mxu0 %v2977
      %v3078 = vpop.f32.mrb[0].mxu0
      %v3079 = vadd.f32 0.0, %v3078
      %v3080 = vpop.f32.mrb[0].mxu0
      %v3081 = vpop.f32.mrb[0].mxu0
      %v3082 = vadd.f32 0.0, %v3081
      %v3083 = vpop.f32.mrb[0].mxu0
      %3084 = vmatprep.mubr.bf16.mxu0 0
      %3085 = vmatmul.mubr.bf16.gmra.mrb[0].mxu0 %v2980
      %v3086 = vpop.f32.mrb[0].mxu0
      %v3087 = vadd.f32 0.0, %v3086
      %v3088 = vpop.f32.mrb[0].mxu0
      %v3089 = vpop.f32.mrb[0].mxu0
      %v3090 = vadd.f32 0.0, %v3089
      %v3091 = vpop.f32.mrb[0].mxu0
      %3092 = vmatprep.mubr.bf16.mxu0 0
      %3093 = vmatmul.mubr.bf16.gmra.mrb[0].mxu0 %v2983
      %v3094 = vpop.f32.mrb[0].mxu0
      %v3095 = vadd.f32 0.0, %v3094
      %v3096 = vpop.f32.mrb[0].mxu0
      %v3097 = vpop.f32.mrb[0].mxu0
      %v3098 = vadd.f32 0.0, %v3097
      %v3099 = vpop.f32.mrb[0].mxu0
      %3100 = vmatprep.mubr.bf16.mxu0 0
      %3101 = vmatmul.mubr.bf16.gmra.mrb[0].mxu0 %v2986
      %v3102 = vpop.f32.mrb[0].mxu0
      %v3103 = vadd.f32 0.0, %v3102
      %v3104 = vpop.f32.mrb[0].mxu0
      %v3105 = vpop.f32.mrb[0].mxu0
      %v3106 = vadd.f32 0.0, %v3105
      %v3107 = vpop.f32.mrb[0].mxu0
      %3108 = vdwg.mxu0
      %v3109 = vadd.f32 %v2876, %v3023
      %v3110 = vadd.f32 %v2877, %v3026
      %v3111 = vadd.f32 %v2878, %v3031
      %v3112 = vadd.f32 %v2879, %v3034
      %v3113 = vadd.f32 %v2880, %v3039
      %v3114 = vadd.f32 %v2881, %v3042
      %v3115 = vadd.f32 %v2882, %v3047
      %v3116 = vadd.f32 %v2883, %v3050
      %v3117 = vadd.f32 %v2884, %v3055
      %v3118 = vadd.f32 %v2885, %v3058
      %v3119 = vadd.f32 %v2886, %v3063
      %v3120 = vadd.f32 %v2887, %v3066
      %v3121 = vadd.f32 %v2888, %v3071
      %v3122 = vadd.f32 %v2889, %v3074
      %v3123 = vadd.f32 %v2890, %v3079
      %v3124 = vadd.f32 %v2891, %v3082
      %v3125 = vadd.f32 %v2892, %v3087
      %v3126 = vadd.f32 %v2893, %v3090
      %v3127 = vadd.f32 %v2894, %v3095
      %v3128 = vadd.f32 %v2895, %v3098
      %v3129 = vadd.f32 %v2896, %v3103
      %v3130 = vadd.f32 %v2897, %v3106
      %s3131 = scalar_lea.vmem %s4, 48
      %v3132 = vld [vmem:[%s3131] sm:$0xf]
      %v3133 = vld [vmem:[%s3131 + $0x4] sm:$0xf]
      %v3135 = vshrl.u32 %v1833, 16
      %v3137 = vrot.slane %v3135, 2
      %v3138 = vshll.u32 %v1833, 16
      %v3140 = vrot.slane %v3138, 3
      %v3141 = vor.u32 %v3137, %v3140
      %v3142 = vsel %vm2901, %v2947, %v3141
      %v3145 = vunpack.c.l.b16 %v3132
      %v3146 = vunpack.c.l.b16 %v3133
      %v3147 = vpack.c.b16 %v3146, %v3145
      %v3150 = vsel %vm1881, %v3142, 0
      %3152 = vmatprep.subr.bf16.mxu0 0
      %3153 = vmatpush1.bf16.msra.mxu0 %v3147
      %3154 = vmatprep.subr.bf16.mxu0 0
      %3155 = vmatpush1.bf16.msra.mxu0 0
      %3156 = vmatprep.subr.bf16.mxu0 0
      %3157 = vmatpush1.bf16.msra.mxu0 0
      %3158 = vmatprep.subr.bf16.mxu0 0
      %3159 = vmatpush1.bf16.msra.mxu0 0
      %3160 = vmatprep.subr.bf16.mxu0 0
      %3161 = vmatpush1.bf16.msra.mxu0 0
      %3162 = vmatprep.subr.bf16.mxu0 0
      %3163 = vmatpush1.bf16.msra.mxu0 0
      %3164 = vmatprep.subr.bf16.mxu0 0
      %3165 = vmatpush1.bf16.msra.mxu0 0
      %3166 = vmatprep.subr.bf16.mxu0 0
      %3167 = vmatpush1.bf16.msra.mxu0 0
      %3168 = vmatprep.subr.bf16.mxu0 0
      %3169 = vmatpush1.bf16.msra.mxu0 0
      %3170 = vmatprep.subr.bf16.mxu0 0
      %3171 = vmatpush1.bf16.msra.mxu0 0
      %3172 = vmatprep.subr.bf16.mxu0 0
      %3173 = vmatpush1.bf16.msra.mxu0 0
      %3174 = vmatprep.subr.bf16.mxu0 0
      %3175 = vmatpush1.bf16.msra.mxu0 0
      %3176 = vmatprep.subr.bf16.mxu0 0
      %3177 = vmatpush1.bf16.msra.mxu0 0
      %3178 = vmatprep.subr.bf16.mxu0 0
      %3179 = vmatpush1.bf16.msra.mxu0 0
      %3180 = vmatprep.subr.bf16.mxu0 0
      %3181 = vmatpush1.bf16.msra.mxu0 0
      %3182 = vmatprep.subr.bf16.mxu0 0
      %3183 = vmatpush1.bf16.msra.mxu0 0
      %3184 = vmatprep.mubr.bf16.mxu0 0
      %3185 = vmatmul.mubr.bf16.gmra.mrb[0].mxu0 %v2959
      %v3186 = vpop.f32.mrb[0].mxu0
      %v3187 = vadd.f32 0.0, %v3186
      %v3188 = vpop.f32.mrb[0].mxu0
      %v3189 = vpop.f32.mrb[0].mxu0
      %v3190 = vadd.f32 0.0, %v3189
      %v3191 = vpop.f32.mrb[0].mxu0
      %3192 = vmatprep.mubr.bf16.mxu0 0
      %3193 = vmatmul.mubr.bf16.gmra.mrb[0].mxu0 %v2962
      %v3194 = vpop.f32.mrb[0].mxu0
      %v3195 = vadd.f32 0.0, %v3194
      %v3196 = vpop.f32.mrb[0].mxu0
      %v3197 = vpop.f32.mrb[0].mxu0
      %v3198 = vadd.f32 0.0, %v3197
      %v3199 = vpop.f32.mrb[0].mxu0
      %3200 = vmatprep.mubr.bf16.mxu0 0
      %3201 = vmatmul.mubr.bf16.gmra.mrb[0].mxu0 %v2965
      %v3202 = vpop.f32.mrb[0].mxu0
      %v3203 = vadd.f32 0.0, %v3202
      %v3204 = vpop.f32.mrb[0].mxu0
      %v3205 = vpop.f32.mrb[0].mxu0
      %v3206 = vadd.f32 0.0, %v3205
      %v3207 = vpop.f32.mrb[0].mxu0
      %3208 = vmatprep.mubr.bf16.mxu0 0
      %3209 = vmatmul.mubr.bf16.gmra.mrb[0].mxu0 %v2968
      %v3210 = vpop.f32.mrb[0].mxu0
      %v3211 = vadd.f32 0.0, %v3210
      %v3212 = vpop.f32.mrb[0].mxu0
      %v3213 = vpop.f32.mrb[0].mxu0
      %v3214 = vadd.f32 0.0, %v3213
      %v3215 = vpop.f32.mrb[0].mxu0
      %3216 = vmatprep.mubr.bf16.mxu0 0
      %3217 = vmatmul.mubr.bf16.gmra.mrb[0].mxu0 %v2971
      %v3218 = vpop.f32.mrb[0].mxu0
      %v3219 = vadd.f32 0.0, %v3218
      %v3220 = vpop.f32.mrb[0].mxu0
      %v3221 = vpop.f32.mrb[0].mxu0
      %v3222 = vadd.f32 0.0, %v3221
      %v3223 = vpop.f32.mrb[0].mxu0
      %3224 = vmatprep.mubr.bf16.mxu0 0
      %3225 = vmatmul.mubr.bf16.gmra.mrb[0].mxu0 %v2974
      %v3226 = vpop.f32.mrb[0].mxu0
      %v3227 = vadd.f32 0.0, %v3226
      %v3228 = vpop.f32.mrb[0].mxu0
      %v3229 = vpop.f32.mrb[0].mxu0
      %v3230 = vadd.f32 0.0, %v3229
      %v3231 = vpop.f32.mrb[0].mxu0
      %3232 = vmatprep.mubr.bf16.mxu0 0
      %3233 = vmatmul.mubr.bf16.gmra.mrb[0].mxu0 %v2977
      %v3234 = vpop.f32.mrb[0].mxu0
      %v3235 = vadd.f32 0.0, %v3234
      %v3236 = vpop.f32.mrb[0].mxu0
      %v3237 = vpop.f32.mrb[0].mxu0
      %v3238 = vadd.f32 0.0, %v3237
      %v3239 = vpop.f32.mrb[0].mxu0
      %3240 = vmatprep.mubr.bf16.mxu0 0
      %3241 = vmatmul.mubr.bf16.gmra.mrb[0].mxu0 %v2980
      %v3242 = vpop.f32.mrb[0].mxu0
      %v3243 = vadd.f32 0.0, %v3242
      %v3244 = vpop.f32.mrb[0].mxu0
      %v3245 = vpop.f32.mrb[0].mxu0
      %v3246 = vadd.f32 0.0, %v3245
      %v3247 = vpop.f32.mrb[0].mxu0
      %3248 = vmatprep.mubr.bf16.mxu0 0
      %3249 = vmatmul.mubr.bf16.gmra.mrb[0].mxu0 %v2983
      %v3250 = vpop.f32.mrb[0].mxu0
      %v3251 = vadd.f32 0.0, %v3250
      %v3252 = vpop.f32.mrb[0].mxu0
      %v3253 = vpop.f32.mrb[0].mxu0
      %v3254 = vadd.f32 0.0, %v3253
      %v3255 = vpop.f32.mrb[0].mxu0
      %3256 = vmatprep.mubr.bf16.mxu0 0
      %3257 = vmatmul.mubr.bf16.gmra.mrb[0].mxu0 %v2986
      %v3258 = vpop.f32.mrb[0].mxu0
      %v3259 = vadd.f32 0.0, %v3258
      %v3260 = vpop.f32.mrb[0].mxu0
      %v3261 = vpop.f32.mrb[0].mxu0
      %v3262 = vadd.f32 0.0, %v3261
      %v3263 = vpop.f32.mrb[0].mxu0
      %3264 = vmatprep.mubr.bf16.mxu0 0
      %3265 = vmatmul.mubr.bf16.gmra.mrb[0].mxu0 %v3150
      %v3266 = vpop.f32.mrb[0].mxu0
      %v3267 = vadd.f32 0.0, %v3266
      %v3268 = vpop.f32.mrb[0].mxu0
      %v3269 = vpop.f32.mrb[0].mxu0
      %v3270 = vadd.f32 0.0, %v3269
      %v3271 = vpop.f32.mrb[0].mxu0
      %3272 = vdwg.mxu0
      %v3273 = vadd.f32 %v3109, %v3187
      %v3274 = vadd.f32 %v3110, %v3190
      %v3275 = vadd.f32 %v3111, %v3195
      %v3276 = vadd.f32 %v3112, %v3198
      %v3277 = vadd.f32 %v3113, %v3203
      %v3278 = vadd.f32 %v3114, %v3206
      %v3279 = vadd.f32 %v3115, %v3211
      %v3280 = vadd.f32 %v3116, %v3214
      %v3281 = vadd.f32 %v3117, %v3219
      %v3282 = vadd.f32 %v3118, %v3222
      %v3283 = vadd.f32 %v3119, %v3227
      %v3284 = vadd.f32 %v3120, %v3230
      %v3285 = vadd.f32 %v3121, %v3235
      %v3286 = vadd.f32 %v3122, %v3238
      %v3287 = vadd.f32 %v3123, %v3243
      %v3288 = vadd.f32 %v3124, %v3246
      %v3289 = vadd.f32 %v3125, %v3251
      %v3290 = vadd.f32 %v3126, %v3254
      %v3291 = vadd.f32 %v3127, %v3259
      %v3292 = vadd.f32 %v3128, %v3262
      %v3293 = vadd.f32 %v3129, %v3267
      %v3294 = vadd.f32 %v3130, %v3270
      %s3295 = scalar_lea.vmem %s4, 56
      %v3296 = vld [vmem:[%s3295] sm:$0xf]
      %v3297 = vld [vmem:[%s3295 + $0x4] sm:$0xf]
      %vm3299 = vcmask 1044480
      %v3300 = vrot.slane %v1822, 3
      %v3301 = vrot.slane %v1823, 3
      %v3302 = vsel %vm3299, %v3300, %v3301
      %v3303 = vrot.slane %v1824, 3
      %v3304 = vsel %vm3299, %v3301, %v3303
      %v3305 = vrot.slane %v1825, 3
      %v3306 = vsel %vm3299, %v3303, %v3305
      %v3307 = vrot.slane %v1826, 3
      %v3308 = vsel %vm3299, %v3305, %v3307
      %v3309 = vrot.slane %v1827, 3
      %v3310 = vsel %vm3299, %v3307, %v3309
      %v3311 = vrot.slane %v1828, 3
      %v3312 = vsel %vm3299, %v3309, %v3311
      %v3313 = vrot.slane %v1829, 3
      %v3314 = vsel %vm3299, %v3311, %v3313
      %v3315 = vrot.slane %v1830, 3
      %v3316 = vsel %vm3299, %v3313, %v3315
      %v3317 = vrot.slane %v1831, 3
      %v3318 = vsel %vm3299, %v3315, %v3317
      %v3319 = vrot.slane %v1832, 3
      %v3320 = vsel %vm3299, %v3317, %v3319
      %v3321 = vrot.slane %v1833, 3
      %v3322 = vsel %vm3299, %v3319, %v3321
      %v3325 = vunpack.c.l.b16 %v3296
      %v3326 = vunpack.c.l.b16 %v3297
      %v3327 = vpack.c.b16 %v3326, %v3325
      %v3330 = vsel %vm1881, %v3302, 0
      %v3333 = vsel %vm1881, %v3304, 0
      %v3336 = vsel %vm1881, %v3306, 0
      %v3339 = vsel %vm1881, %v3308, 0
      %v3342 = vsel %vm1881, %v3310, 0
      %v3345 = vsel %vm1881, %v3312, 0
      %v3348 = vsel %vm1881, %v3314, 0
      %v3351 = vsel %vm1881, %v3316, 0
      %v3354 = vsel %vm1881, %v3318, 0
      %v3357 = vsel %vm1881, %v3320, 0
      %v3360 = vsel %vm1881, %v3322, 0
      %3362 = vmatprep.subr.bf16.mxu0 0
      %3363 = vmatpush1.bf16.msra.mxu0 %v3327
      %3364 = vmatprep.subr.bf16.mxu0 0
      %3365 = vmatpush1.bf16.msra.mxu0 0
      %3366 = vmatprep.subr.bf16.mxu0 0
      %3367 = vmatpush1.bf16.msra.mxu0 0
      %3368 = vmatprep.subr.bf16.mxu0 0
      %3369 = vmatpush1.bf16.msra.mxu0 0
      %3370 = vmatprep.subr.bf16.mxu0 0
      %3371 = vmatpush1.bf16.msra.mxu0 0
      %3372 = vmatprep.subr.bf16.mxu0 0
      %3373 = vmatpush1.bf16.msra.mxu0 0
      %3374 = vmatprep.subr.bf16.mxu0 0
      %3375 = vmatpush1.bf16.msra.mxu0 0
      %3376 = vmatprep.subr.bf16.mxu0 0
      %3377 = vmatpush1.bf16.msra.mxu0 0
      %3378 = vmatprep.subr.bf16.mxu0 0
      %3379 = vmatpush1.bf16.msra.mxu0 0
      %3380 = vmatprep.subr.bf16.mxu0 0
      %3381 = vmatpush1.bf16.msra.mxu0 0
      %3382 = vmatprep.subr.bf16.mxu0 0
      %3383 = vmatpush1.bf16.msra.mxu0 0
      %3384 = vmatprep.subr.bf16.mxu0 0
      %3385 = vmatpush1.bf16.msra.mxu0 0
      %3386 = vmatprep.subr.bf16.mxu0 0
      %3387 = vmatpush1.bf16.msra.mxu0 0
      %3388 = vmatprep.subr.bf16.mxu0 0
      %3389 = vmatpush1.bf16.msra.mxu0 0
      %3390 = vmatprep.subr.bf16.mxu0 0
      %3391 = vmatpush1.bf16.msra.mxu0 0
      %3392 = vmatprep.subr.bf16.mxu0 0
      %3393 = vmatpush1.bf16.msra.mxu0 0
      %3394 = vmatprep.mubr.bf16.mxu0 0
      %3395 = vmatmul.mubr.bf16.gmra.mrb[0].mxu0 %v3330
      %v3396 = vpop.f32.mrb[0].mxu0
      %v3397 = vadd.f32 0.0, %v3396
      %v3398 = vpop.f32.mrb[0].mxu0
      %v3399 = vpop.f32.mrb[0].mxu0
      %v3400 = vadd.f32 0.0, %v3399
      %v3401 = vpop.f32.mrb[0].mxu0
      %3402 = vmatprep.mubr.bf16.mxu0 0
      %3403 = vmatmul.mubr.bf16.gmra.mrb[0].mxu0 %v3333
      %v3404 = vpop.f32.mrb[0].mxu0
      %v3405 = vadd.f32 0.0, %v3404
      %v3406 = vpop.f32.mrb[0].mxu0
      %v3407 = vpop.f32.mrb[0].mxu0
      %v3408 = vadd.f32 0.0, %v3407
      %v3409 = vpop.f32.mrb[0].mxu0
      %3410 = vmatprep.mubr.bf16.mxu0 0
      %3411 = vmatmul.mubr.bf16.gmra.mrb[0].mxu0 %v3336
      %v3412 = vpop.f32.mrb[0].mxu0
      %v3413 = vadd.f32 0.0, %v3412
      %v3414 = vpop.f32.mrb[0].mxu0
      %v3415 = vpop.f32.mrb[0].mxu0
      %v3416 = vadd.f32 0.0, %v3415
      %v3417 = vpop.f32.mrb[0].mxu0
      %3418 = vmatprep.mubr.bf16.mxu0 0
      %3419 = vmatmul.mubr.bf16.gmra.mrb[0].mxu0 %v3339
      %v3420 = vpop.f32.mrb[0].mxu0
      %v3421 = vadd.f32 0.0, %v3420
      %v3422 = vpop.f32.mrb[0].mxu0
      %v3423 = vpop.f32.mrb[0].mxu0
      %v3424 = vadd.f32 0.0, %v3423
      %v3425 = vpop.f32.mrb[0].mxu0
      %3426 = vmatprep.mubr.bf16.mxu0 0
      %3427 = vmatmul.mubr.bf16.gmra.mrb[0].mxu0 %v3342
      %v3428 = vpop.f32.mrb[0].mxu0
      %v3429 = vadd.f32 0.0, %v3428
      %v3430 = vpop.f32.mrb[0].mxu0
      %v3431 = vpop.f32.mrb[0].mxu0
      %v3432 = vadd.f32 0.0, %v3431
      %v3433 = vpop.f32.mrb[0].mxu0
      %3434 = vmatprep.mubr.bf16.mxu0 0
      %3435 = vmatmul.mubr.bf16.gmra.mrb[0].mxu0 %v3345
      %v3436 = vpop.f32.mrb[0].mxu0
      %v3437 = vadd.f32 0.0, %v3436
      %v3438 = vpop.f32.mrb[0].mxu0
      %v3439 = vpop.f32.mrb[0].mxu0
      %v3440 = vadd.f32 0.0, %v3439
      %v3441 = vpop.f32.mrb[0].mxu0
      %3442 = vmatprep.mubr.bf16.mxu0 0
      %3443 = vmatmul.mubr.bf16.gmra.mrb[0].mxu0 %v3348
      %v3444 = vpop.f32.mrb[0].mxu0
      %v3445 = vadd.f32 0.0, %v3444
      %v3446 = vpop.f32.mrb[0].mxu0
      %v3447 = vpop.f32.mrb[0].mxu0
      %v3448 = vadd.f32 0.0, %v3447
      %v3449 = vpop.f32.mrb[0].mxu0
      %3450 = vmatprep.mubr.bf16.mxu0 0
      %3451 = vmatmul.mubr.bf16.gmra.mrb[0].mxu0 %v3351
      %v3452 = vpop.f32.mrb[0].mxu0
      %v3453 = vadd.f32 0.0, %v3452
      %v3454 = vpop.f32.mrb[0].mxu0
      %v3455 = vpop.f32.mrb[0].mxu0
      %v3456 = vadd.f32 0.0, %v3455
      %v3457 = vpop.f32.mrb[0].mxu0
      %3458 = vmatprep.mubr.bf16.mxu0 0
      %3459 = vmatmul.mubr.bf16.gmra.mrb[0].mxu0 %v3354
      %v3460 = vpop.f32.mrb[0].mxu0
      %v3461 = vadd.f32 0.0, %v3460
      %v3462 = vpop.f32.mrb[0].mxu0
      %v3463 = vpop.f32.mrb[0].mxu0
      %v3464 = vadd.f32 0.0, %v3463
      %v3465 = vpop.f32.mrb[0].mxu0
      %3466 = vmatprep.mubr.bf16.mxu0 0
      %3467 = vmatmul.mubr.bf16.gmra.mrb[0].mxu0 %v3357
      %v3468 = vpop.f32.mrb[0].mxu0
      %v3469 = vadd.f32 0.0, %v3468
      %v3470 = vpop.f32.mrb[0].mxu0
      %v3471 = vpop.f32.mrb[0].mxu0
      %v3472 = vadd.f32 0.0, %v3471
      %v3473 = vpop.f32.mrb[0].mxu0
      %3474 = vmatprep.mubr.bf16.mxu0 0
      %3475 = vmatmul.mubr.bf16.gmra.mrb[0].mxu0 %v3360
      %v3476 = vpop.f32.mrb[0].mxu0
      %v3477 = vadd.f32 0.0, %v3476
      %v3478 = vpop.f32.mrb[0].mxu0
      %v3479 = vpop.f32.mrb[0].mxu0
      %v3480 = vadd.f32 0.0, %v3479
      %v3481 = vpop.f32.mrb[0].mxu0
      %3482 = vdwg.mxu0
      %v3483 = vadd.f32 %v3273, %v3397
      %v3484 = vadd.f32 %v3274, %v3400
      %v3485 = vadd.f32 %v3275, %v3405
      %v3486 = vadd.f32 %v3276, %v3408
      %v3487 = vadd.f32 %v3277, %v3413
      %v3488 = vadd.f32 %v3278, %v3416
      %v3489 = vadd.f32 %v3279, %v3421
      %v3490 = vadd.f32 %v3280, %v3424
      %v3491 = vadd.f32 %v3281, %v3429
      %v3492 = vadd.f32 %v3282, %v3432
      %v3493 = vadd.f32 %v3283, %v3437
      %v3494 = vadd.f32 %v3284, %v3440
      %v3495 = vadd.f32 %v3285, %v3445
      %v3496 = vadd.f32 %v3286, %v3448
      %v3497 = vadd.f32 %v3287, %v3453
      %v3498 = vadd.f32 %v3288, %v3456
      %v3499 = vadd.f32 %v3289, %v3461
      %v3500 = vadd.f32 %v3290, %v3464
      %v3501 = vadd.f32 %v3291, %v3469
      %v3502 = vadd.f32 %v3292, %v3472
      %v3503 = vadd.f32 %v3293, %v3477
      %v3504 = vadd.f32 %v3294, %v3480
      %s3505 = scalar_lea.vmem %s4, 64
      %v3506 = vld [vmem:[%s3505] sm:$0xf]
      %v3507 = vld [vmem:[%s3505 + $0x4] sm:$0xf]
      %vm3508 = vsmask.f32 4352
      %v3509 = vrot.slane %v2057, 3
      %v3510 = vrot.slane %v2053, 4
      %v3511 = vor.u32 %v3509, %v3510
      %v3512 = vrot.slane %v2065, 3
      %v3513 = vrot.slane %v2061, 4
      %v3514 = vor.u32 %v3512, %v3513
      %v3515 = vsel %vm3508, %v3511, %v3514
      %v3516 = vrot.slane %v2073, 3
      %v3517 = vrot.slane %v2069, 4
      %v3518 = vor.u32 %v3516, %v3517
      %v3519 = vsel %vm3508, %v3514, %v3518
      %v3520 = vrot.slane %v2081, 3
      %v3521 = vrot.slane %v2077, 4
      %v3522 = vor.u32 %v3520, %v3521
      %v3523 = vsel %vm3508, %v3518, %v3522
      %v3524 = vrot.slane %v2089, 3
      %v3525 = vrot.slane %v2085, 4
      %v3526 = vor.u32 %v3524, %v3525
      %v3527 = vsel %vm3508, %v3522, %v3526
      %v3528 = vrot.slane %v2097, 3
      %v3529 = vrot.slane %v2093, 4
      %v3530 = vor.u32 %v3528, %v3529
      %v3531 = vsel %vm3508, %v3526, %v3530
      %v3532 = vrot.slane %v2105, 3
      %v3533 = vrot.slane %v2101, 4
      %v3534 = vor.u32 %v3532, %v3533
      %v3535 = vsel %vm3508, %v3530, %v3534
      %v3536 = vrot.slane %v2113, 3
      %v3537 = vrot.slane %v2109, 4
      %v3538 = vor.u32 %v3536, %v3537
      %v3539 = vsel %vm3508, %v3534, %v3538
      %v3540 = vrot.slane %v2121, 3
      %v3541 = vrot.slane %v2117, 4
      %v3542 = vor.u32 %v3540, %v3541
      %v3543 = vsel %vm3508, %v3538, %v3542
      %v3544 = vrot.slane %v2336, 3
      %v3545 = vrot.slane %v2125, 4
      %v3546 = vor.u32 %v3544, %v3545
      %v3547 = vsel %vm3508, %v3542, %v3546
      %v3548 = vrot.slane %v2528, 3
      %v3549 = vrot.slane %v2531, 4
      %v3550 = vor.u32 %v3548, %v3549
      %v3551 = vsel %vm3508, %v3546, %v3550
      %v3552 = vrot.slane %v3135, 3
      %v3553 = vrot.slane %v3138, 4
      %v3554 = vor.u32 %v3552, %v3553
      %v3555 = vsel %vm3508, %v3550, %v3554
      %v3558 = vunpack.c.l.b16 %v3506
      %v3559 = vunpack.c.l.b16 %v3507
      %v3560 = vpack.c.b16 %v3559, %v3558
      %v3563 = vsel %vm1881, %v3515, 0
      %v3566 = vsel %vm1881, %v3519, 0
      %v3569 = vsel %vm1881, %v3523, 0
      %v3572 = vsel %vm1881, %v3527, 0
      %v3575 = vsel %vm1881, %v3531, 0
      %v3578 = vsel %vm1881, %v3535, 0
      %v3581 = vsel %vm1881, %v3539, 0
      %v3584 = vsel %vm1881, %v3543, 0
      %v3587 = vsel %vm1881, %v3547, 0
      %v3590 = vsel %vm1881, %v3551, 0
      %v3593 = vsel %vm1881, %v3555, 0
      %3595 = vmatprep.subr.bf16.mxu0 0
      %3596 = vmatpush1.bf16.msra.mxu0 %v3560
      %3597 = vmatprep.subr.bf16.mxu0 0
      %3598 = vmatpush1.bf16.msra.mxu0 0
      %3599 = vmatprep.subr.bf16.mxu0 0
      %3600 = vmatpush1.bf16.msra.mxu0 0
      %3601 = vmatprep.subr.bf16.mxu0 0
      %3602 = vmatpush1.bf16.msra.mxu0 0
      %3603 = vmatprep.subr.bf16.mxu0 0
      %3604 = vmatpush1.bf16.msra.mxu0 0
      %3605 = vmatprep.subr.bf16.mxu0 0
      %3606 = vmatpush1.bf16.msra.mxu0 0
      %3607 = vmatprep.subr.bf16.mxu0 0
      %3608 = vmatpush1.bf16.msra.mxu0 0
      %3609 = vmatprep.subr.bf16.mxu0 0
      %3610 = vmatpush1.bf16.msra.mxu0 0
      %3611 = vmatprep.subr.bf16.mxu0 0
      %3612 = vmatpush1.bf16.msra.mxu0 0
      %3613 = vmatprep.subr.bf16.mxu0 0
      %3614 = vmatpush1.bf16.msra.mxu0 0
      %3615 = vmatprep.subr.bf16.mxu0 0
      %3616 = vmatpush1.bf16.msra.mxu0 0
      %3617 = vmatprep.subr.bf16.mxu0 0
      %3618 = vmatpush1.bf16.msra.mxu0 0
      %3619 = vmatprep.subr.bf16.mxu0 0
      %3620 = vmatpush1.bf16.msra.mxu0 0
      %3621 = vmatprep.subr.bf16.mxu0 0
      %3622 = vmatpush1.bf16.msra.mxu0 0
      %3623 = vmatprep.subr.bf16.mxu0 0
      %3624 = vmatpush1.bf16.msra.mxu0 0
      %3625 = vmatprep.subr.bf16.mxu0 0
      %3626 = vmatpush1.bf16.msra.mxu0 0
      %3627 = vmatprep.mubr.bf16.mxu0 0
      %3628 = vmatmul.mubr.bf16.gmra.mrb[0].mxu0 %v3563
      %v3629 = vpop.f32.mrb[0].mxu0
      %v3630 = vadd.f32 0.0, %v3629
      %v3631 = vpop.f32.mrb[0].mxu0
      %v3632 = vpop.f32.mrb[0].mxu0
      %v3633 = vadd.f32 0.0, %v3632
      %v3634 = vpop.f32.mrb[0].mxu0
      %3635 = vmatprep.mubr.bf16.mxu0 0
      %3636 = vmatmul.mubr.bf16.gmra.mrb[0].mxu0 %v3566
      %v3637 = vpop.f32.mrb[0].mxu0
      %v3638 = vadd.f32 0.0, %v3637
      %v3639 = vpop.f32.mrb[0].mxu0
      %v3640 = vpop.f32.mrb[0].mxu0
      %v3641 = vadd.f32 0.0, %v3640
      %v3642 = vpop.f32.mrb[0].mxu0
      %3643 = vmatprep.mubr.bf16.mxu0 0
      %3644 = vmatmul.mubr.bf16.gmra.mrb[0].mxu0 %v3569
      %v3645 = vpop.f32.mrb[0].mxu0
      %v3646 = vadd.f32 0.0, %v3645
      %v3647 = vpop.f32.mrb[0].mxu0
      %v3648 = vpop.f32.mrb[0].mxu0
      %v3649 = vadd.f32 0.0, %v3648
      %v3650 = vpop.f32.mrb[0].mxu0
      %3651 = vmatprep.mubr.bf16.mxu0 0
      %3652 = vmatmul.mubr.bf16.gmra.mrb[0].mxu0 %v3572
      %v3653 = vpop.f32.mrb[0].mxu0
      %v3654 = vadd.f32 0.0, %v3653
      %v3655 = vpop.f32.mrb[0].mxu0
      %v3656 = vpop.f32.mrb[0].mxu0
      %v3657 = vadd.f32 0.0, %v3656
      %v3658 = vpop.f32.mrb[0].mxu0
      %3659 = vmatprep.mubr.bf16.mxu0 0
      %3660 = vmatmul.mubr.bf16.gmra.mrb[0].mxu0 %v3575
      %v3661 = vpop.f32.mrb[0].mxu0
      %v3662 = vadd.f32 0.0, %v3661
      %v3663 = vpop.f32.mrb[0].mxu0
      %v3664 = vpop.f32.mrb[0].mxu0
      %v3665 = vadd.f32 0.0, %v3664
      %v3666 = vpop.f32.mrb[0].mxu0
      %3667 = vmatprep.mubr.bf16.mxu0 0
      %3668 = vmatmul.mubr.bf16.gmra.mrb[0].mxu0 %v3578
      %v3669 = vpop.f32.mrb[0].mxu0
      %v3670 = vadd.f32 0.0, %v3669
      %v3671 = vpop.f32.mrb[0].mxu0
      %v3672 = vpop.f32.mrb[0].mxu0
      %v3673 = vadd.f32 0.0, %v3672
      %v3674 = vpop.f32.mrb[0].mxu0
      %3675 = vmatprep.mubr.bf16.mxu0 0
      %3676 = vmatmul.mubr.bf16.gmra.mrb[0].mxu0 %v3581
      %v3677 = vpop.f32.mrb[0].mxu0
      %v3678 = vadd.f32 0.0, %v3677
      %v3679 = vpop.f32.mrb[0].mxu0
      %v3680 = vpop.f32.mrb[0].mxu0
      %v3681 = vadd.f32 0.0, %v3680
      %v3682 = vpop.f32.mrb[0].mxu0
      %3683 = vmatprep.mubr.bf16.mxu0 0
      %3684 = vmatmul.mubr.bf16.gmra.mrb[0].mxu0 %v3584
      %v3685 = vpop.f32.mrb[0].mxu0
      %v3686 = vadd.f32 0.0, %v3685
      %v3687 = vpop.f32.mrb[0].mxu0
      %v3688 = vpop.f32.mrb[0].mxu0
      %v3689 = vadd.f32 0.0, %v3688
      %v3690 = vpop.f32.mrb[0].mxu0
      %3691 = vmatprep.mubr.bf16.mxu0 0
      %3692 = vmatmul.mubr.bf16.gmra.mrb[0].mxu0 %v3587
      %v3693 = vpop.f32.mrb[0].mxu0
      %v3694 = vadd.f32 0.0, %v3693
      %v3695 = vpop.f32.mrb[0].mxu0
      %v3696 = vpop.f32.mrb[0].mxu0
      %v3697 = vadd.f32 0.0, %v3696
      %v3698 = vpop.f32.mrb[0].mxu0
      %3699 = vmatprep.mubr.bf16.mxu0 0
      %3700 = vmatmul.mubr.bf16.gmra.mrb[0].mxu0 %v3590
      %v3701 = vpop.f32.mrb[0].mxu0
      %v3702 = vadd.f32 0.0, %v3701
      %v3703 = vpop.f32.mrb[0].mxu0
      %v3704 = vpop.f32.mrb[0].mxu0
      %v3705 = vadd.f32 0.0, %v3704
      %v3706 = vpop.f32.mrb[0].mxu0
      %3707 = vmatprep.mubr.bf16.mxu0 0
      %3708 = vmatmul.mubr.bf16.gmra.mrb[0].mxu0 %v3593
      %v3709 = vpop.f32.mrb[0].mxu0
      %v3710 = vadd.f32 0.0, %v3709
      %v3711 = vpop.f32.mrb[0].mxu0
      %v3712 = vpop.f32.mrb[0].mxu0
      %v3713 = vadd.f32 0.0, %v3712
      %v3714 = vpop.f32.mrb[0].mxu0
      %3715 = vdwg.mxu0
      %v3716 = vadd.f32 %v3483, %v3630
      %v3717 = vadd.f32 %v3484, %v3633
      %v3718 = vadd.f32 %v3485, %v3638
      %v3719 = vadd.f32 %v3486, %v3641
      %v3720 = vadd.f32 %v3487, %v3646
      %v3721 = vadd.f32 %v3488, %v3649
      %v3722 = vadd.f32 %v3489, %v3654
      %v3723 = vadd.f32 %v3490, %v3657
      %v3724 = vadd.f32 %v3491, %v3662
      %v3725 = vadd.f32 %v3492, %v3665
      %v3726 = vadd.f32 %v3493, %v3670
      %v3727 = vadd.f32 %v3494, %v3673
      %v3728 = vadd.f32 %v3495, %v3678
      %v3729 = vadd.f32 %v3496, %v3681
      %v3730 = vadd.f32 %v3497, %v3686
      %v3731 = vadd.f32 %v3498, %v3689
      %v3732 = vadd.f32 %v3499, %v3694
      %v3733 = vadd.f32 %v3500, %v3697
      %v3734 = vadd.f32 %v3501, %v3702
      %v3735 = vadd.f32 %v3502, %v3705
      %v3736 = vadd.f32 %v3503, %v3710
      %v3737 = vadd.f32 %v3504, %v3713
      %v3738 = vpack.c.bf16 %v3717, %v3716
      %v3739 = vpack.c.bf16 %v3719, %v3718
      %v3740 = vpack.c.bf16 %v3721, %v3720
      %v3741 = vpack.c.bf16 %v3723, %v3722
      %v3742 = vpack.c.bf16 %v3725, %v3724
      %v3743 = vpack.c.bf16 %v3727, %v3726
      %v3744 = vpack.c.bf16 %v3729, %v3728
      %v3745 = vpack.c.bf16 %v3731, %v3730
      %v3746 = vpack.c.bf16 %v3733, %v3732
      %v3747 = vpack.c.bf16 %v3735, %v3734
      %v3748 = vpack.c.bf16 %v3737, %v3736
      %v3760 = vunpack.c.l.b16 %v3738
      %v3761 = vunpack.c.h.b16 %v3738
      %v3762 = vunpack.c.l.b16 %v3739
      %v3763 = vunpack.c.h.b16 %v3739
      %v3764 = vunpack.c.l.b16 %v3740
      %v3765 = vunpack.c.h.b16 %v3740
      %v3766 = vunpack.c.l.b16 %v3741
      %v3767 = vunpack.c.h.b16 %v3741
      %v3768 = vunpack.c.l.b16 %v3742
      %v3769 = vunpack.c.h.b16 %v3742
      %v3770 = vunpack.c.l.b16 %v3743
      %v3771 = vunpack.c.h.b16 %v3743
      %v3772 = vunpack.c.l.b16 %v3744
      %v3773 = vunpack.c.h.b16 %v3744
      %v3774 = vunpack.c.l.b16 %v3745
      %v3775 = vunpack.c.h.b16 %v3745
      %v3776 = vunpack.c.l.b16 %v3746
      %v3777 = vunpack.c.h.b16 %v3746
      %v3778 = vunpack.c.l.b16 %v3747
      %v3779 = vunpack.c.h.b16 %v3747
      %v3780 = vunpack.c.l.b16 %v3748
      %v3781 = vunpack.c.h.b16 %v3748
      %v3782 = vpack.c.b16 %v3760, %v3760
      %v3783 = vpack.c.b16 %v3761, %v3761
      %v3784 = vpack.c.b16 %v3762, %v3762
      %v3785 = vpack.c.b16 %v3763, %v3763
      %v3786 = vpack.c.b16 %v3764, %v3764
      %v3787 = vpack.c.b16 %v3765, %v3765
      %v3788 = vpack.c.b16 %v3766, %v3766
      %v3789 = vpack.c.b16 %v3767, %v3767
      %v3790 = vpack.c.b16 %v3768, %v3768
      %v3791 = vpack.c.b16 %v3769, %v3769
      %v3792 = vpack.c.b16 %v3770, %v3770
      %v3793 = vpack.c.b16 %v3771, %v3771
      %v3794 = vpack.c.b16 %v3772, %v3772
      %v3795 = vpack.c.b16 %v3773, %v3773
      %v3796 = vpack.c.b16 %v3774, %v3774
      %v3797 = vpack.c.b16 %v3775, %v3775
      %v3798 = vpack.c.b16 %v3776, %v3776
      %v3799 = vpack.c.b16 %v3777, %v3777
      %v3800 = vpack.c.b16 %v3778, %v3778
      %v3801 = vpack.c.b16 %v3779, %v3779
      %v3802 = vpack.c.b16 %v3780, %v3780
      %v3803 = vpack.c.b16 %v3781, %v3781
      %3826 = vst [vmem:[%s226] sm:$0xf] %v3782
      %3827 = vst [vmem:[%s226 + $0x4] sm:$0xf] %v3783
      %3828 = vst [vmem:[%s226 + $0x8] sm:$0xf] %v3784
      %3829 = vst [vmem:[%s226 + $0xc] sm:$0xf] %v3785
      %3830 = vst [vmem:[%s226 + $0x10] sm:$0xf] %v3786
      %3831 = vst [vmem:[%s226 + $0x14] sm:$0xf] %v3787
      %3832 = vst [vmem:[%s226 + $0x18] sm:$0xf] %v3788
      %3833 = vst [vmem:[%s226 + $0x1c] sm:$0xf] %v3789
      %3834 = vst [vmem:[%s226 + $0x20] sm:$0xf] %v3790
      %3835 = vst [vmem:[%s226 + $0x24] sm:$0xf] %v3791
      %3836 = vst [vmem:[%s226 + $0x28] sm:$0xf] %v3792
      %3837 = vst [vmem:[%s226 + $0x2c] sm:$0xf] %v3793
      %3838 = vst [vmem:[%s226 + $0x30] sm:$0xf] %v3794
      %3839 = vst [vmem:[%s226 + $0x34] sm:$0xf] %v3795
      %3840 = vst [vmem:[%s226 + $0x38] sm:$0xf] %v3796
      %3841 = vst [vmem:[%s226 + $0x3c] sm:$0xf] %v3797
      %3842 = vst [vmem:[%s226 + $0x40] sm:$0xf] %v3798
      %3843 = vst [vmem:[%s226 + $0x44] sm:$0xf] %v3799
      %3844 = vst [vmem:[%s226 + $0x48] sm:$0xf] %v3800
      %3845 = vst [vmem:[%s226 + $0x4c] sm:$0xf] %v3801
      %3846 = vst [vmem:[%s226 + $0x50] sm:$0xf] %v3802
      %3847 = vst [vmem:[%s226 + $0x54] sm:$0xf] %v3803
      %s3848 = smul.u32 22, %s27
      %p3849 = scmp.lt.s32.totalorder %s26, 1
      %s3850 = scalar_select %p3849, %s26, 1
      %p3851 = scmp.lt.s32.totalorder %s3848, 43
      %s3852 = scalar_select %p3851, %s3848, 43
      %s3853 = smul.addr %s3850, 44
      %s3854 = sadd.s32 %s3852, %s3853
      %s3855 = smul.addr %s3854, 4
      %s3856 = scalar_lea.vmem %s5, %s3855
      // Predicated region
      $region37: #{conv_block.1} parent=35 // pred_check
        %p3857 = pneg %p143
      $region38: #{conv_block.1} parent=35 // pred_check_branch
        %3859 = sbr.rel (%p3857) target = $region40
      $region39: #{conv_block.1} parent=35 // pred_region
        %s3860 = smul.u32 22, %s27
      $region40: #{conv_block.1} parent=35 // pred_fallthru
        _
    $region36: #{conv_block.1} parent=5 // pred_fallthru
      _
    %p3861 = scmp.le.s32.totalorder 2, %s17
    // Predicated region
    $region41: #{conv_block.1} parent=5 // pred_check
      %p3862 = pneg %p3861
    $region42: #{conv_block.1} parent=5 // pred_check_branch
      %3864 = sbr.rel (%p3862) target = $region44
    $region43: #{conv_block.1} parent=5 // pred_region
      %s3865 = ssub.s32 %s17, 2
      // Predicated region
      $region45: #{conv_block.1} parent=43 // pred_check
        %p3866 = pneg %p149
      $region46: #{conv_block.1} parent=43 // pred_check_branch
        %3868 = sbr.rel (%p3866) target = $region48
      $region47: #{conv_block.1} parent=43 // pred_region
        %s3869 = smul.u32 22, %s29
        %p3870 = scmp.lt.s32.totalorder %s28, 1
        %s3871 = scalar_select %p3870, %s28, 1
        %p3872 = scmp.lt.s32.totalorder %s3869, 43
        %s3873 = scalar_select %p3872, %s3869, 43
        %s3874 = smul.addr %s3871, 44
        %s3875 = sadd.s32 %s3873, %s3874
        %s3876 = smul.addr %s3875, 4
        %s3877 = scalar_lea.vmem %s5, %s3876
      $region48: #{conv_block.1} parent=43 // pred_fallthru
        _
    $region44: #{conv_block.1} parent=5 // pred_fallthru
      _
  $region6: #{conv_block.1} parent=0 // loop_footer
    %s21 = sadd.s32 1, %s17
  $region7: #{conv_block.1} parent=0 // loop_footer_branch
    %16 = sbr.rel target = $region3
  $region8: #{conv_block.1} parent=0 // loop_exit
    _

</llo_original>
